<compile_context>
chip_gen: v6e
topology: v6e:2x2x1
jax: 0.10.0
libtpu: 0.0.40
codegen_flags: <defaults>
</compile_context>

<pallas_src>
import jax
import jax.numpy as jnp
from jax import lax
from jax.experimental import pallas as pl
from jax.experimental.pallas import tpu as pltpu

EPS_IN = 1e-5  # nn.InstanceNorm2d default eps


# ----------------------------- Pallas kernel --------------------------------
def _cres_kernel(x_ref, gb_ref, w_ref, out_ref, shifted_sc, y_sc):
    H, W, C = x_ref.shape                     # leading batch dim is squeezed out
    mm_dtype = shifted_sc.dtype
    # row-strip size for the pack / normalize loops (bounds vreg live ranges)
    S = 4 if H % 4 == 0 else (2 if H % 2 == 0 else 1)
    n_strips = H // S
    inv_hw = 1.0 / (H * W)

    gb = gb_ref[...]                          # (4, C): [gamma1, beta1, gamma2, beta2]
    g1, b1, g2, b2 = gb[0:1], gb[1:2], gb[2:3], gb[3:4]

    def write_shifted_strip(r0, strip_flat):
        """Pack one S-row strip of a conv input into the three dw-shifted tap
        slabs of shifted_sc (padded-frame rows r0+1 .. r0+S).

        Lane block dw*C:(dw+1)*C of padded-frame row r, column w holds
        z_pad[r, w+dw, :].  The center tap is a fully aligned store; the two
        off-center taps are the single shifted copy per dw (the minimum relayout
        a 3x3 stencil requires)."""
        s3 = strip_flat.reshape(S, W, C).astype(mm_dtype)
        rows = pl.ds(r0 + 1, S)               # leading (untiled) axis -> no align issue
        # dw = 1 (center): aligned, unmasked store
        shifted_sc[rows, :, C:2 * C] = s3
        # dw = 0 (left): padded col 0 <- col 1 (reflect); cols 1..W-1 <- cols 0..W-2
        shifted_sc[rows, 0:1, 0:C] = s3[:, 1:2, :]
        shifted_sc[rows, 1:W, 0:C] = s3[:, 0:W - 1, :]
        # dw = 2 (right): cols 0..W-2 <- cols 1..W-1; col W-1 <- col W-2 (reflect)
        shifted_sc[rows, 0:W - 1, 2 * C:3 * C] = s3[:, 1:W, :]
        shifted_sc[rows, W - 1:W, 2 * C:3 * C] = s3[:, W - 2:W - 1, :]

    def conv3x3(layer):
        """3x3 conv of the packed input: 3 accumulated K=3C MXU matmuls, one per
        dh tap; each dh view is an aligned leading-row slice of shifted_sc."""
        # reflected top / bottom pad rows for all three taps at once (corners incl.)
        shifted_sc[0:1] = shifted_sc[2:3]                 # z_pad[0]   = z[1]
        shifted_sc[H + 1:H + 2] = shifted_sc[H - 1:H]     # z_pad[H+1] = z[H-2]
        for dh in range(3):
            patch = shifted_sc[dh:dh + H].reshape(H * W, 3 * C)
            dot = jnp.dot(patch, w_ref[3 * layer + dh],
                          preferred_element_type=jnp.float32)
            if dh == 0:
                y_sc[...] = dot
            else:
                y_sc[...] += dot

    def instance_stats():
        """Per-channel mean / rstd of y_sc, accumulated strip-wise in f32."""
        def body(i, carry):
            s, ss = carry
            rr = pl.multiple_of(i * (S * W), 8)
            v = y_sc[pl.ds(rr, S * W), :]
            return (s + jnp.sum(v, axis=0, keepdims=True),
                    ss + jnp.sum(v * v, axis=0, keepdims=True))
        zero = jnp.zeros((1, C), jnp.float32)
        s, ss = lax.fori_loop(0, n_strips, body, (zero, zero))
        mean = s * inv_hw
        var = jnp.maximum(ss * inv_hw - mean * mean, 0.0)   # guard cancellation
        return mean, lax.rsqrt(var + EPS_IN)

    # ---- layer 1: pack x into shifted taps, conv, stats ----------------------
    @pl.loop(0, n_strips)
    def _(i):
        r0 = i * S
        xs = x_ref[pl.ds(r0, S)]                           # (S, W, C) f32
        write_shifted_strip(r0, xs.reshape(S * W, C))

    conv3x3(0)
    mean1, rstd1 = instance_stats()

    # ---- normalize + affine + ReLU, re-pack as layer-2 input -----------------
    @pl.loop(0, n_strips)
    def _(i):
        r0 = i * S
        rr = pl.multiple_of(i * (S * W), 8)
        v = y_sc[pl.ds(rr, S * W), :]
        v = (v - mean1) * rstd1 * g1 + b1
        v = jnp.maximum(v, 0.0)   # TODO(synk): nl_layer undefined in source; ReLU assumed.
        write_shifted_strip(r0, v)

    conv3x3(1)
    mean2, rstd2 = instance_stats()

    # ---- normalize + affine + residual add -----------------------------------
    @pl.loop(0, n_strips)
    def _(i):
        r0 = i * S
        rr = pl.multiple_of(i * (S * W), 8)
        v = y_sc[pl.ds(rr, S * W), :]
        v = (v - mean2) * rstd2 * g2 + b2
        xs = x_ref[pl.ds(r0, S)].reshape(S * W, C)         # re-read x (no long live range)
        out_ref[pl.ds(r0, S)] = (xs + v).reshape(S, W, C).astype(out_ref.dtype)


# ------------------------------- wrapper -------------------------------------
def cresidual_block(x, c, params, *, matmul_dtype=jnp.bfloat16):
    """x: (N, H, W, C) f32 NHWC, c: (N, c_dim) f32.
    Returns (x + residual, c), matching the PyTorch forward's `[x + y, c]`.
    matmul_dtype: MXU-input dtype for im2col patches / conv weights (accumulation
    is always f32). Default bf16 (MXU-native); pass jnp.float32 for tight checks."""
    N, H, W, C = x.shape
    assert W % 8 == 0 and C % 128 == 0, "W must be sublane-aligned and C lane-aligned"
    (w1, w2, wg1, bg1, wb1, bb1, wg2, bg2, wb2, bb2) = params

    # conv weights: HWIO (3,3,Cin,Cout) -> (layer*3 + dh, dw*Cin + ci, Cout)
    w_all = jnp.concatenate(
        [w1.reshape(3, 3 * C, C), w2.reshape(3, 3 * C, C)], axis=0
    ).astype(matmul_dtype)                                  # (6, 3C, C)

    # conditional-IN affine params hoisted out of the kernel, fused into one operand
    g1 = c @ wg1 + bg1
    b1 = c @ wb1 + bb1
    g2 = c @ wg2 + bg2
    b2 = c @ wb2 + bb2
    gb = jnp.stack([g1, b1, g2, b2], axis=1)                # (N, 4, C)

    grid_spec = pltpu.PrefetchScalarGridSpec(
        num_scalar_prefetch=0,
        grid=(N,),
        in_specs=[
            pl.BlockSpec((None, H, W, C), lambda n: (n, 0, 0, 0)),   # x (one image)
            pl.BlockSpec((None, 4, C), lambda n: (n, 0, 0)),         # fused gamma/beta
            pl.BlockSpec((6, 3 * C, C), lambda n: (0, 0, 0)),        # packed conv weights
        ],
        out_specs=pl.BlockSpec((None, H, W, C), lambda n: (n, 0, 0, 0)),
        scratch_shapes=[
            pltpu.VMEM((H + 2, W, 3 * C), matmul_dtype),   # dw-shifted tap slabs (padded frame)
            pltpu.VMEM((H * W, C), jnp.float32),           # conv output / IN staging
        ],
    )
    out = pl.pallas_call(
        _cres_kernel,
        out_shape=jax.ShapeDtypeStruct((N, H, W, C), x.dtype),
        grid_spec=grid_spec,
        compiler_params=pltpu.CompilerParams(
            # batch images are independent; on v7x consider pltpu.CORE_PARALLEL if
            # profiling shows one TensorCore idle.
            dimension_semantics=("parallel",)),
    )(x, gb, w_all)
    return out, c


# ---------------------------- parameter setup (glue) -------------------------
def spectral_normalize(key, w_oihw, n_iter=50):
    """Approximates torch spectral_norm: w / sigma_max(w.view(out, -1))."""
    mat = w_oihw.reshape(w_oihw.shape[0], -1)
    u = jax.random.normal(key, (mat.shape[0],), jnp.float32)
    u = u / (jnp.linalg.norm(u) + 1e-12)
    v = mat.T @ u
    v = v / (jnp.linalg.norm(v) + 1e-12)
    for _ in range(n_iter):
        v = mat.T @ u
        v = v / (jnp.linalg.norm(v) + 1e-12)
        u = mat @ v
        u = u / (jnp.linalg.norm(u) + 1e-12)
    sigma = u @ (mat @ v)
    return w_oihw / sigma


def init_params(key, C, cdim):
    ks = jax.random.split(key, 8)
    # torch conv weight layout: (Cout, Cin, kh, kw)
    w1_t = spectral_normalize(ks[6], jax.random.normal(ks[0], (C, C, 3, 3), jnp.float32) * 0.1)
    w2_t = spectral_normalize(ks[7], jax.random.normal(ks[1], (C, C, 3, 3), jnp.float32) * 0.1)
    # -> HWIO (kh, kw, Cin, Cout) for channels-last conv
    w1 = jnp.transpose(w1_t, (2, 3, 1, 0))
    w2 = jnp.transpose(w2_t, (2, 3, 1, 0))

    def lin(k):
        kw_, kb_ = jax.random.split(k)
        wt = jax.random.normal(kw_, (C, cdim), jnp.float32) * 0.1   # torch Linear (out, in)
        bt = jax.random.normal(kb_, (C,), jnp.float32) * 0.1
        return wt.T, bt                                             # (cdim, C), (C,)

    wg1, bg1 = lin(ks[2])
    wb1, bb1 = lin(ks[3])
    wg2, bg2 = lin(ks[4])
    wb2, bb2 = lin(ks[5])
    return (w1, w2, wg1, bg1, wb1, bb1, wg2, bg2, wb2, bb2)


# ------------------------------ pure-JAX reference ----------------------------
def ref_forward(x, c, params):
    (w1, w2, wg1, bg1, wb1, bb1, wg2, bg2, wb2, bb2) = params

    def refl_pad(z):
        return jnp.pad(z, ((0, 0), (1, 1), (1, 1), (0, 0)), mode='reflect')

    def conv(z, w):
        return jax.lax.conv_general_dilated(
            refl_pad(z), w, (1, 1), 'VALID',
            dimension_numbers=('NHWC', 'HWIO', 'NHWC'),
            precision=jax.lax.Precision.HIGHEST)

    def cin(z, wg, bg, wb, bb):
        mean = z.mean(axis=(1, 2), keepdims=True)
        var = ((z - mean) ** 2).mean(axis=(1, 2), keepdims=True)
        zn = (z - mean) * jax.lax.rsqrt(var + EPS_IN)
        gamma = c @ wg + bg
        beta = c @ wb + bb
        return zn * gamma[:, None, None, :] + beta[:, None, None, :]

    y = jnp.maximum(cin(conv(x, w1), wg1, bg1, wb1, bb1), 0.0)
    y = cin(conv(y, w2), wg2, bg2, wb2, bb2)
    return x + y


# ----------------------------------- main -------------------------------------
if __name__ == "__main__":
    # h_dim = 128 keeps the channel axis lane-dense; spatial 16x16, batch 2, c_dim 8.
    N, H, W, C, CDIM = 2, 16, 16, 128, 8
    key = jax.random.PRNGKey(0)
    kx, kc, kp = jax.random.split(key, 3)
    x = jax.random.normal(kx, (N, H, W, C), jnp.float32)
    c = jax.random.normal(kc, (N, CDIM), jnp.float32)
    params = init_params(kp, C, CDIM)

    ref = ref_forward(x, c, params)

    # default perf path: bf16 MXU inputs, f32 accumulation (looser tolerance: bf16
    # quantization of patches/weights gives ~1e-2-level deviations).
    out_bf16, c_out = cresidual_block(x, c, params)
    jax.block_until_ready(out_bf16)
    err_b = float(jnp.max(jnp.abs(out_bf16 - ref)))
    assert jnp.allclose(out_bf16, ref, rtol=5e-2, atol=5e-2), f"bf16 max abs err {err_b}"
    assert c_out.shape == c.shape

    # f32 MXU path: tight check against the f32 reference.
    out_f32, _ = cresidual_block(x, c, params, matmul_dtype=jnp.float32)
    jax.block_until_ready(out_f32)
    err_f = float(jnp.max(jnp.abs(out_f32 - ref)))
    assert jnp.allclose(out_f32, ref, rtol=1e-3, atol=1e-3), f"f32 max abs err {err_f}"

    print("KERNEL_OK")
</pallas_src>

<mosaic_0001>
module attributes {stable_mosaic.version = 11 : i64} {
  func.func @_cres_kernel(%arg0: i32, %arg1: memref<1x16x16x128xf32, #tpu.memory_space<vmem>>, %arg2: memref<1x4x128xf32, #tpu.memory_space<vmem>>, %arg3: memref<6x384x128xbf16, #tpu.memory_space<vmem>>, %arg4: memref<1x16x16x128xf32, #tpu.memory_space<vmem>>, %arg5: memref<18x16x384xbf16, #tpu.memory_space<vmem>>, %arg6: memref<256x128xf32, #tpu.memory_space<vmem>>) attributes {dimension_semantics = [#tpu.dimension_semantics<parallel>], iteration_bounds = array<i64: 2>, scalar_prefetch = 0 : i64, scratch_operands = 2 : i64, tpu.core_type = #tpu.core_type<tc>, window_params = [{transform_indices = @transform_0, window_bounds = array<i64: 1, 16, 16, 128>}, {transform_indices = @transform_1, window_bounds = array<i64: 1, 4, 128>}, {pipeline_mode = #tpu.pipeline_mode<synchronous>, transform_indices = @transform_2, window_bounds = array<i64: 6, 384, 128>}, {transform_indices = @transform_3, window_bounds = array<i64: 1, 16, 16, 128>}]} {
    %c0 = arith.constant 0 : index
    %c0_0 = arith.constant 0 : index
    %c0_1 = arith.constant 0 : index
    %0 = vector.load %arg2[%c0, %c0_0, %c0_1] : memref<1x4x128xf32, #tpu.memory_space<vmem>>, vector<1x4x128xf32>
    %1 = vector.shape_cast %0 : vector<1x4x128xf32> to vector<4x128xf32>
    %2 = vector.extract_strided_slice %1 {offsets = [0, 0], sizes = [1, 128], strides = [1, 1]} : vector<4x128xf32> to vector<1x128xf32>
    %3 = vector.extract_strided_slice %1 {offsets = [1, 0], sizes = [1, 128], strides = [1, 1]} : vector<4x128xf32> to vector<1x128xf32>
    %4 = vector.extract_strided_slice %1 {offsets = [2, 0], sizes = [1, 128], strides = [1, 1]} : vector<4x128xf32> to vector<1x128xf32>
    %5 = vector.extract_strided_slice %1 {offsets = [3, 0], sizes = [1, 128], strides = [1, 1]} : vector<4x128xf32> to vector<1x128xf32>
    %c0_i32 = arith.constant 0 : i32
    %c4_i32 = arith.constant 4 : i32
    %6 = arith.addi %c0_i32, %c4_i32 : i32
    %c1_i32 = arith.constant 1 : i32
    scf.for %arg7 = %c0_i32 to %6 step %c1_i32  : i32 {
      %c1_i32_107 = arith.constant 1 : i32
      %89 = arith.muli %arg7, %c1_i32_107 : i32
      %c0_i32_108 = arith.constant 0 : i32
      %90 = arith.addi %c0_i32_108, %89 : i32
      %c4_i32_109 = arith.constant 4 : i32
      %91 = arith.muli %90, %c4_i32_109 : i32
      %c0_110 = arith.constant 0 : index
      %92 = arith.index_cast %91 : i32 to index
      %c0_111 = arith.constant 0 : index
      %c0_112 = arith.constant 0 : index
      %93 = vector.load %arg1[%c0_110, %92, %c0_111, %c0_112] : memref<1x16x16x128xf32, #tpu.memory_space<vmem>>, vector<1x4x16x128xf32>
      %94 = vector.shape_cast %93 : vector<1x4x16x128xf32> to vector<4x16x128xf32>
      %95 = vector.shape_cast %94 : vector<4x16x128xf32> to vector<64x128xf32>
      %96 = vector.shape_cast %95 : vector<64x128xf32> to vector<4x16x128xf32>
      %97 = arith.truncf %96 : vector<4x16x128xf32> to vector<4x16x128xbf16>
      %c1_i32_113 = arith.constant 1 : i32
      %98 = arith.addi %91, %c1_i32_113 : i32
      %99 = arith.index_cast %98 : i32 to index
      %c0_114 = arith.constant 0 : index
      %c128 = arith.constant 128 : index
      %100 = vector.load %arg5[%99, %c0_114, %c128] : memref<18x16x384xbf16, #tpu.memory_space<vmem>>, vector<4x16x128xbf16>
      tpu.vector_store %arg5[%99, %c0_114, %c128], %97 {strides = array<i32>} : memref<18x16x384xbf16, #tpu.memory_space<vmem>>, vector<4x16x128xbf16>,
      %101 = vector.extract_strided_slice %97 {offsets = [0, 1, 0], sizes = [4, 1, 128], strides = [1, 1, 1]} : vector<4x16x128xbf16> to vector<4x1x128xbf16>
      %102 = arith.index_cast %98 : i32 to index
      %c0_115 = arith.constant 0 : index
      %c0_116 = arith.constant 0 : index
      %103 = vector.load %arg5[%102, %c0_115, %c0_116] : memref<18x16x384xbf16, #tpu.memory_space<vmem>>, vector<4x1x128xbf16>
      tpu.vector_store %arg5[%102, %c0_115, %c0_116], %101 {strides = array<i32>} : memref<18x16x384xbf16, #tpu.memory_space<vmem>>, vector<4x1x128xbf16>,
      %104 = vector.extract_strided_slice %97 {offsets = [0, 0, 0], sizes = [4, 15, 128], strides = [1, 1, 1]} : vector<4x16x128xbf16> to vector<4x15x128xbf16>
      %105 = arith.index_cast %98 : i32 to index
      %c1_117 = arith.constant 1 : index
      %c0_118 = arith.constant 0 : index
      %106 = vector.load %arg5[%105, %c1_117, %c0_118] : memref<18x16x384xbf16, #tpu.memory_space<vmem>>, vector<4x15x128xbf16>
      tpu.vector_store %arg5[%105, %c1_117, %c0_118], %104 {strides = array<i32>} : memref<18x16x384xbf16, #tpu.memory_space<vmem>>, vector<4x15x128xbf16>,
      %107 = vector.extract_strided_slice %97 {offsets = [0, 1, 0], sizes = [4, 15, 128], strides = [1, 1, 1]} : vector<4x16x128xbf16> to vector<4x15x128xbf16>
      %108 = arith.index_cast %98 : i32 to index
      %c0_119 = arith.constant 0 : index
      %c256 = arith.constant 256 : index
      %109 = vector.load %arg5[%108, %c0_119, %c256] : memref<18x16x384xbf16, #tpu.memory_space<vmem>>, vector<4x15x128xbf16>
      tpu.vector_store %arg5[%108, %c0_119, %c256], %107 {strides = array<i32>} : memref<18x16x384xbf16, #tpu.memory_space<vmem>>, vector<4x15x128xbf16>,
      %110 = vector.extract_strided_slice %97 {offsets = [0, 14, 0], sizes = [4, 1, 128], strides = [1, 1, 1]} : vector<4x16x128xbf16> to vector<4x1x128xbf16>
      %111 = arith.index_cast %98 : i32 to index
      %c15_120 = arith.constant 15 : index
      %c256_121 = arith.constant 256 : index
      %112 = vector.load %arg5[%111, %c15_120, %c256_121] : memref<18x16x384xbf16, #tpu.memory_space<vmem>>, vector<4x1x128xbf16>
      tpu.vector_store %arg5[%111, %c15_120, %c256_121], %110 {strides = array<i32>} : memref<18x16x384xbf16, #tpu.memory_space<vmem>>, vector<4x1x128xbf16>,
    }
    %c4_i32_2 = arith.constant 4 : i32
    %c2 = arith.constant 2 : index
    %c0_3 = arith.constant 0 : index
    %c0_4 = arith.constant 0 : index
    %7 = vector.load %arg5[%c2, %c0_3, %c0_4] : memref<18x16x384xbf16, #tpu.memory_space<vmem>>, vector<1x16x384xbf16>
    %c0_5 = arith.constant 0 : index
    %c0_6 = arith.constant 0 : index
    %c0_7 = arith.constant 0 : index
    %8 = vector.load %arg5[%c0_5, %c0_6, %c0_7] : memref<18x16x384xbf16, #tpu.memory_space<vmem>>, vector<1x16x384xbf16>
    tpu.vector_store %arg5[%c0_5, %c0_6, %c0_7], %7 {strides = array<i32>} : memref<18x16x384xbf16, #tpu.memory_space<vmem>>, vector<1x16x384xbf16>,
    %c15 = arith.constant 15 : index
    %c0_8 = arith.constant 0 : index
    %c0_9 = arith.constant 0 : index
    %9 = vector.load %arg5[%c15, %c0_8, %c0_9] : memref<18x16x384xbf16, #tpu.memory_space<vmem>>, vector<1x16x384xbf16>
    %c17 = arith.constant 17 : index
    %c0_10 = arith.constant 0 : index
    %c0_11 = arith.constant 0 : index
    %10 = vector.load %arg5[%c17, %c0_10, %c0_11] : memref<18x16x384xbf16, #tpu.memory_space<vmem>>, vector<1x16x384xbf16>
    tpu.vector_store %arg5[%c17, %c0_10, %c0_11], %9 {strides = array<i32>} : memref<18x16x384xbf16, #tpu.memory_space<vmem>>, vector<1x16x384xbf16>,
    %c0_12 = arith.constant 0 : index
    %c0_13 = arith.constant 0 : index
    %c0_14 = arith.constant 0 : index
    %11 = vector.load %arg5[%c0_12, %c0_13, %c0_14] : memref<18x16x384xbf16, #tpu.memory_space<vmem>>, vector<16x16x384xbf16>
    %12 = vector.shape_cast %11 : vector<16x16x384xbf16> to vector<256x384xbf16>
    %c0_15 = arith.constant 0 : index
    %c0_16 = arith.constant 0 : index
    %c0_17 = arith.constant 0 : index
    %13 = vector.load %arg3[%c0_15, %c0_16, %c0_17] : memref<6x384x128xbf16, #tpu.memory_space<vmem>>, vector<1x384x128xbf16>
    %14 = vector.shape_cast %13 : vector<1x384x128xbf16> to vector<384x128xbf16>
    %cst = arith.constant dense<0.000000e+00> : vector<256x128xf32>
    %15 = tpu.matmul %12, %14, %cst {dimension_numbers = #tpu.dot_dimension_numbers<[1], [0], [0], [1], [0, 0, 1, 1], [], []>} : vector<256x384xbf16>, vector<384x128xbf16>, vector<256x128xf32> -> vector<256x128xf32>
    %c0_18 = arith.constant 0 : index
    %c0_19 = arith.constant 0 : index
    %16 = vector.load %arg6[%c0_18, %c0_19] : memref<256x128xf32, #tpu.memory_space<vmem>>, vector<256x128xf32>
    tpu.vector_store %arg6[%c0_18, %c0_19], %15 {strides = array<i32>} : memref<256x128xf32, #tpu.memory_space<vmem>>, vector<256x128xf32>,
    %c1 = arith.constant 1 : index
    %c0_20 = arith.constant 0 : index
    %c0_21 = arith.constant 0 : index
    %17 = vector.load %arg5[%c1, %c0_20, %c0_21] : memref<18x16x384xbf16, #tpu.memory_space<vmem>>, vector<16x16x384xbf16>
    %18 = vector.shape_cast %17 : vector<16x16x384xbf16> to vector<256x384xbf16>
    %c1_22 = arith.constant 1 : index
    %c0_23 = arith.constant 0 : index
    %c0_24 = arith.constant 0 : index
    %19 = vector.load %arg3[%c1_22, %c0_23, %c0_24] : memref<6x384x128xbf16, #tpu.memory_space<vmem>>, vector<1x384x128xbf16>
    %20 = vector.shape_cast %19 : vector<1x384x128xbf16> to vector<384x128xbf16>
    %cst_25 = arith.constant dense<0.000000e+00> : vector<256x128xf32>
    %21 = tpu.matmul %18, %20, %cst_25 {dimension_numbers = #tpu.dot_dimension_numbers<[1], [0], [0], [1], [0, 0, 1, 1], [], []>} : vector<256x384xbf16>, vector<384x128xbf16>, vector<256x128xf32> -> vector<256x128xf32>
    %c0_26 = arith.constant 0 : index
    %c0_27 = arith.constant 0 : index
    %22 = vector.load %arg6[%c0_26, %c0_27] : memref<256x128xf32, #tpu.memory_space<vmem>>, vector<256x128xf32>
    %23 = arith.addf %22, %21 : vector<256x128xf32>
    %c0_28 = arith.constant 0 : index
    %c0_29 = arith.constant 0 : index
    %24 = vector.load %arg6[%c0_28, %c0_29] : memref<256x128xf32, #tpu.memory_space<vmem>>, vector<256x128xf32>
    tpu.vector_store %arg6[%c0_28, %c0_29], %23 {strides = array<i32>} : memref<256x128xf32, #tpu.memory_space<vmem>>, vector<256x128xf32>,
    %c2_30 = arith.constant 2 : index
    %c0_31 = arith.constant 0 : index
    %c0_32 = arith.constant 0 : index
    %25 = vector.load %arg5[%c2_30, %c0_31, %c0_32] : memref<18x16x384xbf16, #tpu.memory_space<vmem>>, vector<16x16x384xbf16>
    %26 = vector.shape_cast %25 : vector<16x16x384xbf16> to vector<256x384xbf16>
    %c2_33 = arith.constant 2 : index
    %c0_34 = arith.constant 0 : index
    %c0_35 = arith.constant 0 : index
    %27 = vector.load %arg3[%c2_33, %c0_34, %c0_35] : memref<6x384x128xbf16, #tpu.memory_space<vmem>>, vector<1x384x128xbf16>
    %28 = vector.shape_cast %27 : vector<1x384x128xbf16> to vector<384x128xbf16>
    %cst_36 = arith.constant dense<0.000000e+00> : vector<256x128xf32>
    %29 = tpu.matmul %26, %28, %cst_36 {dimension_numbers = #tpu.dot_dimension_numbers<[1], [0], [0], [1], [0, 0, 1, 1], [], []>} : vector<256x384xbf16>, vector<384x128xbf16>, vector<256x128xf32> -> vector<256x128xf32>
    %c0_37 = arith.constant 0 : index
    %c0_38 = arith.constant 0 : index
    %30 = vector.load %arg6[%c0_37, %c0_38] : memref<256x128xf32, #tpu.memory_space<vmem>>, vector<256x128xf32>
    %31 = arith.addf %30, %29 : vector<256x128xf32>
    %c0_39 = arith.constant 0 : index
    %c0_40 = arith.constant 0 : index
    %32 = vector.load %arg6[%c0_39, %c0_40] : memref<256x128xf32, #tpu.memory_space<vmem>>, vector<256x128xf32>
    tpu.vector_store %arg6[%c0_39, %c0_40], %31 {strides = array<i32>} : memref<256x128xf32, #tpu.memory_space<vmem>>, vector<256x128xf32>,
    %cst_41 = arith.constant 0.000000e+00 : f32
    %33 = vector.broadcast %cst_41 : f32 to vector<1x128xf32>
    %c0_i32_42 = arith.constant 0 : i32
    %c4_i32_43 = arith.constant 4 : i32
    %34 = arith.addi %c0_i32_42, %c4_i32_43 : i32
    %c1_i32_44 = arith.constant 1 : i32
    %35:2 = scf.for %arg7 = %c0_i32_42 to %34 step %c1_i32_44 iter_args(%arg8 = %33, %arg9 = %33) -> (vector<1x128xf32>, vector<1x128xf32>)  : i32 {
      %c64_i32 = arith.constant 64 : i32
      %89 = arith.muli %arg7, %c64_i32 : i32
      %90 = tpu.assume_multiple %89, 8 : i32
      %91 = arith.index_cast %90 : i32 to index
      %c0_107 = arith.constant 0 : index
      %92 = vector.load %arg6[%91, %c0_107] : memref<256x128xf32, #tpu.memory_space<vmem>>, vector<64x128xf32>
      %cst_108 = arith.constant dense<0.000000e+00> : vector<128xf32>
      %93 = vector.multi_reduction <add>, %92, %cst_108 [0] : vector<64x128xf32> to vector<128xf32>
      %94 = vector.shape_cast %93 : vector<128xf32> to vector<1x128xf32>
      %95 = arith.addf %arg8, %94 : vector<1x128xf32>
      %96 = arith.mulf %92, %92 : vector<64x128xf32>
      %cst_109 = arith.constant dense<0.000000e+00> : vector<128xf32>
      %97 = vector.multi_reduction <add>, %96, %cst_109 [0] : vector<64x128xf32> to vector<128xf32>
      %98 = vector.shape_cast %97 : vector<128xf32> to vector<1x128xf32>
      %99 = arith.addf %arg9, %98 : vector<1x128xf32>
      scf.yield %95, %99 : vector<1x128xf32>, vector<1x128xf32>
    }
    %c4_i32_45 = arith.constant 4 : i32
    %cst_46 = arith.constant 3.906250e-03 : f32
    %36 = vector.broadcast %cst_46 : f32 to vector<1x128xf32>
    %37 = arith.mulf %35#0, %36 : vector<1x128xf32>
    %cst_47 = arith.constant 3.906250e-03 : f32
    %38 = vector.broadcast %cst_47 : f32 to vector<1x128xf32>
    %39 = arith.mulf %35#1, %38 : vector<1x128xf32>
    %40 = arith.mulf %37, %37 : vector<1x128xf32>
    %41 = arith.subf %39, %40 : vector<1x128xf32>
    %cst_48 = arith.constant 0.000000e+00 : f32
    %42 = vector.broadcast %cst_48 : f32 to vector<1x128xf32>
    %43 = arith.maximumf %41, %42 : vector<1x128xf32>
    %cst_49 = arith.constant 9.99999974E-6 : f32
    %44 = vector.broadcast %cst_49 : f32 to vector<1x128xf32>
    %45 = arith.addf %43, %44 : vector<1x128xf32>
    %46 = math.rsqrt %45 : vector<1x128xf32>
    %c0_i32_50 = arith.constant 0 : i32
    %c4_i32_51 = arith.constant 4 : i32
    %47 = arith.addi %c0_i32_50, %c4_i32_51 : i32
    %c1_i32_52 = arith.constant 1 : i32
    scf.for %arg7 = %c0_i32_50 to %47 step %c1_i32_52  : i32 {
      %c1_i32_107 = arith.constant 1 : i32
      %89 = arith.muli %arg7, %c1_i32_107 : i32
      %c0_i32_108 = arith.constant 0 : i32
      %90 = arith.addi %c0_i32_108, %89 : i32
      %c4_i32_109 = arith.constant 4 : i32
      %91 = arith.muli %90, %c4_i32_109 : i32
      %c64_i32 = arith.constant 64 : i32
      %92 = arith.muli %90, %c64_i32 : i32
      %93 = tpu.assume_multiple %92, 8 : i32
      %94 = arith.index_cast %93 : i32 to index
      %c0_110 = arith.constant 0 : index
      %95 = vector.load %arg6[%94, %c0_110] : memref<256x128xf32, #tpu.memory_space<vmem>>, vector<64x128xf32>
      %96 = vector.broadcast %37 : vector<1x128xf32> to vector<64x128xf32>
      %97 = arith.subf %95, %96 : vector<64x128xf32>
      %98 = vector.broadcast %46 : vector<1x128xf32> to vector<64x128xf32>
      %99 = arith.mulf %97, %98 : vector<64x128xf32>
      %100 = vector.broadcast %2 : vector<1x128xf32> to vector<64x128xf32>
      %101 = arith.mulf %99, %100 : vector<64x128xf32>
      %102 = vector.broadcast %3 : vector<1x128xf32> to vector<64x128xf32>
      %103 = arith.addf %101, %102 : vector<64x128xf32>
      %cst_111 = arith.constant 0.000000e+00 : f32
      %104 = vector.broadcast %cst_111 : f32 to vector<64x128xf32>
      %105 = arith.maximumf %103, %104 : vector<64x128xf32>
      %106 = vector.shape_cast %105 : vector<64x128xf32> to vector<4x16x128xf32>
      %107 = arith.truncf %106 : vector<4x16x128xf32> to vector<4x16x128xbf16>
      %c1_i32_112 = arith.constant 1 : i32
      %108 = arith.addi %91, %c1_i32_112 : i32
      %109 = arith.index_cast %108 : i32 to index
      %c0_113 = arith.constant 0 : index
      %c128 = arith.constant 128 : index
      %110 = vector.load %arg5[%109, %c0_113, %c128] : memref<18x16x384xbf16, #tpu.memory_space<vmem>>, vector<4x16x128xbf16>
      tpu.vector_store %arg5[%109, %c0_113, %c128], %107 {strides = array<i32>} : memref<18x16x384xbf16, #tpu.memory_space<vmem>>, vector<4x16x128xbf16>,
      %111 = vector.extract_strided_slice %107 {offsets = [0, 1, 0], sizes = [4, 1, 128], strides = [1, 1, 1]} : vector<4x16x128xbf16> to vector<4x1x128xbf16>
      %112 = arith.index_cast %108 : i32 to index
      %c0_114 = arith.constant 0 : index
      %c0_115 = arith.constant 0 : index
      %113 = vector.load %arg5[%112, %c0_114, %c0_115] : memref<18x16x384xbf16, #tpu.memory_space<vmem>>, vector<4x1x128xbf16>
      tpu.vector_store %arg5[%112, %c0_114, %c0_115], %111 {strides = array<i32>} : memref<18x16x384xbf16, #tpu.memory_space<vmem>>, vector<4x1x128xbf16>,
      %114 = vector.extract_strided_slice %107 {offsets = [0, 0, 0], sizes = [4, 15, 128], strides = [1, 1, 1]} : vector<4x16x128xbf16> to vector<4x15x128xbf16>
      %115 = arith.index_cast %108 : i32 to index
      %c1_116 = arith.constant 1 : index
      %c0_117 = arith.constant 0 : index
      %116 = vector.load %arg5[%115, %c1_116, %c0_117] : memref<18x16x384xbf16, #tpu.memory_space<vmem>>, vector<4x15x128xbf16>
      tpu.vector_store %arg5[%115, %c1_116, %c0_117], %114 {strides = array<i32>} : memref<18x16x384xbf16, #tpu.memory_space<vmem>>, vector<4x15x128xbf16>,
      %117 = vector.extract_strided_slice %107 {offsets = [0, 1, 0], sizes = [4, 15, 128], strides = [1, 1, 1]} : vector<4x16x128xbf16> to vector<4x15x128xbf16>
      %118 = arith.index_cast %108 : i32 to index
      %c0_118 = arith.constant 0 : index
      %c256 = arith.constant 256 : index
      %119 = vector.load %arg5[%118, %c0_118, %c256] : memref<18x16x384xbf16, #tpu.memory_space<vmem>>, vector<4x15x128xbf16>
      tpu.vector_store %arg5[%118, %c0_118, %c256], %117 {strides = array<i32>} : memref<18x16x384xbf16, #tpu.memory_space<vmem>>, vector<4x15x128xbf16>,
      %120 = vector.extract_strided_slice %107 {offsets = [0, 14, 0], sizes = [4, 1, 128], strides = [1, 1, 1]} : vector<4x16x128xbf16> to vector<4x1x128xbf16>
      %121 = arith.index_cast %108 : i32 to index
      %c15_119 = arith.constant 15 : index
      %c256_120 = arith.constant 256 : index
      %122 = vector.load %arg5[%121, %c15_119, %c256_120] : memref<18x16x384xbf16, #tpu.memory_space<vmem>>, vector<4x1x128xbf16>
      tpu.vector_store %arg5[%121, %c15_119, %c256_120], %120 {strides = array<i32>} : memref<18x16x384xbf16, #tpu.memory_space<vmem>>, vector<4x1x128xbf16>,
    }
    %c4_i32_53 = arith.constant 4 : i32
    %c2_54 = arith.constant 2 : index
    %c0_55 = arith.constant 0 : index
    %c0_56 = arith.constant 0 : index
    %48 = vector.load %arg5[%c2_54, %c0_55, %c0_56] : memref<18x16x384xbf16, #tpu.memory_space<vmem>>, vector<1x16x384xbf16>
    %c0_57 = arith.constant 0 : index
    %c0_58 = arith.constant 0 : index
    %c0_59 = arith.constant 0 : index
    %49 = vector.load %arg5[%c0_57, %c0_58, %c0_59] : memref<18x16x384xbf16, #tpu.memory_space<vmem>>, vector<1x16x384xbf16>
    tpu.vector_store %arg5[%c0_57, %c0_58, %c0_59], %48 {strides = array<i32>} : memref<18x16x384xbf16, #tpu.memory_space<vmem>>, vector<1x16x384xbf16>,
    %c15_60 = arith.constant 15 : index
    %c0_61 = arith.constant 0 : index
    %c0_62 = arith.constant 0 : index
    %50 = vector.load %arg5[%c15_60, %c0_61, %c0_62] : memref<18x16x384xbf16, #tpu.memory_space<vmem>>, vector<1x16x384xbf16>
    %c17_63 = arith.constant 17 : index
    %c0_64 = arith.constant 0 : index
    %c0_65 = arith.constant 0 : index
    %51 = vector.load %arg5[%c17_63, %c0_64, %c0_65] : memref<18x16x384xbf16, #tpu.memory_space<vmem>>, vector<1x16x384xbf16>
    tpu.vector_store %arg5[%c17_63, %c0_64, %c0_65], %50 {strides = array<i32>} : memref<18x16x384xbf16, #tpu.memory_space<vmem>>, vector<1x16x384xbf16>,
    %c0_66 = arith.constant 0 : index
    %c0_67 = arith.constant 0 : index
    %c0_68 = arith.constant 0 : index
    %52 = vector.load %arg5[%c0_66, %c0_67, %c0_68] : memref<18x16x384xbf16, #tpu.memory_space<vmem>>, vector<16x16x384xbf16>
    %53 = vector.shape_cast %52 : vector<16x16x384xbf16> to vector<256x384xbf16>
    %c3 = arith.constant 3 : index
    %c0_69 = arith.constant 0 : index
    %c0_70 = arith.constant 0 : index
    %54 = vector.load %arg3[%c3, %c0_69, %c0_70] : memref<6x384x128xbf16, #tpu.memory_space<vmem>>, vector<1x384x128xbf16>
    %55 = vector.shape_cast %54 : vector<1x384x128xbf16> to vector<384x128xbf16>
    %cst_71 = arith.constant dense<0.000000e+00> : vector<256x128xf32>
    %56 = tpu.matmul %53, %55, %cst_71 {dimension_numbers = #tpu.dot_dimension_numbers<[1], [0], [0], [1], [0, 0, 1, 1], [], []>} : vector<256x384xbf16>, vector<384x128xbf16>, vector<256x128xf32> -> vector<256x128xf32>
    %c0_72 = arith.constant 0 : index
    %c0_73 = arith.constant 0 : index
    %57 = vector.load %arg6[%c0_72, %c0_73] : memref<256x128xf32, #tpu.memory_space<vmem>>, vector<256x128xf32>
    tpu.vector_store %arg6[%c0_72, %c0_73], %56 {strides = array<i32>} : memref<256x128xf32, #tpu.memory_space<vmem>>, vector<256x128xf32>,
    %c1_74 = arith.constant 1 : index
    %c0_75 = arith.constant 0 : index
    %c0_76 = arith.constant 0 : index
    %58 = vector.load %arg5[%c1_74, %c0_75, %c0_76] : memref<18x16x384xbf16, #tpu.memory_space<vmem>>, vector<16x16x384xbf16>
    %59 = vector.shape_cast %58 : vector<16x16x384xbf16> to vector<256x384xbf16>
    %c4 = arith.constant 4 : index
    %c0_77 = arith.constant 0 : index
    %c0_78 = arith.constant 0 : index
    %60 = vector.load %arg3[%c4, %c0_77, %c0_78] : memref<6x384x128xbf16, #tpu.memory_space<vmem>>, vector<1x384x128xbf16>
    %61 = vector.shape_cast %60 : vector<1x384x128xbf16> to vector<384x128xbf16>
    %cst_79 = arith.constant dense<0.000000e+00> : vector<256x128xf32>
    %62 = tpu.matmul %59, %61, %cst_79 {dimension_numbers = #tpu.dot_dimension_numbers<[1], [0], [0], [1], [0, 0, 1, 1], [], []>} : vector<256x384xbf16>, vector<384x128xbf16>, vector<256x128xf32> -> vector<256x128xf32>
    %c0_80 = arith.constant 0 : index
    %c0_81 = arith.constant 0 : index
    %63 = vector.load %arg6[%c0_80, %c0_81] : memref<256x128xf32, #tpu.memory_space<vmem>>, vector<256x128xf32>
    %64 = arith.addf %63, %62 : vector<256x128xf32>
    %c0_82 = arith.constant 0 : index
    %c0_83 = arith.constant 0 : index
    %65 = vector.load %arg6[%c0_82, %c0_83] : memref<256x128xf32, #tpu.memory_space<vmem>>, vector<256x128xf32>
    tpu.vector_store %arg6[%c0_82, %c0_83], %64 {strides = array<i32>} : memref<256x128xf32, #tpu.memory_space<vmem>>, vector<256x128xf32>,
    %c2_84 = arith.constant 2 : index
    %c0_85 = arith.constant 0 : index
    %c0_86 = arith.constant 0 : index
    %66 = vector.load %arg5[%c2_84, %c0_85, %c0_86] : memref<18x16x384xbf16, #tpu.memory_space<vmem>>, vector<16x16x384xbf16>
    %67 = vector.shape_cast %66 : vector<16x16x384xbf16> to vector<256x384xbf16>
    %c5 = arith.constant 5 : index
    %c0_87 = arith.constant 0 : index
    %c0_88 = arith.constant 0 : index
    %68 = vector.load %arg3[%c5, %c0_87, %c0_88] : memref<6x384x128xbf16, #tpu.memory_space<vmem>>, vector<1x384x128xbf16>
    %69 = vector.shape_cast %68 : vector<1x384x128xbf16> to vector<384x128xbf16>
    %cst_89 = arith.constant dense<0.000000e+00> : vector<256x128xf32>
    %70 = tpu.matmul %67, %69, %cst_89 {dimension_numbers = #tpu.dot_dimension_numbers<[1], [0], [0], [1], [0, 0, 1, 1], [], []>} : vector<256x384xbf16>, vector<384x128xbf16>, vector<256x128xf32> -> vector<256x128xf32>
    %c0_90 = arith.constant 0 : index
    %c0_91 = arith.constant 0 : index
    %71 = vector.load %arg6[%c0_90, %c0_91] : memref<256x128xf32, #tpu.memory_space<vmem>>, vector<256x128xf32>
    %72 = arith.addf %71, %70 : vector<256x128xf32>
    %c0_92 = arith.constant 0 : index
    %c0_93 = arith.constant 0 : index
    %73 = vector.load %arg6[%c0_92, %c0_93] : memref<256x128xf32, #tpu.memory_space<vmem>>, vector<256x128xf32>
    tpu.vector_store %arg6[%c0_92, %c0_93], %72 {strides = array<i32>} : memref<256x128xf32, #tpu.memory_space<vmem>>, vector<256x128xf32>,
    %cst_94 = arith.constant 0.000000e+00 : f32
    %74 = vector.broadcast %cst_94 : f32 to vector<1x128xf32>
    %c0_i32_95 = arith.constant 0 : i32
    %c4_i32_96 = arith.constant 4 : i32
    %75 = arith.addi %c0_i32_95, %c4_i32_96 : i32
    %c1_i32_97 = arith.constant 1 : i32
    %76:2 = scf.for %arg7 = %c0_i32_95 to %75 step %c1_i32_97 iter_args(%arg8 = %74, %arg9 = %74) -> (vector<1x128xf32>, vector<1x128xf32>)  : i32 {
      %c64_i32 = arith.constant 64 : i32
      %89 = arith.muli %arg7, %c64_i32 : i32
      %90 = tpu.assume_multiple %89, 8 : i32
      %91 = arith.index_cast %90 : i32 to index
      %c0_107 = arith.constant 0 : index
      %92 = vector.load %arg6[%91, %c0_107] : memref<256x128xf32, #tpu.memory_space<vmem>>, vector<64x128xf32>
      %cst_108 = arith.constant dense<0.000000e+00> : vector<128xf32>
      %93 = vector.multi_reduction <add>, %92, %cst_108 [0] : vector<64x128xf32> to vector<128xf32>
      %94 = vector.shape_cast %93 : vector<128xf32> to vector<1x128xf32>
      %95 = arith.addf %arg8, %94 : vector<1x128xf32>
      %96 = arith.mulf %92, %92 : vector<64x128xf32>
      %cst_109 = arith.constant dense<0.000000e+00> : vector<128xf32>
      %97 = vector.multi_reduction <add>, %96, %cst_109 [0] : vector<64x128xf32> to vector<128xf32>
      %98 = vector.shape_cast %97 : vector<128xf32> to vector<1x128xf32>
      %99 = arith.addf %arg9, %98 : vector<1x128xf32>
      scf.yield %95, %99 : vector<1x128xf32>, vector<1x128xf32>
    }
    %c4_i32_98 = arith.constant 4 : i32
    %cst_99 = arith.constant 3.906250e-03 : f32
    %77 = vector.broadcast %cst_99 : f32 to vector<1x128xf32>
    %78 = arith.mulf %76#0, %77 : vector<1x128xf32>
    %cst_100 = arith.constant 3.906250e-03 : f32
    %79 = vector.broadcast %cst_100 : f32 to vector<1x128xf32>
    %80 = arith.mulf %76#1, %79 : vector<1x128xf32>
    %81 = arith.mulf %78, %78 : vector<1x128xf32>
    %82 = arith.subf %80, %81 : vector<1x128xf32>
    %cst_101 = arith.constant 0.000000e+00 : f32
    %83 = vector.broadcast %cst_101 : f32 to vector<1x128xf32>
    %84 = arith.maximumf %82, %83 : vector<1x128xf32>
    %cst_102 = arith.constant 9.99999974E-6 : f32
    %85 = vector.broadcast %cst_102 : f32 to vector<1x128xf32>
    %86 = arith.addf %84, %85 : vector<1x128xf32>
    %87 = math.rsqrt %86 : vector<1x128xf32>
    %c0_i32_103 = arith.constant 0 : i32
    %c4_i32_104 = arith.constant 4 : i32
    %88 = arith.addi %c0_i32_103, %c4_i32_104 : i32
    %c1_i32_105 = arith.constant 1 : i32
    scf.for %arg7 = %c0_i32_103 to %88 step %c1_i32_105  : i32 {
      %c1_i32_107 = arith.constant 1 : i32
      %89 = arith.muli %arg7, %c1_i32_107 : i32
      %c0_i32_108 = arith.constant 0 : i32
      %90 = arith.addi %c0_i32_108, %89 : i32
      %c4_i32_109 = arith.constant 4 : i32
      %91 = arith.muli %90, %c4_i32_109 : i32
      %c64_i32 = arith.constant 64 : i32
      %92 = arith.muli %90, %c64_i32 : i32
      %93 = tpu.assume_multiple %92, 8 : i32
      %94 = arith.index_cast %93 : i32 to index
      %c0_110 = arith.constant 0 : index
      %95 = vector.load %arg6[%94, %c0_110] : memref<256x128xf32, #tpu.memory_space<vmem>>, vector<64x128xf32>
      %96 = vector.broadcast %78 : vector<1x128xf32> to vector<64x128xf32>
      %97 = arith.subf %95, %96 : vector<64x128xf32>
      %98 = vector.broadcast %87 : vector<1x128xf32> to vector<64x128xf32>
      %99 = arith.mulf %97, %98 : vector<64x128xf32>
      %100 = vector.broadcast %4 : vector<1x128xf32> to vector<64x128xf32>
      %101 = arith.mulf %99, %100 : vector<64x128xf32>
      %102 = vector.broadcast %5 : vector<1x128xf32> to vector<64x128xf32>
      %103 = arith.addf %101, %102 : vector<64x128xf32>
      %c0_111 = arith.constant 0 : index
      %104 = arith.index_cast %91 : i32 to index
      %c0_112 = arith.constant 0 : index
      %c0_113 = arith.constant 0 : index
      %105 = vector.load %arg1[%c0_111, %104, %c0_112, %c0_113] : memref<1x16x16x128xf32, #tpu.memory_space<vmem>>, vector<1x4x16x128xf32>
      %106 = vector.shape_cast %105 : vector<1x4x16x128xf32> to vector<4x16x128xf32>
      %107 = vector.shape_cast %106 : vector<4x16x128xf32> to vector<64x128xf32>
      %108 = arith.addf %107, %103 : vector<64x128xf32>
      %109 = vector.shape_cast %108 : vector<64x128xf32> to vector<4x16x128xf32>
      %c0_114 = arith.constant 0 : index
      %110 = arith.index_cast %91 : i32 to index
      %c0_115 = arith.constant 0 : index
      %c0_116 = arith.constant 0 : index
      %111 = vector.load %arg4[%c0_114, %110, %c0_115, %c0_116] : memref<1x16x16x128xf32, #tpu.memory_space<vmem>>, vector<1x4x16x128xf32>
      %112 = vector.shape_cast %111 : vector<1x4x16x128xf32> to vector<4x16x128xf32>
      %113 = vector.shape_cast %109 : vector<4x16x128xf32> to vector<1x4x16x128xf32>
      tpu.vector_store %arg4[%c0_114, %110, %c0_115, %c0_116], %113 {strides = array<i32>} : memref<1x16x16x128xf32, #tpu.memory_space<vmem>>, vector<1x4x16x128xf32>,
    }
    %c4_i32_106 = arith.constant 4 : i32
    return
  }
  func.func @transform_0(%arg0: i32) -> (i32, i32, i32, i32) {
    %c0_i32 = arith.constant 0 : i32
    %c0_i32_0 = arith.constant 0 : i32
    %c0_i32_1 = arith.constant 0 : i32
    %c0_i32_2 = arith.constant 0 : i32
    return %arg0, %c0_i32, %c0_i32_0, %c0_i32_1 : i32, i32, i32, i32
  }
  func.func @transform_1(%arg0: i32) -> (i32, i32, i32) {
    %c0_i32 = arith.constant 0 : i32
    %c0_i32_0 = arith.constant 0 : i32
    %c0_i32_1 = arith.constant 0 : i32
    return %arg0, %c0_i32, %c0_i32_0 : i32, i32, i32
  }
  func.func @transform_2(%arg0: i32) -> (i32, i32, i32) {
    %c0_i32 = arith.constant 0 : i32
    %c0_i32_0 = arith.constant 0 : i32
    %c0_i32_1 = arith.constant 0 : i32
    %c0_i32_2 = arith.constant 0 : i32
    return %c0_i32, %c0_i32_0, %c0_i32_1 : i32, i32, i32
  }
  func.func @transform_3(%arg0: i32) -> (i32, i32, i32, i32) {
    %c0_i32 = arith.constant 0 : i32
    %c0_i32_0 = arith.constant 0 : i32
    %c0_i32_1 = arith.constant 0 : i32
    %c0_i32_2 = arith.constant 0 : i32
    return %arg0, %c0_i32, %c0_i32_0, %c0_i32_1 : i32, i32, i32, i32
  }
}

</mosaic_0001>

<llo_original>
// kernel: tpu_custom_call.1
$region0: #{tpu_custom_call.1}
  #allocation0 [shape = 'u32[]', space=smem, size = 0x4, offset = 0x4, fixed_abs, tag = 'smem constant byte address 0x4 - core index']
  #allocation1 [shape = 'u32[144,128]{1,0:T(1,128)}', space=vmem, size = 0x12000, scoped, tag = 'internal scratch']
  #allocation2 [shape = 'bf16[18,16,384]{2,1,0:T(8,128)(2,1)}', space=vmem, size = 0x36000, scoped, tag = 'scratch operand']
  #allocation3 [shape = 'f32[256,128]{1,0:T(8,128)}', space=vmem, size = 0x20000, scoped, tag = 'scratch operand']
  %s0 = inlined_call_operand.hbm [shape: f32[2,16,16,128], index: 0, kind: input, shape index: {}]
  %s1 = inlined_call_operand.hbm [shape: f32[2,4,128], index: 1, kind: input, shape index: {}]
  %s2 = inlined_call_operand.hbm [shape: bf16[6,384,128], index: 2, kind: input, shape index: {}]
  %s3 = inlined_call_operand.hbm [shape: f32[2,16,16,128], index: 3, kind: output, shape index: {}]
  %s4 = sld [smem:[#allocation0]]
  $region92: #{tpu_custom_call.1} parent=0
    _
  %s6 = ssub.s32 1, %s4
  %s7 = scalar_select 0, %s6, %s4
  $region1: #{tpu_custom_call.1} parent=0
    #allocation4 [shape = 'u8[262144]{0}', space=vmem, size = 0x40000, scoped, tag = 'input window, operand 0']
    #allocation5 [shape = 's32[2]{0}', space=sflag, size = 0x8, scoped, tag = 'scoped memory for tpu_custom_call.1']
    #allocation6 [shape = 's32[2]{0}', space=sflag, size = 0x8, scoped, tag = 'scoped memory for tpu_custom_call.1']
    #allocation7 [shape = 'u8[4096]{0}', space=vmem, size = 0x1000, scoped, tag = 'input window, operand 1']
    #allocation8 [shape = 's32[2]{0}', space=sflag, size = 0x8, scoped, tag = 'scoped memory for tpu_custom_call.1']
    #allocation9 [shape = 'u8[589824]{0}', space=vmem, size = 0x90000, scoped, tag = 'input window, operand 2, single buffered']
    #allocation10 [shape = 'u8[262144]{0}', space=vmem, size = 0x40000, scoped, tag = 'output window, operand 0']
    %8 = vsyncpa [#allocation5], 0
    %s9 = scalar_lea.sflag [#allocation5], 1
    %10 = vsyncpa %s9, 0
    %11 = vsyncpa [#allocation8], 0
    %s12 = scalar_lea.sflag [#allocation8], 1
    %13 = vsyncpa %s12, 0
    %14 = vsyncpa [#allocation6], 0
    %s15 = scalar_lea.sflag [#allocation6], 1
    %16 = vsyncpa %s15, 0
    loop: start=0, step=1, limit=4
    $region2: #{tpu_custom_call.1} parent=1 // loop_pre_header
      _
    $region3: #{tpu_custom_call.1} parent=1 // loop_header
      %s18 = sphi 0, %s22
      %p19 = scmp.ge.s32.totalorder %s18, 4
      %s28 = sphi 0, %s30
      %s31 = sphi 0, %s28
      %s32 = sphi 0, %s31
      %s48 = sphi 0, %s32
      %s54 = sphi 0, %s56
      %s57 = sphi 0, %s54
      %s58 = sphi 0, %s57
      %s74 = sphi 0, %s58
      %s78 = sphi 0, %s78
      %s80 = sphi 0, %s78
      %s81 = sphi 0, %s80
      %s95 = sphi 0, %s81
      %s101 = sphi 0, %s103
      %s104 = sphi 0, %s101
      %s105 = sphi 0, %s104
      %s121 = sphi 0, %s105
    $region4: #{tpu_custom_call.1} parent=1 // loop_header_branch
      %21 = sbr.rel (%p19) target = $region8
    $region5: #{tpu_custom_call.1} parent=1 // loop_body
      %s23 = ssub.s32 %s18, 1
      %s24 = ssub.s32 %s18, 2
      %s25 = sadd.s32 %s18, 1
      %s26 = ssub.s32 %s18, %s25
      %p27 = scmp.eq.s32.totalorder %s26, 0
      %s29 = sadd.s32 %s28, 1
      %s30 = scalar_select %p27, %s28, %s29
      %p33 = pneg %p27
      %p34 = scmp.eq.s32.totalorder %s18, 1
      %p35 = por %p33, %p34
      %p36 = scmp.ne.s32.totalorder %s28, %s31
      %p37 = scmp.eq.s32.totalorder %s18, 0
      %p38 = por %p36, %p37
      %p39 = scmp.ne.s32.totalorder %s28, %s31
      %p40 = scmp.eq.s32.totalorder %s23, 1
      %p41 = por %p39, %p40
      %p42 = scmp.ne.s32.totalorder %s31, %s32
      %p43 = scmp.eq.s32.totalorder %s23, 0
      %p44 = por %p42, %p43
      %p45 = scmp.ne.s32.totalorder %s31, %s32
      %p46 = scmp.eq.s32.totalorder %s24, 1
      %p47 = por %p45, %p46
      %p49 = scmp.ne.s32.totalorder %s32, %s48
      %p50 = scmp.eq.s32.totalorder %s24, 0
      %p51 = por %p49, %p50
      %s52 = ssub.s32 %s18, %s25
      %p53 = scmp.eq.s32.totalorder %s52, 0
      %s55 = sadd.s32 %s54, 1
      %s56 = scalar_select %p53, %s54, %s55
      %p59 = pneg %p53
      %p60 = scmp.eq.s32.totalorder %s18, 1
      %p61 = por %p59, %p60
      %p62 = scmp.ne.s32.totalorder %s54, %s57
      %p63 = scmp.eq.s32.totalorder %s18, 0
      %p64 = por %p62, %p63
      %p65 = scmp.ne.s32.totalorder %s54, %s57
      %p66 = scmp.eq.s32.totalorder %s23, 1
      %p67 = por %p65, %p66
      %p68 = scmp.ne.s32.totalorder %s57, %s58
      %p69 = scmp.eq.s32.totalorder %s23, 0
      %p70 = por %p68, %p69
      %p71 = scmp.ne.s32.totalorder %s57, %s58
      %p72 = scmp.eq.s32.totalorder %s24, 1
      %p73 = por %p71, %p72
      %p75 = scmp.ne.s32.totalorder %s58, %s74
      %p76 = scmp.eq.s32.totalorder %s24, 0
      %p77 = por %p75, %p76
      %s79 = sadd.s32 %s78, 1
      %p82 = scmp.eq.s32.totalorder %s18, 1
      %p83 = scmp.ne.s32.totalorder %s78, %s80
      %p84 = scmp.eq.s32.totalorder %s18, 0
      %p85 = por %p83, %p84
      %p86 = scmp.ne.s32.totalorder %s78, %s80
      %p87 = scmp.eq.s32.totalorder %s23, 1
      %p88 = por %p86, %p87
      %p89 = scmp.ne.s32.totalorder %s80, %s81
      %p90 = scmp.eq.s32.totalorder %s23, 0
      %p91 = por %p89, %p90
      %p92 = scmp.ne.s32.totalorder %s80, %s81
      %p93 = scmp.eq.s32.totalorder %s24, 1
      %p94 = por %p92, %p93
      %p96 = scmp.ne.s32.totalorder %s81, %s95
      %p97 = scmp.eq.s32.totalorder %s24, 0
      %p98 = por %p96, %p97
      %s99 = ssub.s32 %s18, %s25
      %p100 = scmp.eq.s32.totalorder %s99, 0
      %s102 = sadd.s32 %s101, 1
      %s103 = scalar_select %p100, %s101, %s102
      %p106 = pneg %p100
      %p107 = scmp.eq.s32.totalorder %s18, 1
      %p108 = por %p106, %p107
      %p109 = scmp.ne.s32.totalorder %s101, %s104
      %p110 = scmp.eq.s32.totalorder %s18, 0
      %p111 = por %p109, %p110
      %p112 = scmp.ne.s32.totalorder %s101, %s104
      %p113 = scmp.eq.s32.totalorder %s23, 1
      %p114 = por %p112, %p113
      %p115 = scmp.ne.s32.totalorder %s104, %s105
      %p116 = scmp.eq.s32.totalorder %s23, 0
      %p117 = por %p115, %p116
      %p118 = scmp.ne.s32.totalorder %s104, %s105
      %p119 = scmp.eq.s32.totalorder %s24, 1
      %p120 = por %p118, %p119
      %p122 = scmp.ne.s32.totalorder %s105, %s121
      %p123 = scmp.eq.s32.totalorder %s24, 0
      %p124 = por %p122, %p123
      %p125 = scmp.le.s32.totalorder 1, %s18
      %p126 = scmp.lt.s32.totalorder %s18, 3
      %p127 = pnand %p125, %p126
      %p128 = pneg %p127
      // Predicated region
      $region9: #{tpu_custom_call.1} parent=5 // pred_check
        _
      $region10: #{tpu_custom_call.1} parent=5 // pred_check_branch
        %130 = sbr.rel (%p127) target = $region12
      $region11: #{tpu_custom_call.1} parent=5 // pred_region
        %s131 = ssub.s32 %s18, 1
        // Predicated region
        $region13: #{tpu_custom_call.1} parent=11 // pred_check
          %p132 = pneg %p91
        $region14: #{tpu_custom_call.1} parent=11 // pred_check_branch
          %134 = sbr.rel (%p132) target = $region16
        $region15: #{tpu_custom_call.1} parent=11 // pred_region
          %s136 = ssub.s32 18432, 18432
          %137 = vsyncadd [#allocation8], %s136
          %s138 = sshll.u32 [#allocation9], 4
          %s139 = int_to_ptr.vmem [resolvable:$true] %s138
          %144 = dma.hbm_to_vmem [thread:$0]  %s2, 18432, %s139, [#allocation8], 64, 64, 4
        $region16: #{tpu_custom_call.1} parent=11 // pred_fallthru
          _
      $region12: #{tpu_custom_call.1} parent=5 // pred_fallthru
        _
      %p145 = scmp.lt.s32.totalorder %s18, 2
      // Predicated region
      $region17: #{tpu_custom_call.1} parent=5 // pred_check
        %p146 = pneg %p145
      $region18: #{tpu_custom_call.1} parent=5 // pred_check_branch
        %148 = sbr.rel (%p146) target = $region20
      $region19: #{tpu_custom_call.1} parent=5 // pred_region
        // Predicated region
        $region21: #{tpu_custom_call.1} parent=19 // pred_check
          %p149 = pneg %p38
        $region22: #{tpu_custom_call.1} parent=19 // pred_check_branch
          %151 = sbr.rel (%p149) target = $region24
        $region23: #{tpu_custom_call.1} parent=19 // pred_region
          %s152 = sand.u32 %s28, 1
          %s153 = scalar_lea.sflag [#allocation5], %s152
          %s154 = sand.u32 %s28, 1
          %s155 = smul.addr %s154, 256
          %s156 = scalar_lea.vmem [#allocation4], %s155
          %s158 = ssub.s32 4096, 4096
          %159 = vsyncadd %s153, %s158
          %s160 = smul.addr %s18, 32
          %s161 = smul.addr %s160, 128
          %s162 = scalar_lea.hbm %s0, %s161
          %s163 = sshll.u32 %s156, 4
          %s164 = int_to_ptr.vmem [resolvable:$true] %s163
          %169 = dma.hbm_to_vmem [thread:$0]  %s162, 4096, %s164, %s153, 128, 128, 8
        $region24: #{tpu_custom_call.1} parent=19 // pred_fallthru
          _
        // Predicated region
        $region25: #{tpu_custom_call.1} parent=19 // pred_check
          %p170 = pneg %p64
        $region26: #{tpu_custom_call.1} parent=19 // pred_check_branch
          %172 = sbr.rel (%p170) target = $region28
        $region27: #{tpu_custom_call.1} parent=19 // pred_region
          %s173 = sand.u32 %s18, 1
          %s174 = scalar_lea.sflag [#allocation8], %s173
          %s175 = sand.u32 %s54, 1
          %s176 = smul.addr %s175, 4
          %s177 = scalar_lea.vmem [#allocation7], %s176
          %s179 = ssub.s32 64, 64
          %180 = vsyncadd %s174, %s179
          %s181 = smul.addr %s18, 64
          %s182 = scalar_lea.hbm %s1, %s181
          %s184 = sshll.u32 %s177, 4
          %s185 = int_to_ptr.vmem [resolvable:$true] %s184
          %187 = dma.hbm_to_vmem [thread:$0]  %s182, 64, %s185, %s174
        $region28: #{tpu_custom_call.1} parent=19 // pred_fallthru
          _
      $region20: #{tpu_custom_call.1} parent=5 // pred_fallthru
        _
      %p188 = scmp.le.s32.totalorder 1, %s18
      %p189 = scmp.lt.s32.totalorder %s18, 3
      %p190 = pnand %p188, %p189
      %p191 = pneg %p190
      // Predicated region
      $region29: #{tpu_custom_call.1} parent=5 // pred_check
        _
      $region30: #{tpu_custom_call.1} parent=5 // pred_check_branch
        %193 = sbr.rel (%p190) target = $region32
      $region31: #{tpu_custom_call.1} parent=5 // pred_region
        %s194 = ssub.s32 %s18, 1
        %s195 = sand.u32 %s31, 1
        %s196 = scalar_lea.sflag [#allocation5], %s195
        %s197 = sand.u32 %s31, 1
        %s198 = smul.addr %s197, 256
        %s199 = scalar_lea.vmem [#allocation4], %s198
        // Predicated region
        $region33: #{tpu_custom_call.1} parent=31 // pred_check
          %p200 = pneg %p44
        $region34: #{tpu_custom_call.1} parent=31 // pred_check_branch
          %202 = sbr.rel (%p200) target = $region36
        $region35: #{tpu_custom_call.1} parent=31 // pred_region
          %203 = dma.done %s196, 4096
        $region36: #{tpu_custom_call.1} parent=31 // pred_fallthru
          _
        %s204 = sand.u32 %s23, 1
        %s205 = scalar_lea.sflag [#allocation8], %s204
        %s206 = sand.u32 %s57, 1
        %s207 = smul.addr %s206, 4
        %s208 = scalar_lea.vmem [#allocation7], %s207
        // Predicated region
        $region37: #{tpu_custom_call.1} parent=31 // pred_check
          %p209 = pneg %p70
        $region38: #{tpu_custom_call.1} parent=31 // pred_check_branch
          %211 = sbr.rel (%p209) target = $region40
        $region39: #{tpu_custom_call.1} parent=31 // pred_region
          %212 = dma.done %s205, 64
        $region40: #{tpu_custom_call.1} parent=31 // pred_fallthru
          _
        // Predicated region
        $region41: #{tpu_custom_call.1} parent=31 // pred_check
          %p213 = pneg %p91
        $region42: #{tpu_custom_call.1} parent=31 // pred_check_branch
          %215 = sbr.rel (%p213) target = $region44
        $region43: #{tpu_custom_call.1} parent=31 // pred_region
          %216 = dma.done [#allocation8], 18432
        $region44: #{tpu_custom_call.1} parent=31 // pred_fallthru
          _
        %s217 = sand.u32 %s31, 1
        %s218 = scalar_lea.sflag [#allocation5], %s217
        %s219 = sand.u32 %s31, 1
        %s220 = smul.addr %s219, 256
        %s221 = scalar_lea.vmem [#allocation4], %s220
        %p222 = pneg %p44
        %p223 = pneg %p41
        %s224 = sand.u32 %s23, 1
        %s225 = scalar_lea.sflag [#allocation8], %s224
        %s226 = sand.u32 %s57, 1
        %s227 = smul.addr %s226, 4
        %s228 = scalar_lea.vmem [#allocation7], %s227
        %p229 = pneg %p70
        %p230 = pneg %p67
        %p231 = pneg %p91
        %p232 = pneg %p88
        %p233 = pneg %p117
        %p234 = pneg %p114
        %s235 = sand.u32 %s104, 1
        %s236 = scalar_lea.sflag [#allocation6], %s235
        %s237 = sand.u32 %s104, 1
        %s238 = smul.addr %s237, 256
        %s239 = scalar_lea.vmem [#allocation10], %s238
        %v241 = vld [vmem:[%s208] sm:$0xf]
        loop: start=0, step=1, limit=4
        $region45: #{tpu_custom_call.1} parent=31 // loop_pre_header
          _
        $region46: #{tpu_custom_call.1} parent=31 // loop_header
          %s243 = sphi 0, %s247
          %p244 = scmp.ge.s32.totalorder %s243, 4
        $region47: #{tpu_custom_call.1} parent=31 // loop_header_branch
          %246 = sbr.rel (%p244) target = $region51
        $region48: #{tpu_custom_call.1} parent=31 // loop_body
          %s248 = smul.u32 %s243, 4
          %s249 = smul.u32 %s248, 16
          %s250 = scalar_lea.vmem %s199, %s249 [#allocation4]
          %v251 = vld [vmem:[%s250] sm:$0xff]
          %v252 = vld [vmem:[%s250 + $0x8] sm:$0xff]
          %v253 = vld [vmem:[%s250 + $0x10] sm:$0xff]
          %v254 = vld [vmem:[%s250 + $0x18] sm:$0xff]
          %v255 = vld [vmem:[%s250 + $0x20] sm:$0xff]
          %v256 = vld [vmem:[%s250 + $0x28] sm:$0xff]
          %v257 = vld [vmem:[%s250 + $0x30] sm:$0xff]
          %v258 = vld [vmem:[%s250 + $0x38] sm:$0xff]
          %v259 = vpack.c.bf16 %v252, %v251
          %v260 = vpack.c.bf16 %v254, %v253
          %v261 = vpack.c.bf16 %v256, %v255
          %v262 = vpack.c.bf16 %v258, %v257
          %s263 = sadd.s32 %s248, 1
          %v268 = vunpack.c.l.b16 %v259
          %v269 = vunpack.c.h.b16 %v259
          %v270 = vunpack.c.l.b16 %v260
          %v271 = vunpack.c.h.b16 %v260
          %v272 = vunpack.c.l.b16 %v261
          %v273 = vunpack.c.h.b16 %v261
          %v274 = vunpack.c.l.b16 %v262
          %v275 = vunpack.c.h.b16 %v262
          %v276 = vpack.c.b16 %v268, %v268
          %v277 = vpack.c.b16 %v269, %v269
          %v278 = vpack.c.b16 %v270, %v270
          %v279 = vpack.c.b16 %v271, %v271
          %v280 = vpack.c.b16 %v272, %v272
          %v281 = vpack.c.b16 %v273, %v273
          %v282 = vpack.c.b16 %v274, %v274
          %v283 = vpack.c.b16 %v275, %v275
          %s292 = smul.u32 %s263, 6
          %s293 = smul.addr %s292, 4
          %s294 = scalar_lea.vmem [#allocation2], %s293
          %295 = vst [vmem:[%s294 + $0x4] sm:$0xf] %v276
          %296 = vst [vmem:[%s294 + $0x10] sm:$0xf] %v277
          %297 = vst [vmem:[%s294 + $0x1c] sm:$0xf] %v278
          %298 = vst [vmem:[%s294 + $0x28] sm:$0xf] %v279
          %299 = vst [vmem:[%s294 + $0x34] sm:$0xf] %v280
          %300 = vst [vmem:[%s294 + $0x40] sm:$0xf] %v281
          %301 = vst [vmem:[%s294 + $0x4c] sm:$0xf] %v282
          %302 = vst [vmem:[%s294 + $0x58] sm:$0xf] %v283
          %v304 = vshrl.u32 %v276, 16
          %v306 = vrot.slane %v304, 4
          %v307 = vrot.slane %v306, 4
          %v309 = vshrl.u32 %v278, 16
          %v311 = vrot.slane %v309, 4
          %v312 = vrot.slane %v311, 4
          %v314 = vshrl.u32 %v280, 16
          %v316 = vrot.slane %v314, 4
          %v317 = vrot.slane %v316, 4
          %v319 = vshrl.u32 %v282, 16
          %v321 = vrot.slane %v319, 4
          %v322 = vrot.slane %v321, 4
          %vm327 = vcmask 1040384
          %vm328 = vsmask.f32 256
          %vm329 = vmand %vm327, %vm328
          %v330 = vld [vmem:[%s294] sm:$0x1]
          %v331 = vsel %vm329, %v307, %v330
          %332 = vst [vmem:[%s294] sm:$0x1] %v331
          %v333 = vld [vmem:[%s294 + $0x18] sm:$0x1]
          %v334 = vsel %vm329, %v312, %v333
          %335 = vst [vmem:[%s294 + $0x18] sm:$0x1] %v334
          %v336 = vld [vmem:[%s294 + $0x30] sm:$0x1]
          %v337 = vsel %vm329, %v317, %v336
          %338 = vst [vmem:[%s294 + $0x30] sm:$0x1] %v337
          %v339 = vld [vmem:[%s294 + $0x48] sm:$0x1]
          %v340 = vsel %vm329, %v322, %v339
          %341 = vst [vmem:[%s294 + $0x48] sm:$0x1] %v340
          %vm342 = vsmask.f32 4368
          %vm343 = vmor %vm328, %vm342
          %v344 = vrot.slane %v304, 7
          %v345 = vshll.u32 %v276, 16
          %v347 = vor.u32 %v344, %v345
          %v348 = vrot.slane %v344, 4
          %v350 = vshrl.u32 %v277, 16
          %v352 = vrot.slane %v350, 7
          %v353 = vshll.u32 %v277, 16
          %v355 = vor.u32 %v352, %v353
          %v356 = vsel %vm343, %v348, %v355
          %v357 = vrot.slane %v309, 7
          %v358 = vshll.u32 %v278, 16
          %v360 = vor.u32 %v357, %v358
          %v361 = vrot.slane %v357, 4
          %v363 = vshrl.u32 %v279, 16
          %v365 = vrot.slane %v363, 7
          %v366 = vshll.u32 %v279, 16
          %v368 = vor.u32 %v365, %v366
          %v369 = vsel %vm343, %v361, %v368
          %v370 = vrot.slane %v314, 7
          %v371 = vshll.u32 %v280, 16
          %v373 = vor.u32 %v370, %v371
          %v374 = vrot.slane %v370, 4
          %v376 = vshrl.u32 %v281, 16
          %v378 = vrot.slane %v376, 7
          %v379 = vshll.u32 %v281, 16
          %v381 = vor.u32 %v378, %v379
          %v382 = vsel %vm343, %v374, %v381
          %v383 = vrot.slane %v319, 7
          %v384 = vshll.u32 %v282, 16
          %v386 = vor.u32 %v383, %v384
          %v387 = vrot.slane %v383, 4
          %v389 = vshrl.u32 %v283, 16
          %v391 = vrot.slane %v389, 7
          %v392 = vshll.u32 %v283, 16
          %v394 = vor.u32 %v391, %v392
          %v395 = vsel %vm343, %v387, %v394
          %vm404 = vcmask 1043456
          %vm405 = vsmask.f32 7938
          %vm406 = vmand %vm404, %vm405
          %v407 = vld [vmem:[%s294] sm:$0xf]
          %v408 = vsel %vm406, %v347, %v407
          %409 = vst [vmem:[%s294] sm:$0xf] %v408
          %410 = vst [vmem:[%s294 + $0xc] sm:$0xf] %v356
          %v411 = vld [vmem:[%s294 + $0x18] sm:$0xf]
          %v412 = vsel %vm406, %v360, %v411
          %413 = vst [vmem:[%s294 + $0x18] sm:$0xf] %v412
          %414 = vst [vmem:[%s294 + $0x24] sm:$0xf] %v369
          %v415 = vld [vmem:[%s294 + $0x30] sm:$0xf]
          %v416 = vsel %vm406, %v373, %v415
          %417 = vst [vmem:[%s294 + $0x30] sm:$0xf] %v416
          %418 = vst [vmem:[%s294 + $0x3c] sm:$0xf] %v382
          %v419 = vld [vmem:[%s294 + $0x48] sm:$0xf]
          %v420 = vsel %vm406, %v386, %v419
          %421 = vst [vmem:[%s294 + $0x48] sm:$0xf] %v420
          %422 = vst [vmem:[%s294 + $0x54] sm:$0xf] %v395
          %vm423 = vsmask.f32 3328
          %vm424 = vsmask.f32 7440
          %vm425 = vmor %vm423, %vm424
          %v426 = vrot.slane %v345, 5
          %v427 = vor.u32 %v306, %v426
          %v428 = vrot.slane %v427, 4
          %v429 = vrot.slane %v353, 5
          %v430 = vsel %vm425, %v428, %v429
          %v431 = vrot.slane %v350, 4
          %v432 = vor.u32 %v431, %v429
          %v433 = vrot.slane %v432, 4
          %v434 = vrot.slane %v358, 5
          %v435 = vor.u32 %v311, %v434
          %v436 = vrot.slane %v435, 4
          %v437 = vrot.slane %v366, 5
          %v438 = vsel %vm425, %v436, %v437
          %v439 = vrot.slane %v363, 4
          %v440 = vor.u32 %v439, %v437
          %v441 = vrot.slane %v440, 4
          %v442 = vrot.slane %v371, 5
          %v443 = vor.u32 %v316, %v442
          %v444 = vrot.slane %v443, 4
          %v445 = vrot.slane %v379, 5
          %v446 = vsel %vm425, %v444, %v445
          %v447 = vrot.slane %v376, 4
          %v448 = vor.u32 %v447, %v445
          %v449 = vrot.slane %v448, 4
          %v450 = vrot.slane %v384, 5
          %v451 = vor.u32 %v321, %v450
          %v452 = vrot.slane %v451, 4
          %v453 = vrot.slane %v392, 5
          %v454 = vsel %vm425, %v452, %v453
          %v455 = vrot.slane %v389, 4
          %v456 = vor.u32 %v455, %v453
          %v457 = vrot.slane %v456, 4
          %466 = vst [vmem:[%s294 + $0x8] sm:$0xf] %v430
          %vm467 = vmand %vm404, %vm423
          %v468 = vld [vmem:[%s294 + $0x14] sm:$0xf]
          %v469 = vsel %vm467, %v433, %v468
          %470 = vst [vmem:[%s294 + $0x14] sm:$0xf] %v469
          %471 = vst [vmem:[%s294 + $0x20] sm:$0xf] %v438
          %v472 = vld [vmem:[%s294 + $0x2c] sm:$0xf]
          %v473 = vsel %vm467, %v441, %v472
          %474 = vst [vmem:[%s294 + $0x2c] sm:$0xf] %v473
          %475 = vst [vmem:[%s294 + $0x38] sm:$0xf] %v446
          %v476 = vld [vmem:[%s294 + $0x44] sm:$0xf]
          %v477 = vsel %vm467, %v449, %v476
          %478 = vst [vmem:[%s294 + $0x44] sm:$0xf] %v477
          %479 = vst [vmem:[%s294 + $0x50] sm:$0xf] %v454
          %v480 = vld [vmem:[%s294 + $0x5c] sm:$0xf]
          %v481 = vsel %vm467, %v457, %v480
          %482 = vst [vmem:[%s294 + $0x5c] sm:$0xf] %v481
          %vm487 = vcmask 1043459
          %vm488 = vsmask.f32 7950
          %vm489 = vmand %vm487, %vm488
          %v490 = vld [vmem:[%s294 + $0x14] sm:$0x8]
          %v491 = vsel %vm489, %v353, %v490
          %492 = vst [vmem:[%s294 + $0x14] sm:$0x8] %v491
          %v493 = vld [vmem:[%s294 + $0x2c] sm:$0x8]
          %v494 = vsel %vm489, %v366, %v493
          %495 = vst [vmem:[%s294 + $0x2c] sm:$0x8] %v494
          %v496 = vld [vmem:[%s294 + $0x44] sm:$0x8]
          %v497 = vsel %vm489, %v379, %v496
          %498 = vst [vmem:[%s294 + $0x44] sm:$0x8] %v497
          %v499 = vld [vmem:[%s294 + $0x5c] sm:$0x8]
          %v500 = vsel %vm489, %v392, %v499
          %501 = vst [vmem:[%s294 + $0x5c] sm:$0x8] %v500
        $region49: #{tpu_custom_call.1} parent=31 // loop_footer
          %s247 = sadd.s32 1, %s243
        $region50: #{tpu_custom_call.1} parent=31 // loop_footer_branch
          %242 = sbr.rel target = $region46
        $region51: #{tpu_custom_call.1} parent=31 // loop_exit
          _
        %s502 = scalar_lea.vmem [#allocation2], 48
        %v503 = vld [vmem:[%s502] sm:$0xff]
        %v504 = vld [vmem:[%s502 + $0x8] sm:$0xf]
        %v505 = vld [vmem:[%s502 + $0xc] sm:$0xff]
        %v506 = vld [vmem:[%s502 + $0x14] sm:$0xf]
        %507 = vst [vmem:[#allocation2] sm:$0xff] %v503
        %508 = vst [vmem:[#allocation2 + $0x8] sm:$0xf] %v504
        %509 = vst [vmem:[#allocation2 + $0xc] sm:$0xff] %v505
        %510 = vst [vmem:[#allocation2 + $0x14] sm:$0xf] %v506
        %s511 = scalar_lea.vmem [#allocation2], 360
        %v512 = vld [vmem:[%s511] sm:$0xff]
        %v513 = vld [vmem:[%s511 + $0x8] sm:$0xf]
        %v514 = vld [vmem:[%s511 + $0xc] sm:$0xff]
        %v515 = vld [vmem:[%s511 + $0x14] sm:$0xf]
        %s516 = scalar_lea.vmem [#allocation2], 408
        %517 = vst [vmem:[%s516] sm:$0xff] %v512
        %518 = vst [vmem:[%s516 + $0x8] sm:$0xf] %v513
        %519 = vst [vmem:[%s516 + $0xc] sm:$0xff] %v514
        %520 = vst [vmem:[%s516 + $0x14] sm:$0xf] %v515
        %v521 = vld [vmem:[#allocation2] sm:$0xff]
        %v522 = vld [vmem:[#allocation2 + $0x8] sm:$0xf]
        %v523 = vld [vmem:[#allocation2 + $0xc] sm:$0xff]
        %v524 = vld [vmem:[#allocation2 + $0x14] sm:$0xf]
        %v525 = vld [vmem:[#allocation2 + $0x18] sm:$0xff]
        %v526 = vld [vmem:[#allocation2 + $0x20] sm:$0xf]
        %v527 = vld [vmem:[#allocation2 + $0x24] sm:$0xff]
        %v528 = vld [vmem:[#allocation2 + $0x2c] sm:$0xf]
        %v529 = vld [vmem:[#allocation2 + $0x30] sm:$0xff]
        %v530 = vld [vmem:[#allocation2 + $0x38] sm:$0xf]
        %v531 = vld [vmem:[#allocation2 + $0x3c] sm:$0xff]
        %v532 = vld [vmem:[#allocation2 + $0x44] sm:$0xf]
        %v533 = vld [vmem:[#allocation2 + $0x48] sm:$0xff]
        %v534 = vld [vmem:[#allocation2 + $0x50] sm:$0xf]
        %v535 = vld [vmem:[#allocation2 + $0x54] sm:$0xff]
        %v536 = vld [vmem:[#allocation2 + $0x5c] sm:$0xf]
        %v537 = vld [vmem:[#allocation2 + $0x60] sm:$0xff]
        %v538 = vld [vmem:[#allocation2 + $0x68] sm:$0xf]
        %v539 = vld [vmem:[#allocation2 + $0x6c] sm:$0xff]
        %v540 = vld [vmem:[#allocation2 + $0x74] sm:$0xf]
        %v541 = vld [vmem:[#allocation2 + $0x78] sm:$0xff]
        %v542 = vld [vmem:[#allocation2 + $0x80] sm:$0xf]
        %v543 = vld [vmem:[#allocation2 + $0x84] sm:$0xff]
        %v544 = vld [vmem:[#allocation2 + $0x8c] sm:$0xf]
        %v545 = vld [vmem:[#allocation2 + $0x90] sm:$0xff]
        %v546 = vld [vmem:[#allocation2 + $0x98] sm:$0xf]
        %v547 = vld [vmem:[#allocation2 + $0x9c] sm:$0xff]
        %v548 = vld [vmem:[#allocation2 + $0xa4] sm:$0xf]
        %v549 = vld [vmem:[#allocation2 + $0xa8] sm:$0xff]
        %v550 = vld [vmem:[#allocation2 + $0xb0] sm:$0xf]
        %v551 = vld [vmem:[#allocation2 + $0xb4] sm:$0xff]
        %v552 = vld [vmem:[#allocation2 + $0xbc] sm:$0xf]
        %v553 = vld [vmem:[#allocation2 + $0xc0] sm:$0xff]
        %v554 = vld [vmem:[#allocation2 + $0xc8] sm:$0xf]
        %v555 = vld [vmem:[#allocation2 + $0xcc] sm:$0xff]
        %v556 = vld [vmem:[#allocation2 + $0xd4] sm:$0xf]
        %v557 = vld [vmem:[#allocation2 + $0xd8] sm:$0xff]
        %v558 = vld [vmem:[#allocation2 + $0xe0] sm:$0xf]
        %v559 = vld [vmem:[#allocation2 + $0xe4] sm:$0xff]
        %v560 = vld [vmem:[#allocation2 + $0xec] sm:$0xf]
        %v561 = vld [vmem:[#allocation2 + $0xf0] sm:$0xff]
        %v562 = vld [vmem:[#allocation2 + $0xf8] sm:$0xf]
        %v563 = vld [vmem:[#allocation2 + $0xfc] sm:$0xff]
        %v564 = vld [vmem:[#allocation2 + $0x104] sm:$0xf]
        %v565 = vld [vmem:[#allocation2 + $0x108] sm:$0xff]
        %v566 = vld [vmem:[#allocation2 + $0x110] sm:$0xf]
        %v567 = vld [vmem:[#allocation2 + $0x114] sm:$0xff]
        %v568 = vld [vmem:[#allocation2 + $0x11c] sm:$0xf]
        %v569 = vld [vmem:[#allocation2 + $0x120] sm:$0xff]
        %v570 = vld [vmem:[#allocation2 + $0x128] sm:$0xf]
        %v571 = vld [vmem:[#allocation2 + $0x12c] sm:$0xff]
        %v572 = vld [vmem:[#allocation2 + $0x134] sm:$0xf]
        %v573 = vld [vmem:[#allocation2 + $0x138] sm:$0xff]
        %v574 = vld [vmem:[#allocation2 + $0x140] sm:$0xf]
        %v575 = vld [vmem:[#allocation2 + $0x144] sm:$0xff]
        %v576 = vld [vmem:[#allocation2 + $0x14c] sm:$0xf]
        %v577 = vld [vmem:[#allocation2 + $0x150] sm:$0xff]
        %v578 = vld [vmem:[#allocation2 + $0x158] sm:$0xf]
        %v579 = vld [vmem:[#allocation2 + $0x15c] sm:$0xff]
        %v580 = vld [vmem:[#allocation2 + $0x164] sm:$0xf]
        %v581 = vld [vmem:[#allocation2 + $0x168] sm:$0xff]
        %v582 = vld [vmem:[#allocation2 + $0x170] sm:$0xf]
        %v583 = vld [vmem:[#allocation2 + $0x174] sm:$0xff]
        %v584 = vld [vmem:[#allocation2 + $0x17c] sm:$0xf]
        %v585 = vld [vmem:[#allocation9] sm:$0xf]
        %v586 = vld [vmem:[#allocation9 + $0x4] sm:$0xf]
        %v587 = vld [vmem:[#allocation9 + $0x8] sm:$0xf]
        %v588 = vld [vmem:[#allocation9 + $0xc] sm:$0xf]
        %v589 = vld [vmem:[#allocation9 + $0x10] sm:$0xf]
        %v590 = vld [vmem:[#allocation9 + $0x14] sm:$0xf]
        %v591 = vld [vmem:[#allocation9 + $0x18] sm:$0xf]
        %v592 = vld [vmem:[#allocation9 + $0x1c] sm:$0xf]
        %v593 = vld [vmem:[#allocation9 + $0x20] sm:$0xf]
        %v594 = vld [vmem:[#allocation9 + $0x24] sm:$0xf]
        %v595 = vld [vmem:[#allocation9 + $0x28] sm:$0xf]
        %v596 = vld [vmem:[#allocation9 + $0x2c] sm:$0xf]
        %v597 = vld [vmem:[#allocation9 + $0x30] sm:$0xf]
        %v598 = vld [vmem:[#allocation9 + $0x34] sm:$0xf]
        %v599 = vld [vmem:[#allocation9 + $0x38] sm:$0xf]
        %v600 = vld [vmem:[#allocation9 + $0x3c] sm:$0xf]
        %v601 = vld [vmem:[#allocation9 + $0x40] sm:$0xf]
        %v602 = vld [vmem:[#allocation9 + $0x44] sm:$0xf]
        %v603 = vld [vmem:[#allocation9 + $0x48] sm:$0xf]
        %v604 = vld [vmem:[#allocation9 + $0x4c] sm:$0xf]
        %v605 = vld [vmem:[#allocation9 + $0x50] sm:$0xf]
        %v606 = vld [vmem:[#allocation9 + $0x54] sm:$0xf]
        %v607 = vld [vmem:[#allocation9 + $0x58] sm:$0xf]
        %v608 = vld [vmem:[#allocation9 + $0x5c] sm:$0xf]
        %v609 = vld [vmem:[#allocation9 + $0x60] sm:$0xf]
        %v610 = vld [vmem:[#allocation9 + $0x64] sm:$0xf]
        %v611 = vld [vmem:[#allocation9 + $0x68] sm:$0xf]
        %v612 = vld [vmem:[#allocation9 + $0x6c] sm:$0xf]
        %v613 = vld [vmem:[#allocation9 + $0x70] sm:$0xf]
        %v614 = vld [vmem:[#allocation9 + $0x74] sm:$0xf]
        %v615 = vld [vmem:[#allocation9 + $0x78] sm:$0xf]
        %v616 = vld [vmem:[#allocation9 + $0x7c] sm:$0xf]
        %v617 = vld [vmem:[#allocation9 + $0x80] sm:$0xf]
        %v618 = vld [vmem:[#allocation9 + $0x84] sm:$0xf]
        %v619 = vld [vmem:[#allocation9 + $0x88] sm:$0xf]
        %v620 = vld [vmem:[#allocation9 + $0x8c] sm:$0xf]
        %v621 = vld [vmem:[#allocation9 + $0x90] sm:$0xf]
        %v622 = vld [vmem:[#allocation9 + $0x94] sm:$0xf]
        %v623 = vld [vmem:[#allocation9 + $0x98] sm:$0xf]
        %v624 = vld [vmem:[#allocation9 + $0x9c] sm:$0xf]
        %v625 = vld [vmem:[#allocation9 + $0xa0] sm:$0xf]
        %v626 = vld [vmem:[#allocation9 + $0xa4] sm:$0xf]
        %v627 = vld [vmem:[#allocation9 + $0xa8] sm:$0xf]
        %v628 = vld [vmem:[#allocation9 + $0xac] sm:$0xf]
        %v629 = vld [vmem:[#allocation9 + $0xb0] sm:$0xf]
        %v630 = vld [vmem:[#allocation9 + $0xb4] sm:$0xf]
        %v631 = vld [vmem:[#allocation9 + $0xb8] sm:$0xf]
        %v632 = vld [vmem:[#allocation9 + $0xbc] sm:$0xf]
        %v697 = vunpack.c.l.b16 %v521
        %v698 = vunpack.c.h.b16 %v521
        %v699 = vunpack.c.l.b16 %v522
        %v700 = vunpack.c.l.b16 %v523
        %v701 = vunpack.c.h.b16 %v523
        %v702 = vunpack.c.l.b16 %v524
        %v703 = vunpack.c.l.b16 %v525
        %v704 = vunpack.c.h.b16 %v525
        %v705 = vunpack.c.l.b16 %v526
        %v706 = vunpack.c.l.b16 %v527
        %v707 = vunpack.c.h.b16 %v527
        %v708 = vunpack.c.l.b16 %v528
        %v709 = vunpack.c.l.b16 %v529
        %v710 = vunpack.c.h.b16 %v529
        %v711 = vunpack.c.l.b16 %v530
        %v712 = vunpack.c.l.b16 %v531
        %v713 = vunpack.c.h.b16 %v531
        %v714 = vunpack.c.l.b16 %v532
        %v715 = vunpack.c.l.b16 %v533
        %v716 = vunpack.c.h.b16 %v533
        %v717 = vunpack.c.l.b16 %v534
        %v718 = vunpack.c.l.b16 %v535
        %v719 = vunpack.c.h.b16 %v535
        %v720 = vunpack.c.l.b16 %v536
        %v721 = vunpack.c.l.b16 %v537
        %v722 = vunpack.c.h.b16 %v537
        %v723 = vunpack.c.l.b16 %v538
        %v724 = vunpack.c.l.b16 %v539
        %v725 = vunpack.c.h.b16 %v539
        %v726 = vunpack.c.l.b16 %v540
        %v727 = vunpack.c.l.b16 %v541
        %v728 = vunpack.c.h.b16 %v541
        %v729 = vunpack.c.l.b16 %v542
        %v730 = vunpack.c.l.b16 %v543
        %v731 = vunpack.c.h.b16 %v543
        %v732 = vunpack.c.l.b16 %v544
        %v733 = vunpack.c.l.b16 %v545
        %v734 = vunpack.c.h.b16 %v545
        %v735 = vunpack.c.l.b16 %v546
        %v736 = vunpack.c.l.b16 %v547
        %v737 = vunpack.c.h.b16 %v547
        %v738 = vunpack.c.l.b16 %v548
        %v739 = vunpack.c.l.b16 %v549
        %v740 = vunpack.c.h.b16 %v549
        %v741 = vunpack.c.l.b16 %v550
        %v742 = vunpack.c.l.b16 %v551
        %v743 = vunpack.c.h.b16 %v551
        %v744 = vunpack.c.l.b16 %v552
        %v745 = vunpack.c.l.b16 %v553
        %v746 = vunpack.c.h.b16 %v553
        %v747 = vunpack.c.l.b16 %v554
        %v748 = vunpack.c.l.b16 %v555
        %v749 = vunpack.c.h.b16 %v555
        %v750 = vunpack.c.l.b16 %v556
        %v751 = vunpack.c.l.b16 %v557
        %v752 = vunpack.c.h.b16 %v557
        %v753 = vunpack.c.l.b16 %v558
        %v754 = vunpack.c.l.b16 %v559
        %v755 = vunpack.c.h.b16 %v559
        %v756 = vunpack.c.l.b16 %v560
        %v757 = vunpack.c.l.b16 %v561
        %v758 = vunpack.c.h.b16 %v561
        %v759 = vunpack.c.l.b16 %v562
        %v760 = vunpack.c.l.b16 %v563
        %v761 = vunpack.c.h.b16 %v563
        %v762 = vunpack.c.l.b16 %v564
        %v763 = vunpack.c.l.b16 %v565
        %v764 = vunpack.c.h.b16 %v565
        %v765 = vunpack.c.l.b16 %v566
        %v766 = vunpack.c.l.b16 %v567
        %v767 = vunpack.c.h.b16 %v567
        %v768 = vunpack.c.l.b16 %v568
        %v769 = vunpack.c.l.b16 %v569
        %v770 = vunpack.c.h.b16 %v569
        %v771 = vunpack.c.l.b16 %v570
        %v772 = vunpack.c.l.b16 %v571
        %v773 = vunpack.c.h.b16 %v571
        %v774 = vunpack.c.l.b16 %v572
        %v775 = vunpack.c.l.b16 %v573
        %v776 = vunpack.c.h.b16 %v573
        %v777 = vunpack.c.l.b16 %v574
        %v778 = vunpack.c.l.b16 %v575
        %v779 = vunpack.c.h.b16 %v575
        %v780 = vunpack.c.l.b16 %v576
        %v781 = vunpack.c.l.b16 %v577
        %v782 = vunpack.c.h.b16 %v577
        %v783 = vunpack.c.l.b16 %v578
        %v784 = vunpack.c.l.b16 %v579
        %v785 = vunpack.c.h.b16 %v579
        %v786 = vunpack.c.l.b16 %v580
        %v787 = vunpack.c.l.b16 %v581
        %v788 = vunpack.c.h.b16 %v581
        %v789 = vunpack.c.l.b16 %v582
        %v790 = vunpack.c.l.b16 %v583
        %v791 = vunpack.c.h.b16 %v583
        %v792 = vunpack.c.l.b16 %v584
        %v793 = vpack.c.b16 %v700, %v697
        %v794 = vpack.c.b16 %v701, %v698
        %v795 = vpack.c.b16 %v702, %v699
        %v796 = vpack.c.b16 %v706, %v703
        %v797 = vpack.c.b16 %v707, %v704
        %v798 = vpack.c.b16 %v708, %v705
        %v799 = vpack.c.b16 %v712, %v709
        %v800 = vpack.c.b16 %v713, %v710
        %v801 = vpack.c.b16 %v714, %v711
        %v802 = vpack.c.b16 %v718, %v715
        %v803 = vpack.c.b16 %v719, %v716
        %v804 = vpack.c.b16 %v720, %v717
        %v805 = vpack.c.b16 %v724, %v721
        %v806 = vpack.c.b16 %v725, %v722
        %v807 = vpack.c.b16 %v726, %v723
        %v808 = vpack.c.b16 %v730, %v727
        %v809 = vpack.c.b16 %v731, %v728
        %v810 = vpack.c.b16 %v732, %v729
        %v811 = vpack.c.b16 %v736, %v733
        %v812 = vpack.c.b16 %v737, %v734
        %v813 = vpack.c.b16 %v738, %v735
        %v814 = vpack.c.b16 %v742, %v739
        %v815 = vpack.c.b16 %v743, %v740
        %v816 = vpack.c.b16 %v744, %v741
        %v817 = vpack.c.b16 %v748, %v745
        %v818 = vpack.c.b16 %v749, %v746
        %v819 = vpack.c.b16 %v750, %v747
        %v820 = vpack.c.b16 %v754, %v751
        %v821 = vpack.c.b16 %v755, %v752
        %v822 = vpack.c.b16 %v756, %v753
        %v823 = vpack.c.b16 %v760, %v757
        %v824 = vpack.c.b16 %v761, %v758
        %v825 = vpack.c.b16 %v762, %v759
        %v826 = vpack.c.b16 %v766, %v763
        %v827 = vpack.c.b16 %v767, %v764
        %v828 = vpack.c.b16 %v768, %v765
        %v829 = vpack.c.b16 %v772, %v769
        %v830 = vpack.c.b16 %v773, %v770
        %v831 = vpack.c.b16 %v774, %v771
        %v832 = vpack.c.b16 %v778, %v775
        %v833 = vpack.c.b16 %v779, %v776
        %v834 = vpack.c.b16 %v780, %v777
        %v835 = vpack.c.b16 %v784, %v781
        %v836 = vpack.c.b16 %v785, %v782
        %v837 = vpack.c.b16 %v786, %v783
        %v838 = vpack.c.b16 %v790, %v787
        %v839 = vpack.c.b16 %v791, %v788
        %v840 = vpack.c.b16 %v792, %v789
        %v937 = vunpack.c.l.b16 %v585
        %v938 = vunpack.c.l.b16 %v586
        %v939 = vunpack.c.l.b16 %v587
        %v940 = vunpack.c.l.b16 %v588
        %v941 = vunpack.c.l.b16 %v589
        %v942 = vunpack.c.l.b16 %v590
        %v943 = vunpack.c.l.b16 %v591
        %v944 = vunpack.c.l.b16 %v592
        %v945 = vunpack.c.l.b16 %v593
        %v946 = vunpack.c.l.b16 %v594
        %v947 = vunpack.c.l.b16 %v595
        %v948 = vunpack.c.l.b16 %v596
        %v949 = vunpack.c.l.b16 %v597
        %v950 = vunpack.c.l.b16 %v598
        %v951 = vunpack.c.l.b16 %v599
        %v952 = vunpack.c.l.b16 %v600
        %v953 = vunpack.c.l.b16 %v601
        %v954 = vunpack.c.l.b16 %v602
        %v955 = vunpack.c.l.b16 %v603
        %v956 = vunpack.c.l.b16 %v604
        %v957 = vunpack.c.l.b16 %v605
        %v958 = vunpack.c.l.b16 %v606
        %v959 = vunpack.c.l.b16 %v607
        %v960 = vunpack.c.l.b16 %v608
        %v961 = vunpack.c.l.b16 %v609
        %v962 = vunpack.c.l.b16 %v610
        %v963 = vunpack.c.l.b16 %v611
        %v964 = vunpack.c.l.b16 %v612
        %v965 = vunpack.c.l.b16 %v613
        %v966 = vunpack.c.l.b16 %v614
        %v967 = vunpack.c.l.b16 %v615
        %v968 = vunpack.c.l.b16 %v616
        %v969 = vunpack.c.l.b16 %v617
        %v970 = vunpack.c.l.b16 %v618
        %v971 = vunpack.c.l.b16 %v619
        %v972 = vunpack.c.l.b16 %v620
        %v973 = vunpack.c.l.b16 %v621
        %v974 = vunpack.c.l.b16 %v622
        %v975 = vunpack.c.l.b16 %v623
        %v976 = vunpack.c.l.b16 %v624
        %v977 = vunpack.c.l.b16 %v625
        %v978 = vunpack.c.l.b16 %v626
        %v979 = vunpack.c.l.b16 %v627
        %v980 = vunpack.c.l.b16 %v628
        %v981 = vunpack.c.l.b16 %v629
        %v982 = vunpack.c.l.b16 %v630
        %v983 = vunpack.c.l.b16 %v631
        %v984 = vunpack.c.l.b16 %v632
        %v985 = vpack.c.b16 %v938, %v937
        %v986 = vpack.c.b16 %v940, %v939
        %v987 = vpack.c.b16 %v942, %v941
        %v988 = vpack.c.b16 %v944, %v943
        %v989 = vpack.c.b16 %v946, %v945
        %v990 = vpack.c.b16 %v948, %v947
        %v991 = vpack.c.b16 %v950, %v949
        %v992 = vpack.c.b16 %v952, %v951
        %v993 = vpack.c.b16 %v954, %v953
        %v994 = vpack.c.b16 %v956, %v955
        %v995 = vpack.c.b16 %v958, %v957
        %v996 = vpack.c.b16 %v960, %v959
        %v997 = vpack.c.b16 %v962, %v961
        %v998 = vpack.c.b16 %v964, %v963
        %v999 = vpack.c.b16 %v966, %v965
        %v1000 = vpack.c.b16 %v968, %v967
        %v1001 = vpack.c.b16 %v970, %v969
        %v1002 = vpack.c.b16 %v972, %v971
        %v1003 = vpack.c.b16 %v974, %v973
        %v1004 = vpack.c.b16 %v976, %v975
        %v1005 = vpack.c.b16 %v978, %v977
        %v1006 = vpack.c.b16 %v980, %v979
        %v1007 = vpack.c.b16 %v982, %v981
        %v1008 = vpack.c.b16 %v984, %v983
        %1033 = vmatprep.subr.bf16.mxu0 0
        %1034 = vmatpush1.bf16.msra.mxu0 %v992
        %1035 = vmatprep.subr.bf16.mxu0 0
        %1036 = vmatpush1.bf16.msra.mxu0 %v991
        %1037 = vmatprep.subr.bf16.mxu0 0
        %1038 = vmatpush1.bf16.msra.mxu0 %v990
        %1039 = vmatprep.subr.bf16.mxu0 0
        %1040 = vmatpush1.bf16.msra.mxu0 %v989
        %1041 = vmatprep.subr.bf16.mxu0 0
        %1042 = vmatpush1.bf16.msra.mxu0 %v988
        %1043 = vmatprep.subr.bf16.mxu0 0
        %1044 = vmatpush1.bf16.msra.mxu0 %v987
        %1045 = vmatprep.subr.bf16.mxu0 0
        %1046 = vmatpush1.bf16.msra.mxu0 %v986
        %1047 = vmatprep.subr.bf16.mxu0 0
        %1048 = vmatpush1.bf16.msra.mxu0 %v985
        %1049 = vmatprep.subr.bf16.mxu0 0
        %1050 = vmatpush2.bf16.msra.mxu0 %v1000
        %1051 = vmatprep.subr.bf16.mxu0 0
        %1052 = vmatpush2.bf16.msra.mxu0 %v999
        %1053 = vmatprep.subr.bf16.mxu0 0
        %1054 = vmatpush2.bf16.msra.mxu0 %v998
        %1055 = vmatprep.subr.bf16.mxu0 0
        %1056 = vmatpush2.bf16.msra.mxu0 %v997
        %1057 = vmatprep.subr.bf16.mxu0 0
        %1058 = vmatpush2.bf16.msra.mxu0 %v996
        %1059 = vmatprep.subr.bf16.mxu0 0
        %1060 = vmatpush2.bf16.msra.mxu0 %v995
        %1061 = vmatprep.subr.bf16.mxu0 0
        %1062 = vmatpush2.bf16.msra.mxu0 %v994
        %1063 = vmatprep.subr.bf16.mxu0 0
        %1064 = vmatpush2.bf16.msra.mxu0 %v993
        %1065 = vmatprep.mubr.bf16.mxu0 %v794
        %1066 = vmatmul.mubr.bf16.gmra.mxu0 %v793
        %v1067 = vpop.f32.mrf.mxu0
        %v1068 = vadd.f32 0.0, %v1067
        %v1069 = vpop.f32.mrf.mxu0
        %v1070 = vpop.f32.mrf.mxu0
        %v1071 = vadd.f32 0.0, %v1070
        %v1072 = vpop.f32.mrf.mxu0
        %1073 = vmatprep.mubr.bf16.mxu0 %v797
        %1074 = vmatmul.mubr.bf16.gmra.mxu0 %v796
        %v1075 = vpop.f32.mrf.mxu0
        %v1076 = vadd.f32 0.0, %v1075
        %v1077 = vpop.f32.mrf.mxu0
        %v1078 = vpop.f32.mrf.mxu0
        %v1079 = vadd.f32 0.0, %v1078
        %v1080 = vpop.f32.mrf.mxu0
        %1081 = vmatprep.mubr.bf16.mxu0 %v800
        %1082 = vmatmul.mubr.bf16.gmra.mxu0 %v799
        %v1083 = vpop.f32.mrf.mxu0
        %v1084 = vadd.f32 0.0, %v1083
        %v1085 = vpop.f32.mrf.mxu0
        %v1086 = vpop.f32.mrf.mxu0
        %v1087 = vadd.f32 0.0, %v1086
        %v1088 = vpop.f32.mrf.mxu0
        %1089 = vmatprep.mubr.bf16.mxu0 %v803
        %1090 = vmatmul.mubr.bf16.gmra.mxu0 %v802
        %v1091 = vpop.f32.mrf.mxu0
        %v1092 = vadd.f32 0.0, %v1091
        %v1093 = vpop.f32.mrf.mxu0
        %v1094 = vpop.f32.mrf.mxu0
        %v1095 = vadd.f32 0.0, %v1094
        %v1096 = vpop.f32.mrf.mxu0
        %1097 = vmatprep.mubr.bf16.mxu0 %v806
        %1098 = vmatmul.mubr.bf16.gmra.mxu0 %v805
        %v1099 = vpop.f32.mrf.mxu0
        %v1100 = vadd.f32 0.0, %v1099
        %v1101 = vpop.f32.mrf.mxu0
        %v1102 = vpop.f32.mrf.mxu0
        %v1103 = vadd.f32 0.0, %v1102
        %v1104 = vpop.f32.mrf.mxu0
        %1105 = vmatprep.mubr.bf16.mxu0 %v809
        %1106 = vmatmul.mubr.bf16.gmra.mxu0 %v808
        %v1107 = vpop.f32.mrf.mxu0
        %v1108 = vadd.f32 0.0, %v1107
        %v1109 = vpop.f32.mrf.mxu0
        %v1110 = vpop.f32.mrf.mxu0
        %v1111 = vadd.f32 0.0, %v1110
        %v1112 = vpop.f32.mrf.mxu0
        %1113 = vmatprep.mubr.bf16.mxu0 %v812
        %1114 = vmatmul.mubr.bf16.gmra.mxu0 %v811
        %v1115 = vpop.f32.mrf.mxu0
        %v1116 = vadd.f32 0.0, %v1115
        %v1117 = vpop.f32.mrf.mxu0
        %v1118 = vpop.f32.mrf.mxu0
        %v1119 = vadd.f32 0.0, %v1118
        %v1120 = vpop.f32.mrf.mxu0
        %1121 = vmatprep.mubr.bf16.mxu0 %v815
        %1122 = vmatmul.mubr.bf16.gmra.mxu0 %v814
        %v1123 = vpop.f32.mrf.mxu0
        %v1124 = vadd.f32 0.0, %v1123
        %v1125 = vpop.f32.mrf.mxu0
        %v1126 = vpop.f32.mrf.mxu0
        %v1127 = vadd.f32 0.0, %v1126
        %v1128 = vpop.f32.mrf.mxu0
        %1129 = vmatprep.mubr.bf16.mxu0 %v818
        %1130 = vmatmul.mubr.bf16.gmra.mxu0 %v817
        %v1131 = vpop.f32.mrf.mxu0
        %v1132 = vadd.f32 0.0, %v1131
        %v1133 = vpop.f32.mrf.mxu0
        %v1134 = vpop.f32.mrf.mxu0
        %v1135 = vadd.f32 0.0, %v1134
        %v1136 = vpop.f32.mrf.mxu0
        %1137 = vmatprep.mubr.bf16.mxu0 %v821
        %1138 = vmatmul.mubr.bf16.gmra.mxu0 %v820
        %v1139 = vpop.f32.mrf.mxu0
        %v1140 = vadd.f32 0.0, %v1139
        %v1141 = vpop.f32.mrf.mxu0
        %v1142 = vpop.f32.mrf.mxu0
        %v1143 = vadd.f32 0.0, %v1142
        %v1144 = vpop.f32.mrf.mxu0
        %1145 = vmatprep.mubr.bf16.mxu0 %v824
        %1146 = vmatmul.mubr.bf16.gmra.mxu0 %v823
        %v1147 = vpop.f32.mrf.mxu0
        %v1148 = vadd.f32 0.0, %v1147
        %v1149 = vpop.f32.mrf.mxu0
        %v1150 = vpop.f32.mrf.mxu0
        %v1151 = vadd.f32 0.0, %v1150
        %v1152 = vpop.f32.mrf.mxu0
        %1153 = vmatprep.mubr.bf16.mxu0 %v827
        %1154 = vmatmul.mubr.bf16.gmra.mxu0 %v826
        %v1155 = vpop.f32.mrf.mxu0
        %v1156 = vadd.f32 0.0, %v1155
        %v1157 = vpop.f32.mrf.mxu0
        %v1158 = vpop.f32.mrf.mxu0
        %v1159 = vadd.f32 0.0, %v1158
        %v1160 = vpop.f32.mrf.mxu0
        %1161 = vmatprep.mubr.bf16.mxu0 %v830
        %1162 = vmatmul.mubr.bf16.gmra.mxu0 %v829
        %v1163 = vpop.f32.mrf.mxu0
        %v1164 = vadd.f32 0.0, %v1163
        %v1165 = vpop.f32.mrf.mxu0
        %v1166 = vpop.f32.mrf.mxu0
        %v1167 = vadd.f32 0.0, %v1166
        %v1168 = vpop.f32.mrf.mxu0
        %1169 = vmatprep.mubr.bf16.mxu0 %v833
        %1170 = vmatmul.mubr.bf16.gmra.mxu0 %v832
        %v1171 = vpop.f32.mrf.mxu0
        %v1172 = vadd.f32 0.0, %v1171
        %v1173 = vpop.f32.mrf.mxu0
        %v1174 = vpop.f32.mrf.mxu0
        %v1175 = vadd.f32 0.0, %v1174
        %v1176 = vpop.f32.mrf.mxu0
        %1177 = vmatprep.mubr.bf16.mxu0 %v836
        %1178 = vmatmul.mubr.bf16.gmra.mxu0 %v835
        %v1179 = vpop.f32.mrf.mxu0
        %v1180 = vadd.f32 0.0, %v1179
        %v1181 = vpop.f32.mrf.mxu0
        %v1182 = vpop.f32.mrf.mxu0
        %v1183 = vadd.f32 0.0, %v1182
        %v1184 = vpop.f32.mrf.mxu0
        %1185 = vmatprep.mubr.bf16.mxu0 %v839
        %1186 = vmatmul.mubr.bf16.gmra.mxu0 %v838
        %v1187 = vpop.f32.mrf.mxu0
        %v1188 = vadd.f32 0.0, %v1187
        %v1189 = vpop.f32.mrf.mxu0
        %v1190 = vpop.f32.mrf.mxu0
        %v1191 = vadd.f32 0.0, %v1190
        %v1192 = vpop.f32.mrf.mxu0
        %1193 = vdwg.mxu0
        %1194 = vmatprep.subr.bf16.mxu0 0
        %1195 = vmatpush1.bf16.msra.mxu0 %v1008
        %1196 = vmatprep.subr.bf16.mxu0 0
        %1197 = vmatpush1.bf16.msra.mxu0 %v1007
        %1198 = vmatprep.subr.bf16.mxu0 0
        %1199 = vmatpush1.bf16.msra.mxu0 %v1006
        %1200 = vmatprep.subr.bf16.mxu0 0
        %1201 = vmatpush1.bf16.msra.mxu0 %v1005
        %1202 = vmatprep.subr.bf16.mxu0 0
        %1203 = vmatpush1.bf16.msra.mxu0 %v1004
        %1204 = vmatprep.subr.bf16.mxu0 0
        %1205 = vmatpush1.bf16.msra.mxu0 %v1003
        %1206 = vmatprep.subr.bf16.mxu0 0
        %1207 = vmatpush1.bf16.msra.mxu0 %v1002
        %1208 = vmatprep.subr.bf16.mxu0 0
        %1209 = vmatpush1.bf16.msra.mxu0 %v1001
        %1210 = vmatprep.subr.bf16.mxu0 0
        %1211 = vmatpush2.bf16.msra.mxu0 0
        %1212 = vmatprep.subr.bf16.mxu0 0
        %1213 = vmatpush2.bf16.msra.mxu0 0
        %1214 = vmatprep.subr.bf16.mxu0 0
        %1215 = vmatpush2.bf16.msra.mxu0 0
        %1216 = vmatprep.subr.bf16.mxu0 0
        %1217 = vmatpush2.bf16.msra.mxu0 0
        %1218 = vmatprep.subr.bf16.mxu0 0
        %1219 = vmatpush2.bf16.msra.mxu0 0
        %1220 = vmatprep.subr.bf16.mxu0 0
        %1221 = vmatpush2.bf16.msra.mxu0 0
        %1222 = vmatprep.subr.bf16.mxu0 0
        %1223 = vmatpush2.bf16.msra.mxu0 0
        %1224 = vmatprep.subr.bf16.mxu0 0
        %1225 = vmatpush2.bf16.msra.mxu0 0
        %1226 = vmatprep.mubr.bf16.mxu0 0
        %1227 = vmatmul.mubr.bf16.gmra.mxu0 %v795
        %v1228 = vpop.f32.mrf.mxu0
        %v1229 = vadd.f32 %v1068, %v1228
        %v1230 = vpop.f32.mrf.mxu0
        %v1231 = vpop.f32.mrf.mxu0
        %v1232 = vadd.f32 %v1071, %v1231
        %v1233 = vpop.f32.mrf.mxu0
        %1234 = vmatprep.mubr.bf16.mxu0 0
        %1235 = vmatmul.mubr.bf16.gmra.mxu0 %v798
        %v1236 = vpop.f32.mrf.mxu0
        %v1237 = vadd.f32 %v1076, %v1236
        %v1238 = vpop.f32.mrf.mxu0
        %v1239 = vpop.f32.mrf.mxu0
        %v1240 = vadd.f32 %v1079, %v1239
        %v1241 = vpop.f32.mrf.mxu0
        %1242 = vmatprep.mubr.bf16.mxu0 0
        %1243 = vmatmul.mubr.bf16.gmra.mxu0 %v801
        %v1244 = vpop.f32.mrf.mxu0
        %v1245 = vadd.f32 %v1084, %v1244
        %v1246 = vpop.f32.mrf.mxu0
        %v1247 = vpop.f32.mrf.mxu0
        %v1248 = vadd.f32 %v1087, %v1247
        %v1249 = vpop.f32.mrf.mxu0
        %1250 = vmatprep.mubr.bf16.mxu0 0
        %1251 = vmatmul.mubr.bf16.gmra.mxu0 %v804
        %v1252 = vpop.f32.mrf.mxu0
        %v1253 = vadd.f32 %v1092, %v1252
        %v1254 = vpop.f32.mrf.mxu0
        %v1255 = vpop.f32.mrf.mxu0
        %v1256 = vadd.f32 %v1095, %v1255
        %v1257 = vpop.f32.mrf.mxu0
        %1258 = vmatprep.mubr.bf16.mxu0 0
        %1259 = vmatmul.mubr.bf16.gmra.mxu0 %v807
        %v1260 = vpop.f32.mrf.mxu0
        %v1261 = vadd.f32 %v1100, %v1260
        %v1262 = vpop.f32.mrf.mxu0
        %v1263 = vpop.f32.mrf.mxu0
        %v1264 = vadd.f32 %v1103, %v1263
        %v1265 = vpop.f32.mrf.mxu0
        %1266 = vmatprep.mubr.bf16.mxu0 0
        %1267 = vmatmul.mubr.bf16.gmra.mxu0 %v810
        %v1268 = vpop.f32.mrf.mxu0
        %v1269 = vadd.f32 %v1108, %v1268
        %v1270 = vpop.f32.mrf.mxu0
        %v1271 = vpop.f32.mrf.mxu0
        %v1272 = vadd.f32 %v1111, %v1271
        %v1273 = vpop.f32.mrf.mxu0
        %1274 = vmatprep.mubr.bf16.mxu0 0
        %1275 = vmatmul.mubr.bf16.gmra.mxu0 %v813
        %v1276 = vpop.f32.mrf.mxu0
        %v1277 = vadd.f32 %v1116, %v1276
        %v1278 = vpop.f32.mrf.mxu0
        %v1279 = vpop.f32.mrf.mxu0
        %v1280 = vadd.f32 %v1119, %v1279
        %v1281 = vpop.f32.mrf.mxu0
        %1282 = vmatprep.mubr.bf16.mxu0 0
        %1283 = vmatmul.mubr.bf16.gmra.mxu0 %v816
        %v1284 = vpop.f32.mrf.mxu0
        %v1285 = vadd.f32 %v1124, %v1284
        %v1286 = vpop.f32.mrf.mxu0
        %v1287 = vpop.f32.mrf.mxu0
        %v1288 = vadd.f32 %v1127, %v1287
        %v1289 = vpop.f32.mrf.mxu0
        %1290 = vmatprep.mubr.bf16.mxu0 0
        %1291 = vmatmul.mubr.bf16.gmra.mxu0 %v819
        %v1292 = vpop.f32.mrf.mxu0
        %v1293 = vadd.f32 %v1132, %v1292
        %v1294 = vpop.f32.mrf.mxu0
        %v1295 = vpop.f32.mrf.mxu0
        %v1296 = vadd.f32 %v1135, %v1295
        %v1297 = vpop.f32.mrf.mxu0
        %1298 = vmatprep.mubr.bf16.mxu0 0
        %1299 = vmatmul.mubr.bf16.gmra.mxu0 %v822
        %v1300 = vpop.f32.mrf.mxu0
        %v1301 = vadd.f32 %v1140, %v1300
        %v1302 = vpop.f32.mrf.mxu0
        %v1303 = vpop.f32.mrf.mxu0
        %v1304 = vadd.f32 %v1143, %v1303
        %v1305 = vpop.f32.mrf.mxu0
        %1306 = vmatprep.mubr.bf16.mxu0 0
        %1307 = vmatmul.mubr.bf16.gmra.mxu0 %v825
        %v1308 = vpop.f32.mrf.mxu0
        %v1309 = vadd.f32 %v1148, %v1308
        %v1310 = vpop.f32.mrf.mxu0
        %v1311 = vpop.f32.mrf.mxu0
        %v1312 = vadd.f32 %v1151, %v1311
        %v1313 = vpop.f32.mrf.mxu0
        %1314 = vmatprep.mubr.bf16.mxu0 0
        %1315 = vmatmul.mubr.bf16.gmra.mxu0 %v828
        %v1316 = vpop.f32.mrf.mxu0
        %v1317 = vadd.f32 %v1156, %v1316
        %v1318 = vpop.f32.mrf.mxu0
        %v1319 = vpop.f32.mrf.mxu0
        %v1320 = vadd.f32 %v1159, %v1319
        %v1321 = vpop.f32.mrf.mxu0
        %1322 = vmatprep.mubr.bf16.mxu0 0
        %1323 = vmatmul.mubr.bf16.gmra.mxu0 %v831
        %v1324 = vpop.f32.mrf.mxu0
        %v1325 = vadd.f32 %v1164, %v1324
        %v1326 = vpop.f32.mrf.mxu0
        %v1327 = vpop.f32.mrf.mxu0
        %v1328 = vadd.f32 %v1167, %v1327
        %v1329 = vpop.f32.mrf.mxu0
        %1330 = vmatprep.mubr.bf16.mxu0 0
        %1331 = vmatmul.mubr.bf16.gmra.mxu0 %v834
        %v1332 = vpop.f32.mrf.mxu0
        %v1333 = vadd.f32 %v1172, %v1332
        %v1334 = vpop.f32.mrf.mxu0
        %v1335 = vpop.f32.mrf.mxu0
        %v1336 = vadd.f32 %v1175, %v1335
        %v1337 = vpop.f32.mrf.mxu0
        %1338 = vmatprep.mubr.bf16.mxu0 0
        %1339 = vmatmul.mubr.bf16.gmra.mxu0 %v837
        %v1340 = vpop.f32.mrf.mxu0
        %v1341 = vadd.f32 %v1180, %v1340
        %v1342 = vpop.f32.mrf.mxu0
        %v1343 = vpop.f32.mrf.mxu0
        %v1344 = vadd.f32 %v1183, %v1343
        %v1345 = vpop.f32.mrf.mxu0
        %1346 = vmatprep.mubr.bf16.mxu0 0
        %1347 = vmatmul.mubr.bf16.gmra.mxu0 %v840
        %v1348 = vpop.f32.mrf.mxu0
        %v1349 = vadd.f32 %v1188, %v1348
        %v1350 = vpop.f32.mrf.mxu0
        %v1351 = vpop.f32.mrf.mxu0
        %v1352 = vadd.f32 %v1191, %v1351
        %v1353 = vpop.f32.mrf.mxu0
        %1354 = vdwg.mxu0
        %1355 = vst [vmem:[#allocation3] sm:$0xff] %v1229
        %1356 = vst [vmem:[#allocation3 + $0x8] sm:$0xff] %v1232
        %1357 = vst [vmem:[#allocation3 + $0x10] sm:$0xff] %v1237
        %1358 = vst [vmem:[#allocation3 + $0x18] sm:$0xff] %v1240
        %1359 = vst [vmem:[#allocation3 + $0x20] sm:$0xff] %v1245
        %1360 = vst [vmem:[#allocation3 + $0x28] sm:$0xff] %v1248
        %1361 = vst [vmem:[#allocation3 + $0x30] sm:$0xff] %v1253
        %1362 = vst [vmem:[#allocation3 + $0x38] sm:$0xff] %v1256
        %1363 = vst [vmem:[#allocation3 + $0x40] sm:$0xff] %v1261
        %1364 = vst [vmem:[#allocation3 + $0x48] sm:$0xff] %v1264
        %1365 = vst [vmem:[#allocation3 + $0x50] sm:$0xff] %v1269
        %1366 = vst [vmem:[#allocation3 + $0x58] sm:$0xff] %v1272
        %1367 = vst [vmem:[#allocation3 + $0x60] sm:$0xff] %v1277
        %1368 = vst [vmem:[#allocation3 + $0x68] sm:$0xff] %v1280
        %1369 = vst [vmem:[#allocation3 + $0x70] sm:$0xff] %v1285
        %1370 = vst [vmem:[#allocation3 + $0x78] sm:$0xff] %v1288
        %1371 = vst [vmem:[#allocation3 + $0x80] sm:$0xff] %v1293
        %1372 = vst [vmem:[#allocation3 + $0x88] sm:$0xff] %v1296
        %1373 = vst [vmem:[#allocation3 + $0x90] sm:$0xff] %v1301
        %1374 = vst [vmem:[#allocation3 + $0x98] sm:$0xff] %v1304
        %1375 = vst [vmem:[#allocation3 + $0xa0] sm:$0xff] %v1309
        %1376 = vst [vmem:[#allocation3 + $0xa8] sm:$0xff] %v1312
        %1377 = vst [vmem:[#allocation3 + $0xb0] sm:$0xff] %v1317
        %1378 = vst [vmem:[#allocation3 + $0xb8] sm:$0xff] %v1320
        %1379 = vst [vmem:[#allocation3 + $0xc0] sm:$0xff] %v1325
        %1380 = vst [vmem:[#allocation3 + $0xc8] sm:$0xff] %v1328
        %1381 = vst [vmem:[#allocation3 + $0xd0] sm:$0xff] %v1333
        %1382 = vst [vmem:[#allocation3 + $0xd8] sm:$0xff] %v1336
        %1383 = vst [vmem:[#allocation3 + $0xe0] sm:$0xff] %v1341
        %1384 = vst [vmem:[#allocation3 + $0xe8] sm:$0xff] %v1344
        %1385 = vst [vmem:[#allocation3 + $0xf0] sm:$0xff] %v1349
        %1386 = vst [vmem:[#allocation3 + $0xf8] sm:$0xff] %v1352
        %s1387 = scalar_lea.vmem [#allocation2], 24
        %v1388 = vld [vmem:[%s1387] sm:$0xff]
        %v1389 = vld [vmem:[%s1387 + $0x8] sm:$0xf]
        %v1390 = vld [vmem:[%s1387 + $0xc] sm:$0xff]
        %v1391 = vld [vmem:[%s1387 + $0x14] sm:$0xf]
        %v1392 = vld [vmem:[%s1387 + $0x18] sm:$0xff]
        %v1393 = vld [vmem:[%s1387 + $0x20] sm:$0xf]
        %v1394 = vld [vmem:[%s1387 + $0x24] sm:$0xff]
        %v1395 = vld [vmem:[%s1387 + $0x2c] sm:$0xf]
        %v1396 = vld [vmem:[%s1387 + $0x30] sm:$0xff]
        %v1397 = vld [vmem:[%s1387 + $0x38] sm:$0xf]
        %v1398 = vld [vmem:[%s1387 + $0x3c] sm:$0xff]
        %v1399 = vld [vmem:[%s1387 + $0x44] sm:$0xf]
        %v1400 = vld [vmem:[%s1387 + $0x48] sm:$0xff]
        %v1401 = vld [vmem:[%s1387 + $0x50] sm:$0xf]
        %v1402 = vld [vmem:[%s1387 + $0x54] sm:$0xff]
        %v1403 = vld [vmem:[%s1387 + $0x5c] sm:$0xf]
        %v1404 = vld [vmem:[%s1387 + $0x60] sm:$0xff]
        %v1405 = vld [vmem:[%s1387 + $0x68] sm:$0xf]
        %v1406 = vld [vmem:[%s1387 + $0x6c] sm:$0xff]
        %v1407 = vld [vmem:[%s1387 + $0x74] sm:$0xf]
        %v1408 = vld [vmem:[%s1387 + $0x78] sm:$0xff]
        %v1409 = vld [vmem:[%s1387 + $0x80] sm:$0xf]
        %v1410 = vld [vmem:[%s1387 + $0x84] sm:$0xff]
        %v1411 = vld [vmem:[%s1387 + $0x8c] sm:$0xf]
        %v1412 = vld [vmem:[%s1387 + $0x90] sm:$0xff]
        %v1413 = vld [vmem:[%s1387 + $0x98] sm:$0xf]
        %v1414 = vld [vmem:[%s1387 + $0x9c] sm:$0xff]
        %v1415 = vld [vmem:[%s1387 + $0xa4] sm:$0xf]
        %v1416 = vld [vmem:[%s1387 + $0xa8] sm:$0xff]
        %v1417 = vld [vmem:[%s1387 + $0xb0] sm:$0xf]
        %v1418 = vld [vmem:[%s1387 + $0xb4] sm:$0xff]
        %v1419 = vld [vmem:[%s1387 + $0xbc] sm:$0xf]
        %v1420 = vld [vmem:[%s1387 + $0xc0] sm:$0xff]
        %v1421 = vld [vmem:[%s1387 + $0xc8] sm:$0xf]
        %v1422 = vld [vmem:[%s1387 + $0xcc] sm:$0xff]
        %v1423 = vld [vmem:[%s1387 + $0xd4] sm:$0xf]
        %v1424 = vld [vmem:[%s1387 + $0xd8] sm:$0xff]
        %v1425 = vld [vmem:[%s1387 + $0xe0] sm:$0xf]
        %v1426 = vld [vmem:[%s1387 + $0xe4] sm:$0xff]
        %v1427 = vld [vmem:[%s1387 + $0xec] sm:$0xf]
        %v1428 = vld [vmem:[%s1387 + $0xf0] sm:$0xff]
        %v1429 = vld [vmem:[%s1387 + $0xf8] sm:$0xf]
        %v1430 = vld [vmem:[%s1387 + $0xfc] sm:$0xff]
        %v1431 = vld [vmem:[%s1387 + $0x104] sm:$0xf]
        %v1432 = vld [vmem:[%s1387 + $0x108] sm:$0xff]
        %v1433 = vld [vmem:[%s1387 + $0x110] sm:$0xf]
        %v1434 = vld [vmem:[%s1387 + $0x114] sm:$0xff]
        %v1435 = vld [vmem:[%s1387 + $0x11c] sm:$0xf]
        %v1436 = vld [vmem:[%s1387 + $0x120] sm:$0xff]
        %v1437 = vld [vmem:[%s1387 + $0x128] sm:$0xf]
        %v1438 = vld [vmem:[%s1387 + $0x12c] sm:$0xff]
        %v1439 = vld [vmem:[%s1387 + $0x134] sm:$0xf]
        %v1440 = vld [vmem:[%s1387 + $0x138] sm:$0xff]
        %v1441 = vld [vmem:[%s1387 + $0x140] sm:$0xf]
        %v1442 = vld [vmem:[%s1387 + $0x144] sm:$0xff]
        %v1443 = vld [vmem:[%s1387 + $0x14c] sm:$0xf]
        %v1444 = vld [vmem:[%s1387 + $0x150] sm:$0xff]
        %v1445 = vld [vmem:[%s1387 + $0x158] sm:$0xf]
        %v1446 = vld [vmem:[%s1387 + $0x15c] sm:$0xff]
        %v1447 = vld [vmem:[%s1387 + $0x164] sm:$0xf]
        %v1448 = vld [vmem:[%s1387 + $0x168] sm:$0xff]
        %v1449 = vld [vmem:[%s1387 + $0x170] sm:$0xf]
        %v1450 = vld [vmem:[%s1387 + $0x174] sm:$0xff]
        %v1451 = vld [vmem:[%s1387 + $0x17c] sm:$0xf]
        %s1452 = scalar_lea.vmem [#allocation9], 192
        %v1453 = vld [vmem:[%s1452] sm:$0xf]
        %v1454 = vld [vmem:[%s1452 + $0x4] sm:$0xf]
        %v1455 = vld [vmem:[%s1452 + $0x8] sm:$0xf]
        %v1456 = vld [vmem:[%s1452 + $0xc] sm:$0xf]
        %v1457 = vld [vmem:[%s1452 + $0x10] sm:$0xf]
        %v1458 = vld [vmem:[%s1452 + $0x14] sm:$0xf]
        %v1459 = vld [vmem:[%s1452 + $0x18] sm:$0xf]
        %v1460 = vld [vmem:[%s1452 + $0x1c] sm:$0xf]
        %v1461 = vld [vmem:[%s1452 + $0x20] sm:$0xf]
        %v1462 = vld [vmem:[%s1452 + $0x24] sm:$0xf]
        %v1463 = vld [vmem:[%s1452 + $0x28] sm:$0xf]
        %v1464 = vld [vmem:[%s1452 + $0x2c] sm:$0xf]
        %v1465 = vld [vmem:[%s1452 + $0x30] sm:$0xf]
        %v1466 = vld [vmem:[%s1452 + $0x34] sm:$0xf]
        %v1467 = vld [vmem:[%s1452 + $0x38] sm:$0xf]
        %v1468 = vld [vmem:[%s1452 + $0x3c] sm:$0xf]
        %v1469 = vld [vmem:[%s1452 + $0x40] sm:$0xf]
        %v1470 = vld [vmem:[%s1452 + $0x44] sm:$0xf]
        %v1471 = vld [vmem:[%s1452 + $0x48] sm:$0xf]
        %v1472 = vld [vmem:[%s1452 + $0x4c] sm:$0xf]
        %v1473 = vld [vmem:[%s1452 + $0x50] sm:$0xf]
        %v1474 = vld [vmem:[%s1452 + $0x54] sm:$0xf]
        %v1475 = vld [vmem:[%s1452 + $0x58] sm:$0xf]
        %v1476 = vld [vmem:[%s1452 + $0x5c] sm:$0xf]
        %v1477 = vld [vmem:[%s1452 + $0x60] sm:$0xf]
        %v1478 = vld [vmem:[%s1452 + $0x64] sm:$0xf]
        %v1479 = vld [vmem:[%s1452 + $0x68] sm:$0xf]
        %v1480 = vld [vmem:[%s1452 + $0x6c] sm:$0xf]
        %v1481 = vld [vmem:[%s1452 + $0x70] sm:$0xf]
        %v1482 = vld [vmem:[%s1452 + $0x74] sm:$0xf]
        %v1483 = vld [vmem:[%s1452 + $0x78] sm:$0xf]
        %v1484 = vld [vmem:[%s1452 + $0x7c] sm:$0xf]
        %v1485 = vld [vmem:[%s1452 + $0x80] sm:$0xf]
        %v1486 = vld [vmem:[%s1452 + $0x84] sm:$0xf]
        %v1487 = vld [vmem:[%s1452 + $0x88] sm:$0xf]
        %v1488 = vld [vmem:[%s1452 + $0x8c] sm:$0xf]
        %v1489 = vld [vmem:[%s1452 + $0x90] sm:$0xf]
        %v1490 = vld [vmem:[%s1452 + $0x94] sm:$0xf]
        %v1491 = vld [vmem:[%s1452 + $0x98] sm:$0xf]
        %v1492 = vld [vmem:[%s1452 + $0x9c] sm:$0xf]
        %v1493 = vld [vmem:[%s1452 + $0xa0] sm:$0xf]
        %v1494 = vld [vmem:[%s1452 + $0xa4] sm:$0xf]
        %v1495 = vld [vmem:[%s1452 + $0xa8] sm:$0xf]
        %v1496 = vld [vmem:[%s1452 + $0xac] sm:$0xf]
        %v1497 = vld [vmem:[%s1452 + $0xb0] sm:$0xf]
        %v1498 = vld [vmem:[%s1452 + $0xb4] sm:$0xf]
        %v1499 = vld [vmem:[%s1452 + $0xb8] sm:$0xf]
        %v1500 = vld [vmem:[%s1452 + $0xbc] sm:$0xf]
        %v1565 = vunpack.c.l.b16 %v1388
        %v1566 = vunpack.c.h.b16 %v1388
        %v1567 = vunpack.c.l.b16 %v1389
        %v1568 = vunpack.c.l.b16 %v1390
        %v1569 = vunpack.c.h.b16 %v1390
        %v1570 = vunpack.c.l.b16 %v1391
        %v1571 = vunpack.c.l.b16 %v1392
        %v1572 = vunpack.c.h.b16 %v1392
        %v1573 = vunpack.c.l.b16 %v1393
        %v1574 = vunpack.c.l.b16 %v1394
        %v1575 = vunpack.c.h.b16 %v1394
        %v1576 = vunpack.c.l.b16 %v1395
        %v1577 = vunpack.c.l.b16 %v1396
        %v1578 = vunpack.c.h.b16 %v1396
        %v1579 = vunpack.c.l.b16 %v1397
        %v1580 = vunpack.c.l.b16 %v1398
        %v1581 = vunpack.c.h.b16 %v1398
        %v1582 = vunpack.c.l.b16 %v1399
        %v1583 = vunpack.c.l.b16 %v1400
        %v1584 = vunpack.c.h.b16 %v1400
        %v1585 = vunpack.c.l.b16 %v1401
        %v1586 = vunpack.c.l.b16 %v1402
        %v1587 = vunpack.c.h.b16 %v1402
        %v1588 = vunpack.c.l.b16 %v1403
        %v1589 = vunpack.c.l.b16 %v1404
        %v1590 = vunpack.c.h.b16 %v1404
        %v1591 = vunpack.c.l.b16 %v1405
        %v1592 = vunpack.c.l.b16 %v1406
        %v1593 = vunpack.c.h.b16 %v1406
        %v1594 = vunpack.c.l.b16 %v1407
        %v1595 = vunpack.c.l.b16 %v1408
        %v1596 = vunpack.c.h.b16 %v1408
        %v1597 = vunpack.c.l.b16 %v1409
        %v1598 = vunpack.c.l.b16 %v1410
        %v1599 = vunpack.c.h.b16 %v1410
        %v1600 = vunpack.c.l.b16 %v1411
        %v1601 = vunpack.c.l.b16 %v1412
        %v1602 = vunpack.c.h.b16 %v1412
        %v1603 = vunpack.c.l.b16 %v1413
        %v1604 = vunpack.c.l.b16 %v1414
        %v1605 = vunpack.c.h.b16 %v1414
        %v1606 = vunpack.c.l.b16 %v1415
        %v1607 = vunpack.c.l.b16 %v1416
        %v1608 = vunpack.c.h.b16 %v1416
        %v1609 = vunpack.c.l.b16 %v1417
        %v1610 = vunpack.c.l.b16 %v1418
        %v1611 = vunpack.c.h.b16 %v1418
        %v1612 = vunpack.c.l.b16 %v1419
        %v1613 = vunpack.c.l.b16 %v1420
        %v1614 = vunpack.c.h.b16 %v1420
        %v1615 = vunpack.c.l.b16 %v1421
        %v1616 = vunpack.c.l.b16 %v1422
        %v1617 = vunpack.c.h.b16 %v1422
        %v1618 = vunpack.c.l.b16 %v1423
        %v1619 = vunpack.c.l.b16 %v1424
        %v1620 = vunpack.c.h.b16 %v1424
        %v1621 = vunpack.c.l.b16 %v1425
        %v1622 = vunpack.c.l.b16 %v1426
        %v1623 = vunpack.c.h.b16 %v1426
        %v1624 = vunpack.c.l.b16 %v1427
        %v1625 = vunpack.c.l.b16 %v1428
        %v1626 = vunpack.c.h.b16 %v1428
        %v1627 = vunpack.c.l.b16 %v1429
        %v1628 = vunpack.c.l.b16 %v1430
        %v1629 = vunpack.c.h.b16 %v1430
        %v1630 = vunpack.c.l.b16 %v1431
        %v1631 = vunpack.c.l.b16 %v1432
        %v1632 = vunpack.c.h.b16 %v1432
        %v1633 = vunpack.c.l.b16 %v1433
        %v1634 = vunpack.c.l.b16 %v1434
        %v1635 = vunpack.c.h.b16 %v1434
        %v1636 = vunpack.c.l.b16 %v1435
        %v1637 = vunpack.c.l.b16 %v1436
        %v1638 = vunpack.c.h.b16 %v1436
        %v1639 = vunpack.c.l.b16 %v1437
        %v1640 = vunpack.c.l.b16 %v1438
        %v1641 = vunpack.c.h.b16 %v1438
        %v1642 = vunpack.c.l.b16 %v1439
        %v1643 = vunpack.c.l.b16 %v1440
        %v1644 = vunpack.c.h.b16 %v1440
        %v1645 = vunpack.c.l.b16 %v1441
        %v1646 = vunpack.c.l.b16 %v1442
        %v1647 = vunpack.c.h.b16 %v1442
        %v1648 = vunpack.c.l.b16 %v1443
        %v1649 = vunpack.c.l.b16 %v1444
        %v1650 = vunpack.c.h.b16 %v1444
        %v1651 = vunpack.c.l.b16 %v1445
        %v1652 = vunpack.c.l.b16 %v1446
        %v1653 = vunpack.c.h.b16 %v1446
        %v1654 = vunpack.c.l.b16 %v1447
        %v1655 = vunpack.c.l.b16 %v1448
        %v1656 = vunpack.c.h.b16 %v1448
        %v1657 = vunpack.c.l.b16 %v1449
        %v1658 = vunpack.c.l.b16 %v1450
        %v1659 = vunpack.c.h.b16 %v1450
        %v1660 = vunpack.c.l.b16 %v1451
        %v1661 = vpack.c.b16 %v1568, %v1565
        %v1662 = vpack.c.b16 %v1569, %v1566
        %v1663 = vpack.c.b16 %v1570, %v1567
        %v1664 = vpack.c.b16 %v1574, %v1571
        %v1665 = vpack.c.b16 %v1575, %v1572
        %v1666 = vpack.c.b16 %v1576, %v1573
        %v1667 = vpack.c.b16 %v1580, %v1577
        %v1668 = vpack.c.b16 %v1581, %v1578
        %v1669 = vpack.c.b16 %v1582, %v1579
        %v1670 = vpack.c.b16 %v1586, %v1583
        %v1671 = vpack.c.b16 %v1587, %v1584
        %v1672 = vpack.c.b16 %v1588, %v1585
        %v1673 = vpack.c.b16 %v1592, %v1589
        %v1674 = vpack.c.b16 %v1593, %v1590
        %v1675 = vpack.c.b16 %v1594, %v1591
        %v1676 = vpack.c.b16 %v1598, %v1595
        %v1677 = vpack.c.b16 %v1599, %v1596
        %v1678 = vpack.c.b16 %v1600, %v1597
        %v1679 = vpack.c.b16 %v1604, %v1601
        %v1680 = vpack.c.b16 %v1605, %v1602
        %v1681 = vpack.c.b16 %v1606, %v1603
        %v1682 = vpack.c.b16 %v1610, %v1607
        %v1683 = vpack.c.b16 %v1611, %v1608
        %v1684 = vpack.c.b16 %v1612, %v1609
        %v1685 = vpack.c.b16 %v1616, %v1613
        %v1686 = vpack.c.b16 %v1617, %v1614
        %v1687 = vpack.c.b16 %v1618, %v1615
        %v1688 = vpack.c.b16 %v1622, %v1619
        %v1689 = vpack.c.b16 %v1623, %v1620
        %v1690 = vpack.c.b16 %v1624, %v1621
        %v1691 = vpack.c.b16 %v1628, %v1625
        %v1692 = vpack.c.b16 %v1629, %v1626
        %v1693 = vpack.c.b16 %v1630, %v1627
        %v1694 = vpack.c.b16 %v1634, %v1631
        %v1695 = vpack.c.b16 %v1635, %v1632
        %v1696 = vpack.c.b16 %v1636, %v1633
        %v1697 = vpack.c.b16 %v1640, %v1637
        %v1698 = vpack.c.b16 %v1641, %v1638
        %v1699 = vpack.c.b16 %v1642, %v1639
        %v1700 = vpack.c.b16 %v1646, %v1643
        %v1701 = vpack.c.b16 %v1647, %v1644
        %v1702 = vpack.c.b16 %v1648, %v1645
        %v1703 = vpack.c.b16 %v1652, %v1649
        %v1704 = vpack.c.b16 %v1653, %v1650
        %v1705 = vpack.c.b16 %v1654, %v1651
        %v1706 = vpack.c.b16 %v1658, %v1655
        %v1707 = vpack.c.b16 %v1659, %v1656
        %v1708 = vpack.c.b16 %v1660, %v1657
        %v1805 = vunpack.c.l.b16 %v1453
        %v1806 = vunpack.c.l.b16 %v1454
        %v1807 = vunpack.c.l.b16 %v1455
        %v1808 = vunpack.c.l.b16 %v1456
        %v1809 = vunpack.c.l.b16 %v1457
        %v1810 = vunpack.c.l.b16 %v1458
        %v1811 = vunpack.c.l.b16 %v1459
        %v1812 = vunpack.c.l.b16 %v1460
        %v1813 = vunpack.c.l.b16 %v1461
        %v1814 = vunpack.c.l.b16 %v1462
        %v1815 = vunpack.c.l.b16 %v1463
        %v1816 = vunpack.c.l.b16 %v1464
        %v1817 = vunpack.c.l.b16 %v1465
        %v1818 = vunpack.c.l.b16 %v1466
        %v1819 = vunpack.c.l.b16 %v1467
        %v1820 = vunpack.c.l.b16 %v1468
        %v1821 = vunpack.c.l.b16 %v1469
        %v1822 = vunpack.c.l.b16 %v1470
        %v1823 = vunpack.c.l.b16 %v1471
        %v1824 = vunpack.c.l.b16 %v1472
        %v1825 = vunpack.c.l.b16 %v1473
        %v1826 = vunpack.c.l.b16 %v1474
        %v1827 = vunpack.c.l.b16 %v1475
        %v1828 = vunpack.c.l.b16 %v1476
        %v1829 = vunpack.c.l.b16 %v1477
        %v1830 = vunpack.c.l.b16 %v1478
        %v1831 = vunpack.c.l.b16 %v1479
        %v1832 = vunpack.c.l.b16 %v1480
        %v1833 = vunpack.c.l.b16 %v1481
        %v1834 = vunpack.c.l.b16 %v1482
        %v1835 = vunpack.c.l.b16 %v1483
        %v1836 = vunpack.c.l.b16 %v1484
        %v1837 = vunpack.c.l.b16 %v1485
        %v1838 = vunpack.c.l.b16 %v1486
        %v1839 = vunpack.c.l.b16 %v1487
        %v1840 = vunpack.c.l.b16 %v1488
        %v1841 = vunpack.c.l.b16 %v1489
        %v1842 = vunpack.c.l.b16 %v1490
        %v1843 = vunpack.c.l.b16 %v1491
        %v1844 = vunpack.c.l.b16 %v1492
        %v1845 = vunpack.c.l.b16 %v1493
        %v1846 = vunpack.c.l.b16 %v1494
        %v1847 = vunpack.c.l.b16 %v1495
        %v1848 = vunpack.c.l.b16 %v1496
        %v1849 = vunpack.c.l.b16 %v1497
        %v1850 = vunpack.c.l.b16 %v1498
        %v1851 = vunpack.c.l.b16 %v1499
        %v1852 = vunpack.c.l.b16 %v1500
        %v1853 = vpack.c.b16 %v1806, %v1805
        %v1854 = vpack.c.b16 %v1808, %v1807
        %v1855 = vpack.c.b16 %v1810, %v1809
        %v1856 = vpack.c.b16 %v1812, %v1811
        %v1857 = vpack.c.b16 %v1814, %v1813
        %v1858 = vpack.c.b16 %v1816, %v1815
        %v1859 = vpack.c.b16 %v1818, %v1817
        %v1860 = vpack.c.b16 %v1820, %v1819
        %v1861 = vpack.c.b16 %v1822, %v1821
        %v1862 = vpack.c.b16 %v1824, %v1823
        %v1863 = vpack.c.b16 %v1826, %v1825
        %v1864 = vpack.c.b16 %v1828, %v1827
        %v1865 = vpack.c.b16 %v1830, %v1829
        %v1866 = vpack.c.b16 %v1832, %v1831
        %v1867 = vpack.c.b16 %v1834, %v1833
        %v1868 = vpack.c.b16 %v1836, %v1835
        %v1869 = vpack.c.b16 %v1838, %v1837
        %v1870 = vpack.c.b16 %v1840, %v1839
        %v1871 = vpack.c.b16 %v1842, %v1841
        %v1872 = vpack.c.b16 %v1844, %v1843
        %v1873 = vpack.c.b16 %v1846, %v1845
        %v1874 = vpack.c.b16 %v1848, %v1847
        %v1875 = vpack.c.b16 %v1850, %v1849
        %v1876 = vpack.c.b16 %v1852, %v1851
        %1901 = vmatprep.subr.bf16.mxu0 0
        %1902 = vmatpush1.bf16.msra.mxu0 %v1860
        %1903 = vmatprep.subr.bf16.mxu0 0
        %1904 = vmatpush1.bf16.msra.mxu0 %v1859
        %1905 = vmatprep.subr.bf16.mxu0 0
        %1906 = vmatpush1.bf16.msra.mxu0 %v1858
        %1907 = vmatprep.subr.bf16.mxu0 0
        %1908 = vmatpush1.bf16.msra.mxu0 %v1857
        %1909 = vmatprep.subr.bf16.mxu0 0
        %1910 = vmatpush1.bf16.msra.mxu0 %v1856
        %1911 = vmatprep.subr.bf16.mxu0 0
        %1912 = vmatpush1.bf16.msra.mxu0 %v1855
        %1913 = vmatprep.subr.bf16.mxu0 0
        %1914 = vmatpush1.bf16.msra.mxu0 %v1854
        %1915 = vmatprep.subr.bf16.mxu0 0
        %1916 = vmatpush1.bf16.msra.mxu0 %v1853
        %1917 = vmatprep.subr.bf16.mxu0 0
        %1918 = vmatpush2.bf16.msra.mxu0 %v1868
        %1919 = vmatprep.subr.bf16.mxu0 0
        %1920 = vmatpush2.bf16.msra.mxu0 %v1867
        %1921 = vmatprep.subr.bf16.mxu0 0
        %1922 = vmatpush2.bf16.msra.mxu0 %v1866
        %1923 = vmatprep.subr.bf16.mxu0 0
        %1924 = vmatpush2.bf16.msra.mxu0 %v1865
        %1925 = vmatprep.subr.bf16.mxu0 0
        %1926 = vmatpush2.bf16.msra.mxu0 %v1864
        %1927 = vmatprep.subr.bf16.mxu0 0
        %1928 = vmatpush2.bf16.msra.mxu0 %v1863
        %1929 = vmatprep.subr.bf16.mxu0 0
        %1930 = vmatpush2.bf16.msra.mxu0 %v1862
        %1931 = vmatprep.subr.bf16.mxu0 0
        %1932 = vmatpush2.bf16.msra.mxu0 %v1861
        %1933 = vmatprep.mubr.bf16.mxu0 %v1662
        %1934 = vmatmul.mubr.bf16.gmra.mxu0 %v1661
        %v1935 = vpop.f32.mrf.mxu0
        %v1936 = vadd.f32 0.0, %v1935
        %v1937 = vpop.f32.mrf.mxu0
        %v1938 = vpop.f32.mrf.mxu0
        %v1939 = vadd.f32 0.0, %v1938
        %v1940 = vpop.f32.mrf.mxu0
        %1941 = vmatprep.mubr.bf16.mxu0 %v1665
        %1942 = vmatmul.mubr.bf16.gmra.mxu0 %v1664
        %v1943 = vpop.f32.mrf.mxu0
        %v1944 = vadd.f32 0.0, %v1943
        %v1945 = vpop.f32.mrf.mxu0
        %v1946 = vpop.f32.mrf.mxu0
        %v1947 = vadd.f32 0.0, %v1946
        %v1948 = vpop.f32.mrf.mxu0
        %1949 = vmatprep.mubr.bf16.mxu0 %v1668
        %1950 = vmatmul.mubr.bf16.gmra.mxu0 %v1667
        %v1951 = vpop.f32.mrf.mxu0
        %v1952 = vadd.f32 0.0, %v1951
        %v1953 = vpop.f32.mrf.mxu0
        %v1954 = vpop.f32.mrf.mxu0
        %v1955 = vadd.f32 0.0, %v1954
        %v1956 = vpop.f32.mrf.mxu0
        %1957 = vmatprep.mubr.bf16.mxu0 %v1671
        %1958 = vmatmul.mubr.bf16.gmra.mxu0 %v1670
        %v1959 = vpop.f32.mrf.mxu0
        %v1960 = vadd.f32 0.0, %v1959
        %v1961 = vpop.f32.mrf.mxu0
        %v1962 = vpop.f32.mrf.mxu0
        %v1963 = vadd.f32 0.0, %v1962
        %v1964 = vpop.f32.mrf.mxu0
        %1965 = vmatprep.mubr.bf16.mxu0 %v1674
        %1966 = vmatmul.mubr.bf16.gmra.mxu0 %v1673
        %v1967 = vpop.f32.mrf.mxu0
        %v1968 = vadd.f32 0.0, %v1967
        %v1969 = vpop.f32.mrf.mxu0
        %v1970 = vpop.f32.mrf.mxu0
        %v1971 = vadd.f32 0.0, %v1970
        %v1972 = vpop.f32.mrf.mxu0
        %1973 = vmatprep.mubr.bf16.mxu0 %v1677
        %1974 = vmatmul.mubr.bf16.gmra.mxu0 %v1676
        %v1975 = vpop.f32.mrf.mxu0
        %v1976 = vadd.f32 0.0, %v1975
        %v1977 = vpop.f32.mrf.mxu0
        %v1978 = vpop.f32.mrf.mxu0
        %v1979 = vadd.f32 0.0, %v1978
        %v1980 = vpop.f32.mrf.mxu0
        %1981 = vmatprep.mubr.bf16.mxu0 %v1680
        %1982 = vmatmul.mubr.bf16.gmra.mxu0 %v1679
        %v1983 = vpop.f32.mrf.mxu0
        %v1984 = vadd.f32 0.0, %v1983
        %v1985 = vpop.f32.mrf.mxu0
        %v1986 = vpop.f32.mrf.mxu0
        %v1987 = vadd.f32 0.0, %v1986
        %v1988 = vpop.f32.mrf.mxu0
        %1989 = vmatprep.mubr.bf16.mxu0 %v1683
        %1990 = vmatmul.mubr.bf16.gmra.mxu0 %v1682
        %v1991 = vpop.f32.mrf.mxu0
        %v1992 = vadd.f32 0.0, %v1991
        %v1993 = vpop.f32.mrf.mxu0
        %v1994 = vpop.f32.mrf.mxu0
        %v1995 = vadd.f32 0.0, %v1994
        %v1996 = vpop.f32.mrf.mxu0
        %1997 = vmatprep.mubr.bf16.mxu0 %v1686
        %1998 = vmatmul.mubr.bf16.gmra.mxu0 %v1685
        %v1999 = vpop.f32.mrf.mxu0
        %v2000 = vadd.f32 0.0, %v1999
        %v2001 = vpop.f32.mrf.mxu0
        %v2002 = vpop.f32.mrf.mxu0
        %v2003 = vadd.f32 0.0, %v2002
        %v2004 = vpop.f32.mrf.mxu0
        %2005 = vmatprep.mubr.bf16.mxu0 %v1689
        %2006 = vmatmul.mubr.bf16.gmra.mxu0 %v1688
        %v2007 = vpop.f32.mrf.mxu0
        %v2008 = vadd.f32 0.0, %v2007
        %v2009 = vpop.f32.mrf.mxu0
        %v2010 = vpop.f32.mrf.mxu0
        %v2011 = vadd.f32 0.0, %v2010
        %v2012 = vpop.f32.mrf.mxu0
        %2013 = vmatprep.mubr.bf16.mxu0 %v1692
        %2014 = vmatmul.mubr.bf16.gmra.mxu0 %v1691
        %v2015 = vpop.f32.mrf.mxu0
        %v2016 = vadd.f32 0.0, %v2015
        %v2017 = vpop.f32.mrf.mxu0
        %v2018 = vpop.f32.mrf.mxu0
        %v2019 = vadd.f32 0.0, %v2018
        %v2020 = vpop.f32.mrf.mxu0
        %2021 = vmatprep.mubr.bf16.mxu0 %v1695
        %2022 = vmatmul.mubr.bf16.gmra.mxu0 %v1694
        %v2023 = vpop.f32.mrf.mxu0
        %v2024 = vadd.f32 0.0, %v2023
        %v2025 = vpop.f32.mrf.mxu0
        %v2026 = vpop.f32.mrf.mxu0
        %v2027 = vadd.f32 0.0, %v2026
        %v2028 = vpop.f32.mrf.mxu0
        %2029 = vmatprep.mubr.bf16.mxu0 %v1698
        %2030 = vmatmul.mubr.bf16.gmra.mxu0 %v1697
        %v2031 = vpop.f32.mrf.mxu0
        %v2032 = vadd.f32 0.0, %v2031
        %v2033 = vpop.f32.mrf.mxu0
        %v2034 = vpop.f32.mrf.mxu0
        %v2035 = vadd.f32 0.0, %v2034
        %v2036 = vpop.f32.mrf.mxu0
        %2037 = vmatprep.mubr.bf16.mxu0 %v1701
        %2038 = vmatmul.mubr.bf16.gmra.mxu0 %v1700
        %v2039 = vpop.f32.mrf.mxu0
        %v2040 = vadd.f32 0.0, %v2039
        %v2041 = vpop.f32.mrf.mxu0
        %v2042 = vpop.f32.mrf.mxu0
        %v2043 = vadd.f32 0.0, %v2042
        %v2044 = vpop.f32.mrf.mxu0
        %2045 = vmatprep.mubr.bf16.mxu0 %v1704
        %2046 = vmatmul.mubr.bf16.gmra.mxu0 %v1703
        %v2047 = vpop.f32.mrf.mxu0
        %v2048 = vadd.f32 0.0, %v2047
        %v2049 = vpop.f32.mrf.mxu0
        %v2050 = vpop.f32.mrf.mxu0
        %v2051 = vadd.f32 0.0, %v2050
        %v2052 = vpop.f32.mrf.mxu0
        %2053 = vmatprep.mubr.bf16.mxu0 %v1707
        %2054 = vmatmul.mubr.bf16.gmra.mxu0 %v1706
        %v2055 = vpop.f32.mrf.mxu0
        %v2056 = vadd.f32 0.0, %v2055
        %v2057 = vpop.f32.mrf.mxu0
        %v2058 = vpop.f32.mrf.mxu0
        %v2059 = vadd.f32 0.0, %v2058
        %v2060 = vpop.f32.mrf.mxu0
        %2061 = vdwg.mxu0
        %2062 = vmatprep.subr.bf16.mxu0 0
        %2063 = vmatpush1.bf16.msra.mxu0 %v1876
        %2064 = vmatprep.subr.bf16.mxu0 0
        %2065 = vmatpush1.bf16.msra.mxu0 %v1875
        %2066 = vmatprep.subr.bf16.mxu0 0
        %2067 = vmatpush1.bf16.msra.mxu0 %v1874
        %2068 = vmatprep.subr.bf16.mxu0 0
        %2069 = vmatpush1.bf16.msra.mxu0 %v1873
        %2070 = vmatprep.subr.bf16.mxu0 0
        %2071 = vmatpush1.bf16.msra.mxu0 %v1872
        %2072 = vmatprep.subr.bf16.mxu0 0
        %2073 = vmatpush1.bf16.msra.mxu0 %v1871
        %2074 = vmatprep.subr.bf16.mxu0 0
        %2075 = vmatpush1.bf16.msra.mxu0 %v1870
        %2076 = vmatprep.subr.bf16.mxu0 0
        %2077 = vmatpush1.bf16.msra.mxu0 %v1869
        %2078 = vmatprep.subr.bf16.mxu0 0
        %2079 = vmatpush2.bf16.msra.mxu0 0
        %2080 = vmatprep.subr.bf16.mxu0 0
        %2081 = vmatpush2.bf16.msra.mxu0 0
        %2082 = vmatprep.subr.bf16.mxu0 0
        %2083 = vmatpush2.bf16.msra.mxu0 0
        %2084 = vmatprep.subr.bf16.mxu0 0
        %2085 = vmatpush2.bf16.msra.mxu0 0
        %2086 = vmatprep.subr.bf16.mxu0 0
        %2087 = vmatpush2.bf16.msra.mxu0 0
        %2088 = vmatprep.subr.bf16.mxu0 0
        %2089 = vmatpush2.bf16.msra.mxu0 0
        %2090 = vmatprep.subr.bf16.mxu0 0
        %2091 = vmatpush2.bf16.msra.mxu0 0
        %2092 = vmatprep.subr.bf16.mxu0 0
        %2093 = vmatpush2.bf16.msra.mxu0 0
        %2094 = vmatprep.mubr.bf16.mxu0 0
        %2095 = vmatmul.mubr.bf16.gmra.mxu0 %v1663
        %v2096 = vpop.f32.mrf.mxu0
        %v2097 = vadd.f32 %v1936, %v2096
        %v2098 = vpop.f32.mrf.mxu0
        %v2099 = vpop.f32.mrf.mxu0
        %v2100 = vadd.f32 %v1939, %v2099
        %v2101 = vpop.f32.mrf.mxu0
        %2102 = vmatprep.mubr.bf16.mxu0 0
        %2103 = vmatmul.mubr.bf16.gmra.mxu0 %v1666
        %v2104 = vpop.f32.mrf.mxu0
        %v2105 = vadd.f32 %v1944, %v2104
        %v2106 = vpop.f32.mrf.mxu0
        %v2107 = vpop.f32.mrf.mxu0
        %v2108 = vadd.f32 %v1947, %v2107
        %v2109 = vpop.f32.mrf.mxu0
        %2110 = vmatprep.mubr.bf16.mxu0 0
        %2111 = vmatmul.mubr.bf16.gmra.mxu0 %v1669
        %v2112 = vpop.f32.mrf.mxu0
        %v2113 = vadd.f32 %v1952, %v2112
        %v2114 = vpop.f32.mrf.mxu0
        %v2115 = vpop.f32.mrf.mxu0
        %v2116 = vadd.f32 %v1955, %v2115
        %v2117 = vpop.f32.mrf.mxu0
        %2118 = vmatprep.mubr.bf16.mxu0 0
        %2119 = vmatmul.mubr.bf16.gmra.mxu0 %v1672
        %v2120 = vpop.f32.mrf.mxu0
        %v2121 = vadd.f32 %v1960, %v2120
        %v2122 = vpop.f32.mrf.mxu0
        %v2123 = vpop.f32.mrf.mxu0
        %v2124 = vadd.f32 %v1963, %v2123
        %v2125 = vpop.f32.mrf.mxu0
        %2126 = vmatprep.mubr.bf16.mxu0 0
        %2127 = vmatmul.mubr.bf16.gmra.mxu0 %v1675
        %v2128 = vpop.f32.mrf.mxu0
        %v2129 = vadd.f32 %v1968, %v2128
        %v2130 = vpop.f32.mrf.mxu0
        %v2131 = vpop.f32.mrf.mxu0
        %v2132 = vadd.f32 %v1971, %v2131
        %v2133 = vpop.f32.mrf.mxu0
        %2134 = vmatprep.mubr.bf16.mxu0 0
        %2135 = vmatmul.mubr.bf16.gmra.mxu0 %v1678
        %v2136 = vpop.f32.mrf.mxu0
        %v2137 = vadd.f32 %v1976, %v2136
        %v2138 = vpop.f32.mrf.mxu0
        %v2139 = vpop.f32.mrf.mxu0
        %v2140 = vadd.f32 %v1979, %v2139
        %v2141 = vpop.f32.mrf.mxu0
        %2142 = vmatprep.mubr.bf16.mxu0 0
        %2143 = vmatmul.mubr.bf16.gmra.mxu0 %v1681
        %v2144 = vpop.f32.mrf.mxu0
        %v2145 = vadd.f32 %v1984, %v2144
        %v2146 = vpop.f32.mrf.mxu0
        %v2147 = vpop.f32.mrf.mxu0
        %v2148 = vadd.f32 %v1987, %v2147
        %v2149 = vpop.f32.mrf.mxu0
        %2150 = vmatprep.mubr.bf16.mxu0 0
        %2151 = vmatmul.mubr.bf16.gmra.mxu0 %v1684
        %v2152 = vpop.f32.mrf.mxu0
        %v2153 = vadd.f32 %v1992, %v2152
        %v2154 = vpop.f32.mrf.mxu0
        %v2155 = vpop.f32.mrf.mxu0
        %v2156 = vadd.f32 %v1995, %v2155
        %v2157 = vpop.f32.mrf.mxu0
        %2158 = vmatprep.mubr.bf16.mxu0 0
        %2159 = vmatmul.mubr.bf16.gmra.mxu0 %v1687
        %v2160 = vpop.f32.mrf.mxu0
        %v2161 = vadd.f32 %v2000, %v2160
        %v2162 = vpop.f32.mrf.mxu0
        %v2163 = vpop.f32.mrf.mxu0
        %v2164 = vadd.f32 %v2003, %v2163
        %v2165 = vpop.f32.mrf.mxu0
        %2166 = vmatprep.mubr.bf16.mxu0 0
        %2167 = vmatmul.mubr.bf16.gmra.mxu0 %v1690
        %v2168 = vpop.f32.mrf.mxu0
        %v2169 = vadd.f32 %v2008, %v2168
        %v2170 = vpop.f32.mrf.mxu0
        %v2171 = vpop.f32.mrf.mxu0
        %v2172 = vadd.f32 %v2011, %v2171
        %v2173 = vpop.f32.mrf.mxu0
        %2174 = vmatprep.mubr.bf16.mxu0 0
        %2175 = vmatmul.mubr.bf16.gmra.mxu0 %v1693
        %v2176 = vpop.f32.mrf.mxu0
        %v2177 = vadd.f32 %v2016, %v2176
        %v2178 = vpop.f32.mrf.mxu0
        %v2179 = vpop.f32.mrf.mxu0
        %v2180 = vadd.f32 %v2019, %v2179
        %v2181 = vpop.f32.mrf.mxu0
        %2182 = vmatprep.mubr.bf16.mxu0 0
        %2183 = vmatmul.mubr.bf16.gmra.mxu0 %v1696
        %v2184 = vpop.f32.mrf.mxu0
        %v2185 = vadd.f32 %v2024, %v2184
        %v2186 = vpop.f32.mrf.mxu0
        %v2187 = vpop.f32.mrf.mxu0
        %v2188 = vadd.f32 %v2027, %v2187
        %v2189 = vpop.f32.mrf.mxu0
        %2190 = vmatprep.mubr.bf16.mxu0 0
        %2191 = vmatmul.mubr.bf16.gmra.mxu0 %v1699
        %v2192 = vpop.f32.mrf.mxu0
        %v2193 = vadd.f32 %v2032, %v2192
        %v2194 = vpop.f32.mrf.mxu0
        %v2195 = vpop.f32.mrf.mxu0
        %v2196 = vadd.f32 %v2035, %v2195
        %v2197 = vpop.f32.mrf.mxu0
        %2198 = vmatprep.mubr.bf16.mxu0 0
        %2199 = vmatmul.mubr.bf16.gmra.mxu0 %v1702
        %v2200 = vpop.f32.mrf.mxu0
        %v2201 = vadd.f32 %v2040, %v2200
        %v2202 = vpop.f32.mrf.mxu0
        %v2203 = vpop.f32.mrf.mxu0
        %v2204 = vadd.f32 %v2043, %v2203
        %v2205 = vpop.f32.mrf.mxu0
        %2206 = vmatprep.mubr.bf16.mxu0 0
        %2207 = vmatmul.mubr.bf16.gmra.mxu0 %v1705
        %v2208 = vpop.f32.mrf.mxu0
        %v2209 = vadd.f32 %v2048, %v2208
        %v2210 = vpop.f32.mrf.mxu0
        %v2211 = vpop.f32.mrf.mxu0
        %v2212 = vadd.f32 %v2051, %v2211
        %v2213 = vpop.f32.mrf.mxu0
        %2214 = vmatprep.mubr.bf16.mxu0 0
        %2215 = vmatmul.mubr.bf16.gmra.mxu0 %v1708
        %v2216 = vpop.f32.mrf.mxu0
        %v2217 = vadd.f32 %v2056, %v2216
        %v2218 = vpop.f32.mrf.mxu0
        %v2219 = vpop.f32.mrf.mxu0
        %v2220 = vadd.f32 %v2059, %v2219
        %v2221 = vpop.f32.mrf.mxu0
        %2222 = vdwg.mxu0
        %v2223 = vld [vmem:[#allocation3] sm:$0xff]
        %v2224 = vld [vmem:[#allocation3 + $0x8] sm:$0xff]
        %v2225 = vld [vmem:[#allocation3 + $0x10] sm:$0xff]
        %v2226 = vld [vmem:[#allocation3 + $0x18] sm:$0xff]
        %v2227 = vld [vmem:[#allocation3 + $0x20] sm:$0xff]
        %v2228 = vld [vmem:[#allocation3 + $0x28] sm:$0xff]
        %v2229 = vld [vmem:[#allocation3 + $0x30] sm:$0xff]
        %v2230 = vld [vmem:[#allocation3 + $0x38] sm:$0xff]
        %v2231 = vld [vmem:[#allocation3 + $0x40] sm:$0xff]
        %v2232 = vld [vmem:[#allocation3 + $0x48] sm:$0xff]
        %v2233 = vld [vmem:[#allocation3 + $0x50] sm:$0xff]
        %v2234 = vld [vmem:[#allocation3 + $0x58] sm:$0xff]
        %v2235 = vld [vmem:[#allocation3 + $0x60] sm:$0xff]
        %v2236 = vld [vmem:[#allocation3 + $0x68] sm:$0xff]
        %v2237 = vld [vmem:[#allocation3 + $0x70] sm:$0xff]
        %v2238 = vld [vmem:[#allocation3 + $0x78] sm:$0xff]
        %v2239 = vld [vmem:[#allocation3 + $0x80] sm:$0xff]
        %v2240 = vld [vmem:[#allocation3 + $0x88] sm:$0xff]
        %v2241 = vld [vmem:[#allocation3 + $0x90] sm:$0xff]
        %v2242 = vld [vmem:[#allocation3 + $0x98] sm:$0xff]
        %v2243 = vld [vmem:[#allocation3 + $0xa0] sm:$0xff]
        %v2244 = vld [vmem:[#allocation3 + $0xa8] sm:$0xff]
        %v2245 = vld [vmem:[#allocation3 + $0xb0] sm:$0xff]
        %v2246 = vld [vmem:[#allocation3 + $0xb8] sm:$0xff]
        %v2247 = vld [vmem:[#allocation3 + $0xc0] sm:$0xff]
        %v2248 = vld [vmem:[#allocation3 + $0xc8] sm:$0xff]
        %v2249 = vld [vmem:[#allocation3 + $0xd0] sm:$0xff]
        %v2250 = vld [vmem:[#allocation3 + $0xd8] sm:$0xff]
        %v2251 = vld [vmem:[#allocation3 + $0xe0] sm:$0xff]
        %v2252 = vld [vmem:[#allocation3 + $0xe8] sm:$0xff]
        %v2253 = vld [vmem:[#allocation3 + $0xf0] sm:$0xff]
        %v2254 = vld [vmem:[#allocation3 + $0xf8] sm:$0xff]
        %v2255 = vadd.f32 %v2223, %v2097
        %v2256 = vadd.f32 %v2224, %v2100
        %v2257 = vadd.f32 %v2225, %v2105
        %v2258 = vadd.f32 %v2226, %v2108
        %v2259 = vadd.f32 %v2227, %v2113
        %v2260 = vadd.f32 %v2228, %v2116
        %v2261 = vadd.f32 %v2229, %v2121
        %v2262 = vadd.f32 %v2230, %v2124
        %v2263 = vadd.f32 %v2231, %v2129
        %v2264 = vadd.f32 %v2232, %v2132
        %v2265 = vadd.f32 %v2233, %v2137
        %v2266 = vadd.f32 %v2234, %v2140
        %v2267 = vadd.f32 %v2235, %v2145
        %v2268 = vadd.f32 %v2236, %v2148
        %v2269 = vadd.f32 %v2237, %v2153
        %v2270 = vadd.f32 %v2238, %v2156
        %v2271 = vadd.f32 %v2239, %v2161
        %v2272 = vadd.f32 %v2240, %v2164
        %v2273 = vadd.f32 %v2241, %v2169
        %v2274 = vadd.f32 %v2242, %v2172
        %v2275 = vadd.f32 %v2243, %v2177
        %v2276 = vadd.f32 %v2244, %v2180
        %v2277 = vadd.f32 %v2245, %v2185
        %v2278 = vadd.f32 %v2246, %v2188
        %v2279 = vadd.f32 %v2247, %v2193
        %v2280 = vadd.f32 %v2248, %v2196
        %v2281 = vadd.f32 %v2249, %v2201
        %v2282 = vadd.f32 %v2250, %v2204
        %v2283 = vadd.f32 %v2251, %v2209
        %v2284 = vadd.f32 %v2252, %v2212
        %v2285 = vadd.f32 %v2253, %v2217
        %v2286 = vadd.f32 %v2254, %v2220
        %2287 = vst [vmem:[#allocation3] sm:$0xff] %v2255
        %2288 = vst [vmem:[#allocation3 + $0x8] sm:$0xff] %v2256
        %2289 = vst [vmem:[#allocation3 + $0x10] sm:$0xff] %v2257
        %2290 = vst [vmem:[#allocation3 + $0x18] sm:$0xff] %v2258
        %2291 = vst [vmem:[#allocation3 + $0x20] sm:$0xff] %v2259
        %2292 = vst [vmem:[#allocation3 + $0x28] sm:$0xff] %v2260
        %2293 = vst [vmem:[#allocation3 + $0x30] sm:$0xff] %v2261
        %2294 = vst [vmem:[#allocation3 + $0x38] sm:$0xff] %v2262
        %2295 = vst [vmem:[#allocation3 + $0x40] sm:$0xff] %v2263
        %2296 = vst [vmem:[#allocation3 + $0x48] sm:$0xff] %v2264
        %2297 = vst [vmem:[#allocation3 + $0x50] sm:$0xff] %v2265
        %2298 = vst [vmem:[#allocation3 + $0x58] sm:$0xff] %v2266
        %2299 = vst [vmem:[#allocation3 + $0x60] sm:$0xff] %v2267
        %2300 = vst [vmem:[#allocation3 + $0x68] sm:$0xff] %v2268
        %2301 = vst [vmem:[#allocation3 + $0x70] sm:$0xff] %v2269
        %2302 = vst [vmem:[#allocation3 + $0x78] sm:$0xff] %v2270
        %2303 = vst [vmem:[#allocation3 + $0x80] sm:$0xff] %v2271
        %2304 = vst [vmem:[#allocation3 + $0x88] sm:$0xff] %v2272
        %2305 = vst [vmem:[#allocation3 + $0x90] sm:$0xff] %v2273
        %2306 = vst [vmem:[#allocation3 + $0x98] sm:$0xff] %v2274
        %2307 = vst [vmem:[#allocation3 + $0xa0] sm:$0xff] %v2275
        %2308 = vst [vmem:[#allocation3 + $0xa8] sm:$0xff] %v2276
        %2309 = vst [vmem:[#allocation3 + $0xb0] sm:$0xff] %v2277
        %2310 = vst [vmem:[#allocation3 + $0xb8] sm:$0xff] %v2278
        %2311 = vst [vmem:[#allocation3 + $0xc0] sm:$0xff] %v2279
        %2312 = vst [vmem:[#allocation3 + $0xc8] sm:$0xff] %v2280
        %2313 = vst [vmem:[#allocation3 + $0xd0] sm:$0xff] %v2281
        %2314 = vst [vmem:[#allocation3 + $0xd8] sm:$0xff] %v2282
        %2315 = vst [vmem:[#allocation3 + $0xe0] sm:$0xff] %v2283
        %2316 = vst [vmem:[#allocation3 + $0xe8] sm:$0xff] %v2284
        %2317 = vst [vmem:[#allocation3 + $0xf0] sm:$0xff] %v2285
        %2318 = vst [vmem:[#allocation3 + $0xf8] sm:$0xff] %v2286
        %v2319 = vld [vmem:[%s502] sm:$0xff]
        %v2320 = vld [vmem:[%s502 + $0x8] sm:$0xf]
        %v2321 = vld [vmem:[%s502 + $0xc] sm:$0xff]
        %v2322 = vld [vmem:[%s502 + $0x14] sm:$0xf]
        %v2323 = vld [vmem:[%s502 + $0x18] sm:$0xff]
        %v2324 = vld [vmem:[%s502 + $0x20] sm:$0xf]
        %v2325 = vld [vmem:[%s502 + $0x24] sm:$0xff]
        %v2326 = vld [vmem:[%s502 + $0x2c] sm:$0xf]
        %v2327 = vld [vmem:[%s502 + $0x30] sm:$0xff]
        %v2328 = vld [vmem:[%s502 + $0x38] sm:$0xf]
        %v2329 = vld [vmem:[%s502 + $0x3c] sm:$0xff]
        %v2330 = vld [vmem:[%s502 + $0x44] sm:$0xf]
        %v2331 = vld [vmem:[%s502 + $0x48] sm:$0xff]
        %v2332 = vld [vmem:[%s502 + $0x50] sm:$0xf]
        %v2333 = vld [vmem:[%s502 + $0x54] sm:$0xff]
        %v2334 = vld [vmem:[%s502 + $0x5c] sm:$0xf]
        %v2335 = vld [vmem:[%s502 + $0x60] sm:$0xff]
        %v2336 = vld [vmem:[%s502 + $0x68] sm:$0xf]
        %v2337 = vld [vmem:[%s502 + $0x6c] sm:$0xff]
        %v2338 = vld [vmem:[%s502 + $0x74] sm:$0xf]
        %v2339 = vld [vmem:[%s502 + $0x78] sm:$0xff]
        %v2340 = vld [vmem:[%s502 + $0x80] sm:$0xf]
        %v2341 = vld [vmem:[%s502 + $0x84] sm:$0xff]
        %v2342 = vld [vmem:[%s502 + $0x8c] sm:$0xf]
        %v2343 = vld [vmem:[%s502 + $0x90] sm:$0xff]
        %v2344 = vld [vmem:[%s502 + $0x98] sm:$0xf]
        %v2345 = vld [vmem:[%s502 + $0x9c] sm:$0xff]
        %v2346 = vld [vmem:[%s502 + $0xa4] sm:$0xf]
        %v2347 = vld [vmem:[%s502 + $0xa8] sm:$0xff]
        %v2348 = vld [vmem:[%s502 + $0xb0] sm:$0xf]
        %v2349 = vld [vmem:[%s502 + $0xb4] sm:$0xff]
        %v2350 = vld [vmem:[%s502 + $0xbc] sm:$0xf]
        %v2351 = vld [vmem:[%s502 + $0xc0] sm:$0xff]
        %v2352 = vld [vmem:[%s502 + $0xc8] sm:$0xf]
        %v2353 = vld [vmem:[%s502 + $0xcc] sm:$0xff]
        %v2354 = vld [vmem:[%s502 + $0xd4] sm:$0xf]
        %v2355 = vld [vmem:[%s502 + $0xd8] sm:$0xff]
        %v2356 = vld [vmem:[%s502 + $0xe0] sm:$0xf]
        %v2357 = vld [vmem:[%s502 + $0xe4] sm:$0xff]
        %v2358 = vld [vmem:[%s502 + $0xec] sm:$0xf]
        %v2359 = vld [vmem:[%s502 + $0xf0] sm:$0xff]
        %v2360 = vld [vmem:[%s502 + $0xf8] sm:$0xf]
        %v2361 = vld [vmem:[%s502 + $0xfc] sm:$0xff]
        %v2362 = vld [vmem:[%s502 + $0x104] sm:$0xf]
        %v2363 = vld [vmem:[%s502 + $0x108] sm:$0xff]
        %v2364 = vld [vmem:[%s502 + $0x110] sm:$0xf]
        %v2365 = vld [vmem:[%s502 + $0x114] sm:$0xff]
        %v2366 = vld [vmem:[%s502 + $0x11c] sm:$0xf]
        %v2367 = vld [vmem:[%s502 + $0x120] sm:$0xff]
        %v2368 = vld [vmem:[%s502 + $0x128] sm:$0xf]
        %v2369 = vld [vmem:[%s502 + $0x12c] sm:$0xff]
        %v2370 = vld [vmem:[%s502 + $0x134] sm:$0xf]
        %v2371 = vld [vmem:[%s502 + $0x138] sm:$0xff]
        %v2372 = vld [vmem:[%s502 + $0x140] sm:$0xf]
        %v2373 = vld [vmem:[%s502 + $0x144] sm:$0xff]
        %v2374 = vld [vmem:[%s502 + $0x14c] sm:$0xf]
        %v2375 = vld [vmem:[%s502 + $0x150] sm:$0xff]
        %v2376 = vld [vmem:[%s502 + $0x158] sm:$0xf]
        %v2377 = vld [vmem:[%s502 + $0x15c] sm:$0xff]
        %v2378 = vld [vmem:[%s502 + $0x164] sm:$0xf]
        %v2379 = vld [vmem:[%s502 + $0x168] sm:$0xff]
        %v2380 = vld [vmem:[%s502 + $0x170] sm:$0xf]
        %v2381 = vld [vmem:[%s502 + $0x174] sm:$0xff]
        %v2382 = vld [vmem:[%s502 + $0x17c] sm:$0xf]
        %s2383 = scalar_lea.vmem [#allocation9], 384
        %v2384 = vld [vmem:[%s2383] sm:$0xf]
        %v2385 = vld [vmem:[%s2383 + $0x4] sm:$0xf]
        %v2386 = vld [vmem:[%s2383 + $0x8] sm:$0xf]
        %v2387 = vld [vmem:[%s2383 + $0xc] sm:$0xf]
        %v2388 = vld [vmem:[%s2383 + $0x10] sm:$0xf]
        %v2389 = vld [vmem:[%s2383 + $0x14] sm:$0xf]
        %v2390 = vld [vmem:[%s2383 + $0x18] sm:$0xf]
        %v2391 = vld [vmem:[%s2383 + $0x1c] sm:$0xf]
        %v2392 = vld [vmem:[%s2383 + $0x20] sm:$0xf]
        %v2393 = vld [vmem:[%s2383 + $0x24] sm:$0xf]
        %v2394 = vld [vmem:[%s2383 + $0x28] sm:$0xf]
        %v2395 = vld [vmem:[%s2383 + $0x2c] sm:$0xf]
        %v2396 = vld [vmem:[%s2383 + $0x30] sm:$0xf]
        %v2397 = vld [vmem:[%s2383 + $0x34] sm:$0xf]
        %v2398 = vld [vmem:[%s2383 + $0x38] sm:$0xf]
        %v2399 = vld [vmem:[%s2383 + $0x3c] sm:$0xf]
        %v2400 = vld [vmem:[%s2383 + $0x40] sm:$0xf]
        %v2401 = vld [vmem:[%s2383 + $0x44] sm:$0xf]
        %v2402 = vld [vmem:[%s2383 + $0x48] sm:$0xf]
        %v2403 = vld [vmem:[%s2383 + $0x4c] sm:$0xf]
        %v2404 = vld [vmem:[%s2383 + $0x50] sm:$0xf]
        %v2405 = vld [vmem:[%s2383 + $0x54] sm:$0xf]
        %v2406 = vld [vmem:[%s2383 + $0x58] sm:$0xf]
        %v2407 = vld [vmem:[%s2383 + $0x5c] sm:$0xf]
        %v2408 = vld [vmem:[%s2383 + $0x60] sm:$0xf]
        %v2409 = vld [vmem:[%s2383 + $0x64] sm:$0xf]
        %v2410 = vld [vmem:[%s2383 + $0x68] sm:$0xf]
        %v2411 = vld [vmem:[%s2383 + $0x6c] sm:$0xf]
        %v2412 = vld [vmem:[%s2383 + $0x70] sm:$0xf]
        %v2413 = vld [vmem:[%s2383 + $0x74] sm:$0xf]
        %v2414 = vld [vmem:[%s2383 + $0x78] sm:$0xf]
        %v2415 = vld [vmem:[%s2383 + $0x7c] sm:$0xf]
        %v2416 = vld [vmem:[%s2383 + $0x80] sm:$0xf]
        %v2417 = vld [vmem:[%s2383 + $0x84] sm:$0xf]
        %v2418 = vld [vmem:[%s2383 + $0x88] sm:$0xf]
        %v2419 = vld [vmem:[%s2383 + $0x8c] sm:$0xf]
        %v2420 = vld [vmem:[%s2383 + $0x90] sm:$0xf]
        %v2421 = vld [vmem:[%s2383 + $0x94] sm:$0xf]
        %v2422 = vld [vmem:[%s2383 + $0x98] sm:$0xf]
        %v2423 = vld [vmem:[%s2383 + $0x9c] sm:$0xf]
        %v2424 = vld [vmem:[%s2383 + $0xa0] sm:$0xf]
        %v2425 = vld [vmem:[%s2383 + $0xa4] sm:$0xf]
        %v2426 = vld [vmem:[%s2383 + $0xa8] sm:$0xf]
        %v2427 = vld [vmem:[%s2383 + $0xac] sm:$0xf]
        %v2428 = vld [vmem:[%s2383 + $0xb0] sm:$0xf]
        %v2429 = vld [vmem:[%s2383 + $0xb4] sm:$0xf]
        %v2430 = vld [vmem:[%s2383 + $0xb8] sm:$0xf]
        %v2431 = vld [vmem:[%s2383 + $0xbc] sm:$0xf]
        %v2496 = vunpack.c.l.b16 %v2319
        %v2497 = vunpack.c.h.b16 %v2319
        %v2498 = vunpack.c.l.b16 %v2320
        %v2499 = vunpack.c.l.b16 %v2321
        %v2500 = vunpack.c.h.b16 %v2321
        %v2501 = vunpack.c.l.b16 %v2322
        %v2502 = vunpack.c.l.b16 %v2323
        %v2503 = vunpack.c.h.b16 %v2323
        %v2504 = vunpack.c.l.b16 %v2324
        %v2505 = vunpack.c.l.b16 %v2325
        %v2506 = vunpack.c.h.b16 %v2325
        %v2507 = vunpack.c.l.b16 %v2326
        %v2508 = vunpack.c.l.b16 %v2327
        %v2509 = vunpack.c.h.b16 %v2327
        %v2510 = vunpack.c.l.b16 %v2328
        %v2511 = vunpack.c.l.b16 %v2329
        %v2512 = vunpack.c.h.b16 %v2329
        %v2513 = vunpack.c.l.b16 %v2330
        %v2514 = vunpack.c.l.b16 %v2331
        %v2515 = vunpack.c.h.b16 %v2331
        %v2516 = vunpack.c.l.b16 %v2332
        %v2517 = vunpack.c.l.b16 %v2333
        %v2518 = vunpack.c.h.b16 %v2333
        %v2519 = vunpack.c.l.b16 %v2334
        %v2520 = vunpack.c.l.b16 %v2335
        %v2521 = vunpack.c.h.b16 %v2335
        %v2522 = vunpack.c.l.b16 %v2336
        %v2523 = vunpack.c.l.b16 %v2337
        %v2524 = vunpack.c.h.b16 %v2337
        %v2525 = vunpack.c.l.b16 %v2338
        %v2526 = vunpack.c.l.b16 %v2339
        %v2527 = vunpack.c.h.b16 %v2339
        %v2528 = vunpack.c.l.b16 %v2340
        %v2529 = vunpack.c.l.b16 %v2341
        %v2530 = vunpack.c.h.b16 %v2341
        %v2531 = vunpack.c.l.b16 %v2342
        %v2532 = vunpack.c.l.b16 %v2343
        %v2533 = vunpack.c.h.b16 %v2343
        %v2534 = vunpack.c.l.b16 %v2344
        %v2535 = vunpack.c.l.b16 %v2345
        %v2536 = vunpack.c.h.b16 %v2345
        %v2537 = vunpack.c.l.b16 %v2346
        %v2538 = vunpack.c.l.b16 %v2347
        %v2539 = vunpack.c.h.b16 %v2347
        %v2540 = vunpack.c.l.b16 %v2348
        %v2541 = vunpack.c.l.b16 %v2349
        %v2542 = vunpack.c.h.b16 %v2349
        %v2543 = vunpack.c.l.b16 %v2350
        %v2544 = vunpack.c.l.b16 %v2351
        %v2545 = vunpack.c.h.b16 %v2351
        %v2546 = vunpack.c.l.b16 %v2352
        %v2547 = vunpack.c.l.b16 %v2353
        %v2548 = vunpack.c.h.b16 %v2353
        %v2549 = vunpack.c.l.b16 %v2354
        %v2550 = vunpack.c.l.b16 %v2355
        %v2551 = vunpack.c.h.b16 %v2355
        %v2552 = vunpack.c.l.b16 %v2356
        %v2553 = vunpack.c.l.b16 %v2357
        %v2554 = vunpack.c.h.b16 %v2357
        %v2555 = vunpack.c.l.b16 %v2358
        %v2556 = vunpack.c.l.b16 %v2359
        %v2557 = vunpack.c.h.b16 %v2359
        %v2558 = vunpack.c.l.b16 %v2360
        %v2559 = vunpack.c.l.b16 %v2361
        %v2560 = vunpack.c.h.b16 %v2361
        %v2561 = vunpack.c.l.b16 %v2362
        %v2562 = vunpack.c.l.b16 %v2363
        %v2563 = vunpack.c.h.b16 %v2363
        %v2564 = vunpack.c.l.b16 %v2364
        %v2565 = vunpack.c.l.b16 %v2365
        %v2566 = vunpack.c.h.b16 %v2365
        %v2567 = vunpack.c.l.b16 %v2366
        %v2568 = vunpack.c.l.b16 %v2367
        %v2569 = vunpack.c.h.b16 %v2367
        %v2570 = vunpack.c.l.b16 %v2368
        %v2571 = vunpack.c.l.b16 %v2369
        %v2572 = vunpack.c.h.b16 %v2369
        %v2573 = vunpack.c.l.b16 %v2370
        %v2574 = vunpack.c.l.b16 %v2371
        %v2575 = vunpack.c.h.b16 %v2371
        %v2576 = vunpack.c.l.b16 %v2372
        %v2577 = vunpack.c.l.b16 %v2373
        %v2578 = vunpack.c.h.b16 %v2373
        %v2579 = vunpack.c.l.b16 %v2374
        %v2580 = vunpack.c.l.b16 %v2375
        %v2581 = vunpack.c.h.b16 %v2375
        %v2582 = vunpack.c.l.b16 %v2376
        %v2583 = vunpack.c.l.b16 %v2377
        %v2584 = vunpack.c.h.b16 %v2377
        %v2585 = vunpack.c.l.b16 %v2378
        %v2586 = vunpack.c.l.b16 %v2379
        %v2587 = vunpack.c.h.b16 %v2379
        %v2588 = vunpack.c.l.b16 %v2380
        %v2589 = vunpack.c.l.b16 %v2381
        %v2590 = vunpack.c.h.b16 %v2381
        %v2591 = vunpack.c.l.b16 %v2382
        %v2592 = vpack.c.b16 %v2499, %v2496
        %v2593 = vpack.c.b16 %v2500, %v2497
        %v2594 = vpack.c.b16 %v2501, %v2498
        %v2595 = vpack.c.b16 %v2505, %v2502
        %v2596 = vpack.c.b16 %v2506, %v2503
        %v2597 = vpack.c.b16 %v2507, %v2504
        %v2598 = vpack.c.b16 %v2511, %v2508
        %v2599 = vpack.c.b16 %v2512, %v2509
        %v2600 = vpack.c.b16 %v2513, %v2510
        %v2601 = vpack.c.b16 %v2517, %v2514
        %v2602 = vpack.c.b16 %v2518, %v2515
        %v2603 = vpack.c.b16 %v2519, %v2516
        %v2604 = vpack.c.b16 %v2523, %v2520
        %v2605 = vpack.c.b16 %v2524, %v2521
        %v2606 = vpack.c.b16 %v2525, %v2522
        %v2607 = vpack.c.b16 %v2529, %v2526
        %v2608 = vpack.c.b16 %v2530, %v2527
        %v2609 = vpack.c.b16 %v2531, %v2528
        %v2610 = vpack.c.b16 %v2535, %v2532
        %v2611 = vpack.c.b16 %v2536, %v2533
        %v2612 = vpack.c.b16 %v2537, %v2534
        %v2613 = vpack.c.b16 %v2541, %v2538
        %v2614 = vpack.c.b16 %v2542, %v2539
        %v2615 = vpack.c.b16 %v2543, %v2540
        %v2616 = vpack.c.b16 %v2547, %v2544
        %v2617 = vpack.c.b16 %v2548, %v2545
        %v2618 = vpack.c.b16 %v2549, %v2546
        %v2619 = vpack.c.b16 %v2553, %v2550
        %v2620 = vpack.c.b16 %v2554, %v2551
        %v2621 = vpack.c.b16 %v2555, %v2552
        %v2622 = vpack.c.b16 %v2559, %v2556
        %v2623 = vpack.c.b16 %v2560, %v2557
        %v2624 = vpack.c.b16 %v2561, %v2558
        %v2625 = vpack.c.b16 %v2565, %v2562
        %v2626 = vpack.c.b16 %v2566, %v2563
        %v2627 = vpack.c.b16 %v2567, %v2564
        %v2628 = vpack.c.b16 %v2571, %v2568
        %v2629 = vpack.c.b16 %v2572, %v2569
        %v2630 = vpack.c.b16 %v2573, %v2570
        %v2631 = vpack.c.b16 %v2577, %v2574
        %v2632 = vpack.c.b16 %v2578, %v2575
        %v2633 = vpack.c.b16 %v2579, %v2576
        %v2634 = vpack.c.b16 %v2583, %v2580
        %v2635 = vpack.c.b16 %v2584, %v2581
        %v2636 = vpack.c.b16 %v2585, %v2582
        %v2637 = vpack.c.b16 %v2589, %v2586
        %v2638 = vpack.c.b16 %v2590, %v2587
        %v2639 = vpack.c.b16 %v2591, %v2588
        %v2736 = vunpack.c.l.b16 %v2384
        %v2737 = vunpack.c.l.b16 %v2385
        %v2738 = vunpack.c.l.b16 %v2386
        %v2739 = vunpack.c.l.b16 %v2387
        %v2740 = vunpack.c.l.b16 %v2388
        %v2741 = vunpack.c.l.b16 %v2389
        %v2742 = vunpack.c.l.b16 %v2390
        %v2743 = vunpack.c.l.b16 %v2391
        %v2744 = vunpack.c.l.b16 %v2392
        %v2745 = vunpack.c.l.b16 %v2393
        %v2746 = vunpack.c.l.b16 %v2394
        %v2747 = vunpack.c.l.b16 %v2395
        %v2748 = vunpack.c.l.b16 %v2396
        %v2749 = vunpack.c.l.b16 %v2397
        %v2750 = vunpack.c.l.b16 %v2398
        %v2751 = vunpack.c.l.b16 %v2399
        %v2752 = vunpack.c.l.b16 %v2400
        %v2753 = vunpack.c.l.b16 %v2401
        %v2754 = vunpack.c.l.b16 %v2402
        %v2755 = vunpack.c.l.b16 %v2403
        %v2756 = vunpack.c.l.b16 %v2404
        %v2757 = vunpack.c.l.b16 %v2405
        %v2758 = vunpack.c.l.b16 %v2406
        %v2759 = vunpack.c.l.b16 %v2407
        %v2760 = vunpack.c.l.b16 %v2408
        %v2761 = vunpack.c.l.b16 %v2409
        %v2762 = vunpack.c.l.b16 %v2410
        %v2763 = vunpack.c.l.b16 %v2411
        %v2764 = vunpack.c.l.b16 %v2412
        %v2765 = vunpack.c.l.b16 %v2413
        %v2766 = vunpack.c.l.b16 %v2414
        %v2767 = vunpack.c.l.b16 %v2415
        %v2768 = vunpack.c.l.b16 %v2416
        %v2769 = vunpack.c.l.b16 %v2417
        %v2770 = vunpack.c.l.b16 %v2418
        %v2771 = vunpack.c.l.b16 %v2419
        %v2772 = vunpack.c.l.b16 %v2420
        %v2773 = vunpack.c.l.b16 %v2421
        %v2774 = vunpack.c.l.b16 %v2422
        %v2775 = vunpack.c.l.b16 %v2423
        %v2776 = vunpack.c.l.b16 %v2424
        %v2777 = vunpack.c.l.b16 %v2425
        %v2778 = vunpack.c.l.b16 %v2426
        %v2779 = vunpack.c.l.b16 %v2427
        %v2780 = vunpack.c.l.b16 %v2428
        %v2781 = vunpack.c.l.b16 %v2429
        %v2782 = vunpack.c.l.b16 %v2430
        %v2783 = vunpack.c.l.b16 %v2431
        %v2784 = vpack.c.b16 %v2737, %v2736
        %v2785 = vpack.c.b16 %v2739, %v2738
        %v2786 = vpack.c.b16 %v2741, %v2740
        %v2787 = vpack.c.b16 %v2743, %v2742
        %v2788 = vpack.c.b16 %v2745, %v2744
        %v2789 = vpack.c.b16 %v2747, %v2746
        %v2790 = vpack.c.b16 %v2749, %v2748
        %v2791 = vpack.c.b16 %v2751, %v2750
        %v2792 = vpack.c.b16 %v2753, %v2752
        %v2793 = vpack.c.b16 %v2755, %v2754
        %v2794 = vpack.c.b16 %v2757, %v2756
        %v2795 = vpack.c.b16 %v2759, %v2758
        %v2796 = vpack.c.b16 %v2761, %v2760
        %v2797 = vpack.c.b16 %v2763, %v2762
        %v2798 = vpack.c.b16 %v2765, %v2764
        %v2799 = vpack.c.b16 %v2767, %v2766
        %v2800 = vpack.c.b16 %v2769, %v2768
        %v2801 = vpack.c.b16 %v2771, %v2770
        %v2802 = vpack.c.b16 %v2773, %v2772
        %v2803 = vpack.c.b16 %v2775, %v2774
        %v2804 = vpack.c.b16 %v2777, %v2776
        %v2805 = vpack.c.b16 %v2779, %v2778
        %v2806 = vpack.c.b16 %v2781, %v2780
        %v2807 = vpack.c.b16 %v2783, %v2782
        %2832 = vmatprep.subr.bf16.mxu0 0
        %2833 = vmatpush1.bf16.msra.mxu0 %v2791
        %2834 = vmatprep.subr.bf16.mxu0 0
        %2835 = vmatpush1.bf16.msra.mxu0 %v2790
        %2836 = vmatprep.subr.bf16.mxu0 0
        %2837 = vmatpush1.bf16.msra.mxu0 %v2789
        %2838 = vmatprep.subr.bf16.mxu0 0
        %2839 = vmatpush1.bf16.msra.mxu0 %v2788
        %2840 = vmatprep.subr.bf16.mxu0 0
        %2841 = vmatpush1.bf16.msra.mxu0 %v2787
        %2842 = vmatprep.subr.bf16.mxu0 0
        %2843 = vmatpush1.bf16.msra.mxu0 %v2786
        %2844 = vmatprep.subr.bf16.mxu0 0
        %2845 = vmatpush1.bf16.msra.mxu0 %v2785
        %2846 = vmatprep.subr.bf16.mxu0 0
        %2847 = vmatpush1.bf16.msra.mxu0 %v2784
        %2848 = vmatprep.subr.bf16.mxu0 0
        %2849 = vmatpush2.bf16.msra.mxu0 %v2799
        %2850 = vmatprep.subr.bf16.mxu0 0
        %2851 = vmatpush2.bf16.msra.mxu0 %v2798
        %2852 = vmatprep.subr.bf16.mxu0 0
        %2853 = vmatpush2.bf16.msra.mxu0 %v2797
        %2854 = vmatprep.subr.bf16.mxu0 0
        %2855 = vmatpush2.bf16.msra.mxu0 %v2796
        %2856 = vmatprep.subr.bf16.mxu0 0
        %2857 = vmatpush2.bf16.msra.mxu0 %v2795
        %2858 = vmatprep.subr.bf16.mxu0 0
        %2859 = vmatpush2.bf16.msra.mxu0 %v2794
        %2860 = vmatprep.subr.bf16.mxu0 0
        %2861 = vmatpush2.bf16.msra.mxu0 %v2793
        %2862 = vmatprep.subr.bf16.mxu0 0
        %2863 = vmatpush2.bf16.msra.mxu0 %v2792
        %2864 = vmatprep.mubr.bf16.mxu0 %v2593
        %2865 = vmatmul.mubr.bf16.gmra.mxu0 %v2592
        %v2866 = vpop.f32.mrf.mxu0
        %v2867 = vadd.f32 0.0, %v2866
        %v2868 = vpop.f32.mrf.mxu0
        %v2869 = vpop.f32.mrf.mxu0
        %v2870 = vadd.f32 0.0, %v2869
        %v2871 = vpop.f32.mrf.mxu0
        %2872 = vmatprep.mubr.bf16.mxu0 %v2596
        %2873 = vmatmul.mubr.bf16.gmra.mxu0 %v2595
        %v2874 = vpop.f32.mrf.mxu0
        %v2875 = vadd.f32 0.0, %v2874
        %v2876 = vpop.f32.mrf.mxu0
        %v2877 = vpop.f32.mrf.mxu0
        %v2878 = vadd.f32 0.0, %v2877
        %v2879 = vpop.f32.mrf.mxu0
        %2880 = vmatprep.mubr.bf16.mxu0 %v2599
        %2881 = vmatmul.mubr.bf16.gmra.mxu0 %v2598
        %v2882 = vpop.f32.mrf.mxu0
        %v2883 = vadd.f32 0.0, %v2882
        %v2884 = vpop.f32.mrf.mxu0
        %v2885 = vpop.f32.mrf.mxu0
        %v2886 = vadd.f32 0.0, %v2885
        %v2887 = vpop.f32.mrf.mxu0
        %2888 = vmatprep.mubr.bf16.mxu0 %v2602
        %2889 = vmatmul.mubr.bf16.gmra.mxu0 %v2601
        %v2890 = vpop.f32.mrf.mxu0
        %v2891 = vadd.f32 0.0, %v2890
        %v2892 = vpop.f32.mrf.mxu0
        %v2893 = vpop.f32.mrf.mxu0
        %v2894 = vadd.f32 0.0, %v2893
        %v2895 = vpop.f32.mrf.mxu0
        %2896 = vmatprep.mubr.bf16.mxu0 %v2605
        %2897 = vmatmul.mubr.bf16.gmra.mxu0 %v2604
        %v2898 = vpop.f32.mrf.mxu0
        %v2899 = vadd.f32 0.0, %v2898
        %v2900 = vpop.f32.mrf.mxu0
        %v2901 = vpop.f32.mrf.mxu0
        %v2902 = vadd.f32 0.0, %v2901
        %v2903 = vpop.f32.mrf.mxu0
        %2904 = vmatprep.mubr.bf16.mxu0 %v2608
        %2905 = vmatmul.mubr.bf16.gmra.mxu0 %v2607
        %v2906 = vpop.f32.mrf.mxu0
        %v2907 = vadd.f32 0.0, %v2906
        %v2908 = vpop.f32.mrf.mxu0
        %v2909 = vpop.f32.mrf.mxu0
        %v2910 = vadd.f32 0.0, %v2909
        %v2911 = vpop.f32.mrf.mxu0
        %2912 = vmatprep.mubr.bf16.mxu0 %v2611
        %2913 = vmatmul.mubr.bf16.gmra.mxu0 %v2610
        %v2914 = vpop.f32.mrf.mxu0
        %v2915 = vadd.f32 0.0, %v2914
        %v2916 = vpop.f32.mrf.mxu0
        %v2917 = vpop.f32.mrf.mxu0
        %v2918 = vadd.f32 0.0, %v2917
        %v2919 = vpop.f32.mrf.mxu0
        %2920 = vmatprep.mubr.bf16.mxu0 %v2614
        %2921 = vmatmul.mubr.bf16.gmra.mxu0 %v2613
        %v2922 = vpop.f32.mrf.mxu0
        %v2923 = vadd.f32 0.0, %v2922
        %v2924 = vpop.f32.mrf.mxu0
        %v2925 = vpop.f32.mrf.mxu0
        %v2926 = vadd.f32 0.0, %v2925
        %v2927 = vpop.f32.mrf.mxu0
        %2928 = vmatprep.mubr.bf16.mxu0 %v2617
        %2929 = vmatmul.mubr.bf16.gmra.mxu0 %v2616
        %v2930 = vpop.f32.mrf.mxu0
        %v2931 = vadd.f32 0.0, %v2930
        %v2932 = vpop.f32.mrf.mxu0
        %v2933 = vpop.f32.mrf.mxu0
        %v2934 = vadd.f32 0.0, %v2933
        %v2935 = vpop.f32.mrf.mxu0
        %2936 = vmatprep.mubr.bf16.mxu0 %v2620
        %2937 = vmatmul.mubr.bf16.gmra.mxu0 %v2619
        %v2938 = vpop.f32.mrf.mxu0
        %v2939 = vadd.f32 0.0, %v2938
        %v2940 = vpop.f32.mrf.mxu0
        %v2941 = vpop.f32.mrf.mxu0
        %v2942 = vadd.f32 0.0, %v2941
        %v2943 = vpop.f32.mrf.mxu0
        %2944 = vmatprep.mubr.bf16.mxu0 %v2623
        %2945 = vmatmul.mubr.bf16.gmra.mxu0 %v2622
        %v2946 = vpop.f32.mrf.mxu0
        %v2947 = vadd.f32 0.0, %v2946
        %v2948 = vpop.f32.mrf.mxu0
        %v2949 = vpop.f32.mrf.mxu0
        %v2950 = vadd.f32 0.0, %v2949
        %v2951 = vpop.f32.mrf.mxu0
        %2952 = vmatprep.mubr.bf16.mxu0 %v2626
        %2953 = vmatmul.mubr.bf16.gmra.mxu0 %v2625
        %v2954 = vpop.f32.mrf.mxu0
        %v2955 = vadd.f32 0.0, %v2954
        %v2956 = vpop.f32.mrf.mxu0
        %v2957 = vpop.f32.mrf.mxu0
        %v2958 = vadd.f32 0.0, %v2957
        %v2959 = vpop.f32.mrf.mxu0
        %2960 = vmatprep.mubr.bf16.mxu0 %v2629
        %2961 = vmatmul.mubr.bf16.gmra.mxu0 %v2628
        %v2962 = vpop.f32.mrf.mxu0
        %v2963 = vadd.f32 0.0, %v2962
        %v2964 = vpop.f32.mrf.mxu0
        %v2965 = vpop.f32.mrf.mxu0
        %v2966 = vadd.f32 0.0, %v2965
        %v2967 = vpop.f32.mrf.mxu0
        %2968 = vmatprep.mubr.bf16.mxu0 %v2632
        %2969 = vmatmul.mubr.bf16.gmra.mxu0 %v2631
        %v2970 = vpop.f32.mrf.mxu0
        %v2971 = vadd.f32 0.0, %v2970
        %v2972 = vpop.f32.mrf.mxu0
        %v2973 = vpop.f32.mrf.mxu0
        %v2974 = vadd.f32 0.0, %v2973
        %v2975 = vpop.f32.mrf.mxu0
        %2976 = vmatprep.mubr.bf16.mxu0 %v2635
        %2977 = vmatmul.mubr.bf16.gmra.mxu0 %v2634
        %v2978 = vpop.f32.mrf.mxu0
        %v2979 = vadd.f32 0.0, %v2978
        %v2980 = vpop.f32.mrf.mxu0
        %v2981 = vpop.f32.mrf.mxu0
        %v2982 = vadd.f32 0.0, %v2981
        %v2983 = vpop.f32.mrf.mxu0
        %2984 = vmatprep.mubr.bf16.mxu0 %v2638
        %2985 = vmatmul.mubr.bf16.gmra.mxu0 %v2637
        %v2986 = vpop.f32.mrf.mxu0
        %v2987 = vadd.f32 0.0, %v2986
        %v2988 = vpop.f32.mrf.mxu0
        %v2989 = vpop.f32.mrf.mxu0
        %v2990 = vadd.f32 0.0, %v2989
        %v2991 = vpop.f32.mrf.mxu0
        %2992 = vdwg.mxu0
        %2993 = vmatprep.subr.bf16.mxu0 0
        %2994 = vmatpush1.bf16.msra.mxu0 %v2807
        %2995 = vmatprep.subr.bf16.mxu0 0
        %2996 = vmatpush1.bf16.msra.mxu0 %v2806
        %2997 = vmatprep.subr.bf16.mxu0 0
        %2998 = vmatpush1.bf16.msra.mxu0 %v2805
        %2999 = vmatprep.subr.bf16.mxu0 0
        %3000 = vmatpush1.bf16.msra.mxu0 %v2804
        %3001 = vmatprep.subr.bf16.mxu0 0
        %3002 = vmatpush1.bf16.msra.mxu0 %v2803
        %3003 = vmatprep.subr.bf16.mxu0 0
        %3004 = vmatpush1.bf16.msra.mxu0 %v2802
        %3005 = vmatprep.subr.bf16.mxu0 0
        %3006 = vmatpush1.bf16.msra.mxu0 %v2801
        %3007 = vmatprep.subr.bf16.mxu0 0
        %3008 = vmatpush1.bf16.msra.mxu0 %v2800
        %3009 = vmatprep.subr.bf16.mxu0 0
        %3010 = vmatpush2.bf16.msra.mxu0 0
        %3011 = vmatprep.subr.bf16.mxu0 0
        %3012 = vmatpush2.bf16.msra.mxu0 0
        %3013 = vmatprep.subr.bf16.mxu0 0
        %3014 = vmatpush2.bf16.msra.mxu0 0
        %3015 = vmatprep.subr.bf16.mxu0 0
        %3016 = vmatpush2.bf16.msra.mxu0 0
        %3017 = vmatprep.subr.bf16.mxu0 0
        %3018 = vmatpush2.bf16.msra.mxu0 0
        %3019 = vmatprep.subr.bf16.mxu0 0
        %3020 = vmatpush2.bf16.msra.mxu0 0
        %3021 = vmatprep.subr.bf16.mxu0 0
        %3022 = vmatpush2.bf16.msra.mxu0 0
        %3023 = vmatprep.subr.bf16.mxu0 0
        %3024 = vmatpush2.bf16.msra.mxu0 0
        %3025 = vmatprep.mubr.bf16.mxu0 0
        %3026 = vmatmul.mubr.bf16.gmra.mxu0 %v2594
        %v3027 = vpop.f32.mrf.mxu0
        %v3028 = vadd.f32 %v2867, %v3027
        %v3029 = vpop.f32.mrf.mxu0
        %v3030 = vpop.f32.mrf.mxu0
        %v3031 = vadd.f32 %v2870, %v3030
        %v3032 = vpop.f32.mrf.mxu0
        %3033 = vmatprep.mubr.bf16.mxu0 0
        %3034 = vmatmul.mubr.bf16.gmra.mxu0 %v2597
        %v3035 = vpop.f32.mrf.mxu0
        %v3036 = vadd.f32 %v2875, %v3035
        %v3037 = vpop.f32.mrf.mxu0
        %v3038 = vpop.f32.mrf.mxu0
        %v3039 = vadd.f32 %v2878, %v3038
        %v3040 = vpop.f32.mrf.mxu0
        %3041 = vmatprep.mubr.bf16.mxu0 0
        %3042 = vmatmul.mubr.bf16.gmra.mxu0 %v2600
        %v3043 = vpop.f32.mrf.mxu0
        %v3044 = vadd.f32 %v2883, %v3043
        %v3045 = vpop.f32.mrf.mxu0
        %v3046 = vpop.f32.mrf.mxu0
        %v3047 = vadd.f32 %v2886, %v3046
        %v3048 = vpop.f32.mrf.mxu0
        %3049 = vmatprep.mubr.bf16.mxu0 0
        %3050 = vmatmul.mubr.bf16.gmra.mxu0 %v2603
        %v3051 = vpop.f32.mrf.mxu0
        %v3052 = vadd.f32 %v2891, %v3051
        %v3053 = vpop.f32.mrf.mxu0
        %v3054 = vpop.f32.mrf.mxu0
        %v3055 = vadd.f32 %v2894, %v3054
        %v3056 = vpop.f32.mrf.mxu0
        %3057 = vmatprep.mubr.bf16.mxu0 0
        %3058 = vmatmul.mubr.bf16.gmra.mxu0 %v2606
        %v3059 = vpop.f32.mrf.mxu0
        %v3060 = vadd.f32 %v2899, %v3059
        %v3061 = vpop.f32.mrf.mxu0
        %v3062 = vpop.f32.mrf.mxu0
        %v3063 = vadd.f32 %v2902, %v3062
        %v3064 = vpop.f32.mrf.mxu0
        %3065 = vmatprep.mubr.bf16.mxu0 0
        %3066 = vmatmul.mubr.bf16.gmra.mxu0 %v2609
        %v3067 = vpop.f32.mrf.mxu0
        %v3068 = vadd.f32 %v2907, %v3067
        %v3069 = vpop.f32.mrf.mxu0
        %v3070 = vpop.f32.mrf.mxu0
        %v3071 = vadd.f32 %v2910, %v3070
        %v3072 = vpop.f32.mrf.mxu0
        %3073 = vmatprep.mubr.bf16.mxu0 0
        %3074 = vmatmul.mubr.bf16.gmra.mxu0 %v2612
        %v3075 = vpop.f32.mrf.mxu0
        %v3076 = vadd.f32 %v2915, %v3075
        %v3077 = vpop.f32.mrf.mxu0
        %v3078 = vpop.f32.mrf.mxu0
        %v3079 = vadd.f32 %v2918, %v3078
        %v3080 = vpop.f32.mrf.mxu0
        %3081 = vmatprep.mubr.bf16.mxu0 0
        %3082 = vmatmul.mubr.bf16.gmra.mxu0 %v2615
        %v3083 = vpop.f32.mrf.mxu0
        %v3084 = vadd.f32 %v2923, %v3083
        %v3085 = vpop.f32.mrf.mxu0
        %v3086 = vpop.f32.mrf.mxu0
        %v3087 = vadd.f32 %v2926, %v3086
        %v3088 = vpop.f32.mrf.mxu0
        %3089 = vmatprep.mubr.bf16.mxu0 0
        %3090 = vmatmul.mubr.bf16.gmra.mxu0 %v2618
        %v3091 = vpop.f32.mrf.mxu0
        %v3092 = vadd.f32 %v2931, %v3091
        %v3093 = vpop.f32.mrf.mxu0
        %v3094 = vpop.f32.mrf.mxu0
        %v3095 = vadd.f32 %v2934, %v3094
        %v3096 = vpop.f32.mrf.mxu0
        %3097 = vmatprep.mubr.bf16.mxu0 0
        %3098 = vmatmul.mubr.bf16.gmra.mxu0 %v2621
        %v3099 = vpop.f32.mrf.mxu0
        %v3100 = vadd.f32 %v2939, %v3099
        %v3101 = vpop.f32.mrf.mxu0
        %v3102 = vpop.f32.mrf.mxu0
        %v3103 = vadd.f32 %v2942, %v3102
        %v3104 = vpop.f32.mrf.mxu0
        %3105 = vmatprep.mubr.bf16.mxu0 0
        %3106 = vmatmul.mubr.bf16.gmra.mxu0 %v2624
        %v3107 = vpop.f32.mrf.mxu0
        %v3108 = vadd.f32 %v2947, %v3107
        %v3109 = vpop.f32.mrf.mxu0
        %v3110 = vpop.f32.mrf.mxu0
        %v3111 = vadd.f32 %v2950, %v3110
        %v3112 = vpop.f32.mrf.mxu0
        %3113 = vmatprep.mubr.bf16.mxu0 0
        %3114 = vmatmul.mubr.bf16.gmra.mxu0 %v2627
        %v3115 = vpop.f32.mrf.mxu0
        %v3116 = vadd.f32 %v2955, %v3115
        %v3117 = vpop.f32.mrf.mxu0
        %v3118 = vpop.f32.mrf.mxu0
        %v3119 = vadd.f32 %v2958, %v3118
        %v3120 = vpop.f32.mrf.mxu0
        %3121 = vmatprep.mubr.bf16.mxu0 0
        %3122 = vmatmul.mubr.bf16.gmra.mxu0 %v2630
        %v3123 = vpop.f32.mrf.mxu0
        %v3124 = vadd.f32 %v2963, %v3123
        %v3125 = vpop.f32.mrf.mxu0
        %v3126 = vpop.f32.mrf.mxu0
        %v3127 = vadd.f32 %v2966, %v3126
        %v3128 = vpop.f32.mrf.mxu0
        %3129 = vmatprep.mubr.bf16.mxu0 0
        %3130 = vmatmul.mubr.bf16.gmra.mxu0 %v2633
        %v3131 = vpop.f32.mrf.mxu0
        %v3132 = vadd.f32 %v2971, %v3131
        %v3133 = vpop.f32.mrf.mxu0
        %v3134 = vpop.f32.mrf.mxu0
        %v3135 = vadd.f32 %v2974, %v3134
        %v3136 = vpop.f32.mrf.mxu0
        %3137 = vmatprep.mubr.bf16.mxu0 0
        %3138 = vmatmul.mubr.bf16.gmra.mxu0 %v2636
        %v3139 = vpop.f32.mrf.mxu0
        %v3140 = vadd.f32 %v2979, %v3139
        %v3141 = vpop.f32.mrf.mxu0
        %v3142 = vpop.f32.mrf.mxu0
        %v3143 = vadd.f32 %v2982, %v3142
        %v3144 = vpop.f32.mrf.mxu0
        %3145 = vmatprep.mubr.bf16.mxu0 0
        %3146 = vmatmul.mubr.bf16.gmra.mxu0 %v2639
        %v3147 = vpop.f32.mrf.mxu0
        %v3148 = vadd.f32 %v2987, %v3147
        %v3149 = vpop.f32.mrf.mxu0
        %v3150 = vpop.f32.mrf.mxu0
        %v3151 = vadd.f32 %v2990, %v3150
        %v3152 = vpop.f32.mrf.mxu0
        %3153 = vdwg.mxu0
        %v3154 = vld [vmem:[#allocation3] sm:$0xff]
        %v3155 = vld [vmem:[#allocation3 + $0x8] sm:$0xff]
        %v3156 = vld [vmem:[#allocation3 + $0x10] sm:$0xff]
        %v3157 = vld [vmem:[#allocation3 + $0x18] sm:$0xff]
        %v3158 = vld [vmem:[#allocation3 + $0x20] sm:$0xff]
        %v3159 = vld [vmem:[#allocation3 + $0x28] sm:$0xff]
        %v3160 = vld [vmem:[#allocation3 + $0x30] sm:$0xff]
        %v3161 = vld [vmem:[#allocation3 + $0x38] sm:$0xff]
        %v3162 = vld [vmem:[#allocation3 + $0x40] sm:$0xff]
        %v3163 = vld [vmem:[#allocation3 + $0x48] sm:$0xff]
        %v3164 = vld [vmem:[#allocation3 + $0x50] sm:$0xff]
        %v3165 = vld [vmem:[#allocation3 + $0x58] sm:$0xff]
        %v3166 = vld [vmem:[#allocation3 + $0x60] sm:$0xff]
        %v3167 = vld [vmem:[#allocation3 + $0x68] sm:$0xff]
        %v3168 = vld [vmem:[#allocation3 + $0x70] sm:$0xff]
        %v3169 = vld [vmem:[#allocation3 + $0x78] sm:$0xff]
        %v3170 = vld [vmem:[#allocation3 + $0x80] sm:$0xff]
        %v3171 = vld [vmem:[#allocation3 + $0x88] sm:$0xff]
        %v3172 = vld [vmem:[#allocation3 + $0x90] sm:$0xff]
        %v3173 = vld [vmem:[#allocation3 + $0x98] sm:$0xff]
        %v3174 = vld [vmem:[#allocation3 + $0xa0] sm:$0xff]
        %v3175 = vld [vmem:[#allocation3 + $0xa8] sm:$0xff]
        %v3176 = vld [vmem:[#allocation3 + $0xb0] sm:$0xff]
        %v3177 = vld [vmem:[#allocation3 + $0xb8] sm:$0xff]
        %v3178 = vld [vmem:[#allocation3 + $0xc0] sm:$0xff]
        %v3179 = vld [vmem:[#allocation3 + $0xc8] sm:$0xff]
        %v3180 = vld [vmem:[#allocation3 + $0xd0] sm:$0xff]
        %v3181 = vld [vmem:[#allocation3 + $0xd8] sm:$0xff]
        %v3182 = vld [vmem:[#allocation3 + $0xe0] sm:$0xff]
        %v3183 = vld [vmem:[#allocation3 + $0xe8] sm:$0xff]
        %v3184 = vld [vmem:[#allocation3 + $0xf0] sm:$0xff]
        %v3185 = vld [vmem:[#allocation3 + $0xf8] sm:$0xff]
        %v3186 = vadd.f32 %v3154, %v3028
        %v3187 = vadd.f32 %v3155, %v3031
        %v3188 = vadd.f32 %v3156, %v3036
        %v3189 = vadd.f32 %v3157, %v3039
        %v3190 = vadd.f32 %v3158, %v3044
        %v3191 = vadd.f32 %v3159, %v3047
        %v3192 = vadd.f32 %v3160, %v3052
        %v3193 = vadd.f32 %v3161, %v3055
        %v3194 = vadd.f32 %v3162, %v3060
        %v3195 = vadd.f32 %v3163, %v3063
        %v3196 = vadd.f32 %v3164, %v3068
        %v3197 = vadd.f32 %v3165, %v3071
        %v3198 = vadd.f32 %v3166, %v3076
        %v3199 = vadd.f32 %v3167, %v3079
        %v3200 = vadd.f32 %v3168, %v3084
        %v3201 = vadd.f32 %v3169, %v3087
        %v3202 = vadd.f32 %v3170, %v3092
        %v3203 = vadd.f32 %v3171, %v3095
        %v3204 = vadd.f32 %v3172, %v3100
        %v3205 = vadd.f32 %v3173, %v3103
        %v3206 = vadd.f32 %v3174, %v3108
        %v3207 = vadd.f32 %v3175, %v3111
        %v3208 = vadd.f32 %v3176, %v3116
        %v3209 = vadd.f32 %v3177, %v3119
        %v3210 = vadd.f32 %v3178, %v3124
        %v3211 = vadd.f32 %v3179, %v3127
        %v3212 = vadd.f32 %v3180, %v3132
        %v3213 = vadd.f32 %v3181, %v3135
        %v3214 = vadd.f32 %v3182, %v3140
        %v3215 = vadd.f32 %v3183, %v3143
        %v3216 = vadd.f32 %v3184, %v3148
        %v3217 = vadd.f32 %v3185, %v3151
        %3218 = vst [vmem:[#allocation3] sm:$0xff] %v3186
        %3219 = vst [vmem:[#allocation3 + $0x8] sm:$0xff] %v3187
        %3220 = vst [vmem:[#allocation3 + $0x10] sm:$0xff] %v3188
        %3221 = vst [vmem:[#allocation3 + $0x18] sm:$0xff] %v3189
        %3222 = vst [vmem:[#allocation3 + $0x20] sm:$0xff] %v3190
        %3223 = vst [vmem:[#allocation3 + $0x28] sm:$0xff] %v3191
        %3224 = vst [vmem:[#allocation3 + $0x30] sm:$0xff] %v3192
        %3225 = vst [vmem:[#allocation3 + $0x38] sm:$0xff] %v3193
        %3226 = vst [vmem:[#allocation3 + $0x40] sm:$0xff] %v3194
        %3227 = vst [vmem:[#allocation3 + $0x48] sm:$0xff] %v3195
        %3228 = vst [vmem:[#allocation3 + $0x50] sm:$0xff] %v3196
        %3229 = vst [vmem:[#allocation3 + $0x58] sm:$0xff] %v3197
        %3230 = vst [vmem:[#allocation3 + $0x60] sm:$0xff] %v3198
        %3231 = vst [vmem:[#allocation3 + $0x68] sm:$0xff] %v3199
        %3232 = vst [vmem:[#allocation3 + $0x70] sm:$0xff] %v3200
        %3233 = vst [vmem:[#allocation3 + $0x78] sm:$0xff] %v3201
        %3234 = vst [vmem:[#allocation3 + $0x80] sm:$0xff] %v3202
        %3235 = vst [vmem:[#allocation3 + $0x88] sm:$0xff] %v3203
        %3236 = vst [vmem:[#allocation3 + $0x90] sm:$0xff] %v3204
        %3237 = vst [vmem:[#allocation3 + $0x98] sm:$0xff] %v3205
        %3238 = vst [vmem:[#allocation3 + $0xa0] sm:$0xff] %v3206
        %3239 = vst [vmem:[#allocation3 + $0xa8] sm:$0xff] %v3207
        %3240 = vst [vmem:[#allocation3 + $0xb0] sm:$0xff] %v3208
        %3241 = vst [vmem:[#allocation3 + $0xb8] sm:$0xff] %v3209
        %3242 = vst [vmem:[#allocation3 + $0xc0] sm:$0xff] %v3210
        %3243 = vst [vmem:[#allocation3 + $0xc8] sm:$0xff] %v3211
        %3244 = vst [vmem:[#allocation3 + $0xd0] sm:$0xff] %v3212
        %3245 = vst [vmem:[#allocation3 + $0xd8] sm:$0xff] %v3213
        %3246 = vst [vmem:[#allocation3 + $0xe0] sm:$0xff] %v3214
        %3247 = vst [vmem:[#allocation3 + $0xe8] sm:$0xff] %v3215
        %3248 = vst [vmem:[#allocation3 + $0xf0] sm:$0xff] %v3216
        %3249 = vst [vmem:[#allocation3 + $0xf8] sm:$0xff] %v3217
        loop: start=0, step=1, limit=4
        $region52: #{tpu_custom_call.1} parent=31 // loop_pre_header
          _
        $region53: #{tpu_custom_call.1} parent=31 // loop_header
          %s3251 = sphi 0, %s3255
          %p3252 = scmp.ge.s32.totalorder %s3251, 4
          %v3256 = vphi 0.0, %v3281
          %v3257 = vphi 0.0, %v3303
        $region54: #{tpu_custom_call.1} parent=31 // loop_header_branch
          %3254 = sbr.rel (%p3252) target = $region58
        $region55: #{tpu_custom_call.1} parent=31 // loop_body
          %s3258 = smul.u32 %s3251, 64
          %s3259 = scalar_lea.vmem [#allocation3], %s3258
          %v3260 = vld [vmem:[%s3259] sm:$0xff]
          %v3261 = vld [vmem:[%s3259 + $0x8] sm:$0xff]
          %v3262 = vld [vmem:[%s3259 + $0x10] sm:$0xff]
          %v3263 = vld [vmem:[%s3259 + $0x18] sm:$0xff]
          %v3264 = vld [vmem:[%s3259 + $0x20] sm:$0xff]
          %v3265 = vld [vmem:[%s3259 + $0x28] sm:$0xff]
          %v3266 = vld [vmem:[%s3259 + $0x30] sm:$0xff]
          %v3267 = vld [vmem:[%s3259 + $0x38] sm:$0xff]
          %v3268 = vadd.f32 %v3260, %v3261
          %v3269 = vadd.f32 %v3268, %v3262
          %v3270 = vadd.f32 %v3269, %v3263
          %v3271 = vadd.f32 %v3270, %v3264
          %v3272 = vadd.f32 %v3271, %v3265
          %v3273 = vadd.f32 %v3272, %v3266
          %v3274 = vadd.f32 %v3273, %v3267
          %v3275 = vrot.slane %v3274, 4
          %v3276 = vadd.f32 %v3274, %v3275
          %v3277 = vrot.slane %v3276, 2
          %v3278 = vadd.f32 %v3276, %v3277
          %v3279 = vrot.slane %v3278, 1
          %v3280 = vadd.f32 %v3278, %v3279
          %v3281 = vadd.f32 %v3256, %v3280
          %v3282 = vmul.f32 %v3260, %v3260
          %v3283 = vmul.f32 %v3261, %v3261
          %v3284 = vmul.f32 %v3262, %v3262
          %v3285 = vmul.f32 %v3263, %v3263
          %v3286 = vmul.f32 %v3264, %v3264
          %v3287 = vmul.f32 %v3265, %v3265
          %v3288 = vmul.f32 %v3266, %v3266
          %v3289 = vmul.f32 %v3267, %v3267
          %v3290 = vadd.f32 %v3282, %v3283
          %v3291 = vadd.f32 %v3290, %v3284
          %v3292 = vadd.f32 %v3291, %v3285
          %v3293 = vadd.f32 %v3292, %v3286
          %v3294 = vadd.f32 %v3293, %v3287
          %v3295 = vadd.f32 %v3294, %v3288
          %v3296 = vadd.f32 %v3295, %v3289
          %v3297 = vrot.slane %v3296, 4
          %v3298 = vadd.f32 %v3296, %v3297
          %v3299 = vrot.slane %v3298, 2
          %v3300 = vadd.f32 %v3298, %v3299
          %v3301 = vrot.slane %v3300, 1
          %v3302 = vadd.f32 %v3300, %v3301
          %v3303 = vadd.f32 %v3257, %v3302
        $region56: #{tpu_custom_call.1} parent=31 // loop_footer
          %s3255 = sadd.s32 1, %s3251
        $region57: #{tpu_custom_call.1} parent=31 // loop_footer_branch
          %3250 = sbr.rel target = $region53
        $region58: #{tpu_custom_call.1} parent=31 // loop_exit
          _
        %v3304 = vmul.f32 %v3256, 0.00390625
        %v3305 = vmul.f32 %v3257, 0.00390625
        %v3306 = vmul.f32 %v3304, %v3304
        %v3307 = vsub.f32 %v3305, %v3306
        %v3308 = vmax.f32 %v3307, 0.0
        %v3309 = vadd.f32 %v3308, 1e-05
        %v3310 = vrsqrt.pop %v3309
        loop: start=0, step=1, limit=4
        $region59: #{tpu_custom_call.1} parent=31 // loop_pre_header
          _
        $region60: #{tpu_custom_call.1} parent=31 // loop_header
          %s3312 = sphi 0, %s3316
          %p3313 = scmp.ge.s32.totalorder %s3312, 4
        $region61: #{tpu_custom_call.1} parent=31 // loop_header_branch
          %3315 = sbr.rel (%p3313) target = $region65
        $region62: #{tpu_custom_call.1} parent=31 // loop_body
          %s3317 = smul.u32 %s3312, 4
          %s3318 = smul.u32 %s3312, 64
          %s3319 = scalar_lea.vmem [#allocation3], %s3318
          %v3320 = vld [vmem:[%s3319] sm:$0xff]
          %v3321 = vld [vmem:[%s3319 + $0x8] sm:$0xff]
          %v3322 = vld [vmem:[%s3319 + $0x10] sm:$0xff]
          %v3323 = vld [vmem:[%s3319 + $0x18] sm:$0xff]
          %v3324 = vld [vmem:[%s3319 + $0x20] sm:$0xff]
          %v3325 = vld [vmem:[%s3319 + $0x28] sm:$0xff]
          %v3326 = vld [vmem:[%s3319 + $0x30] sm:$0xff]
          %v3327 = vld [vmem:[%s3319 + $0x38] sm:$0xff]
          %v3328 = vsub.f32 %v3320, %v3304
          %v3329 = vsub.f32 %v3321, %v3304
          %v3330 = vsub.f32 %v3322, %v3304
          %v3331 = vsub.f32 %v3323, %v3304
          %v3332 = vsub.f32 %v3324, %v3304
          %v3333 = vsub.f32 %v3325, %v3304
          %v3334 = vsub.f32 %v3326, %v3304
          %v3335 = vsub.f32 %v3327, %v3304
          %v3336 = vmul.f32 %v3328, %v3310
          %v3337 = vmul.f32 %v3329, %v3310
          %v3338 = vmul.f32 %v3330, %v3310
          %v3339 = vmul.f32 %v3331, %v3310
          %v3340 = vmul.f32 %v3332, %v3310
          %v3341 = vmul.f32 %v3333, %v3310
          %v3342 = vmul.f32 %v3334, %v3310
          %v3343 = vmul.f32 %v3335, %v3310
          %v3344 = vlaneseq
          %v3345 = vshrl.u32 %v3344, 7
          %v3346 = vsub.s32 0, %v3345
          %v3347 = vrot.slane %v241, %v3346
          %v3348 = vmul.f32 %v3336, %v3347
          %v3349 = vmul.f32 %v3337, %v3347
          %v3350 = vmul.f32 %v3338, %v3347
          %v3351 = vmul.f32 %v3339, %v3347
          %v3352 = vmul.f32 %v3340, %v3347
          %v3353 = vmul.f32 %v3341, %v3347
          %v3354 = vmul.f32 %v3342, %v3347
          %v3355 = vmul.f32 %v3343, %v3347
          %v3356 = vlaneseq
          %v3357 = vshrl.u32 %v3356, 7
          %v3358 = vsub.s32 1, %v3357
          %v3359 = vrot.slane %v241, %v3358
          %v3360 = vadd.f32 %v3348, %v3359
          %v3361 = vadd.f32 %v3349, %v3359
          %v3362 = vadd.f32 %v3350, %v3359
          %v3363 = vadd.f32 %v3351, %v3359
          %v3364 = vadd.f32 %v3352, %v3359
          %v3365 = vadd.f32 %v3353, %v3359
          %v3366 = vadd.f32 %v3354, %v3359
          %v3367 = vadd.f32 %v3355, %v3359
          %v3368 = vmax.f32 %v3360, 0.0
          %v3369 = vmax.f32 %v3361, 0.0
          %v3370 = vmax.f32 %v3362, 0.0
          %v3371 = vmax.f32 %v3363, 0.0
          %v3372 = vmax.f32 %v3364, 0.0
          %v3373 = vmax.f32 %v3365, 0.0
          %v3374 = vmax.f32 %v3366, 0.0
          %v3375 = vmax.f32 %v3367, 0.0
          %v3376 = vpack.c.bf16 %v3369, %v3368
          %v3377 = vpack.c.bf16 %v3371, %v3370
          %v3378 = vpack.c.bf16 %v3373, %v3372
          %v3379 = vpack.c.bf16 %v3375, %v3374
          %s3380 = sadd.s32 %s3317, 1
          %v3385 = vunpack.c.l.b16 %v3376
          %v3386 = vunpack.c.h.b16 %v3376
          %v3387 = vunpack.c.l.b16 %v3377
          %v3388 = vunpack.c.h.b16 %v3377
          %v3389 = vunpack.c.l.b16 %v3378
          %v3390 = vunpack.c.h.b16 %v3378
          %v3391 = vunpack.c.l.b16 %v3379
          %v3392 = vunpack.c.h.b16 %v3379
          %v3393 = vpack.c.b16 %v3385, %v3385
          %v3394 = vpack.c.b16 %v3386, %v3386
          %v3395 = vpack.c.b16 %v3387, %v3387
          %v3396 = vpack.c.b16 %v3388, %v3388
          %v3397 = vpack.c.b16 %v3389, %v3389
          %v3398 = vpack.c.b16 %v3390, %v3390
          %v3399 = vpack.c.b16 %v3391, %v3391
          %v3400 = vpack.c.b16 %v3392, %v3392
          %s3409 = smul.u32 %s3380, 6
          %s3410 = smul.addr %s3409, 4
          %s3411 = scalar_lea.vmem [#allocation2], %s3410
          %3412 = vst [vmem:[%s3411 + $0x4] sm:$0xf] %v3393
          %3413 = vst [vmem:[%s3411 + $0x10] sm:$0xf] %v3394
          %3414 = vst [vmem:[%s3411 + $0x1c] sm:$0xf] %v3395
          %3415 = vst [vmem:[%s3411 + $0x28] sm:$0xf] %v3396
          %3416 = vst [vmem:[%s3411 + $0x34] sm:$0xf] %v3397
          %3417 = vst [vmem:[%s3411 + $0x40] sm:$0xf] %v3398
          %3418 = vst [vmem:[%s3411 + $0x4c] sm:$0xf] %v3399
          %3419 = vst [vmem:[%s3411 + $0x58] sm:$0xf] %v3400
          %v3421 = vshrl.u32 %v3393, 16
          %v3423 = vrot.slane %v3421, 4
          %v3424 = vrot.slane %v3423, 4
          %v3426 = vshrl.u32 %v3395, 16
          %v3428 = vrot.slane %v3426, 4
          %v3429 = vrot.slane %v3428, 4
          %v3431 = vshrl.u32 %v3397, 16
          %v3433 = vrot.slane %v3431, 4
          %v3434 = vrot.slane %v3433, 4
          %v3436 = vshrl.u32 %v3399, 16
          %v3438 = vrot.slane %v3436, 4
          %v3439 = vrot.slane %v3438, 4
          %vm3444 = vcmask 1040384
          %vm3445 = vsmask.f32 256
          %vm3446 = vmand %vm3444, %vm3445
          %v3447 = vld [vmem:[%s3411] sm:$0x1]
          %v3448 = vsel %vm3446, %v3424, %v3447
          %3449 = vst [vmem:[%s3411] sm:$0x1] %v3448
          %v3450 = vld [vmem:[%s3411 + $0x18] sm:$0x1]
          %v3451 = vsel %vm3446, %v3429, %v3450
          %3452 = vst [vmem:[%s3411 + $0x18] sm:$0x1] %v3451
          %v3453 = vld [vmem:[%s3411 + $0x30] sm:$0x1]
          %v3454 = vsel %vm3446, %v3434, %v3453
          %3455 = vst [vmem:[%s3411 + $0x30] sm:$0x1] %v3454
          %v3456 = vld [vmem:[%s3411 + $0x48] sm:$0x1]
          %v3457 = vsel %vm3446, %v3439, %v3456
          %3458 = vst [vmem:[%s3411 + $0x48] sm:$0x1] %v3457
          %vm3459 = vsmask.f32 4368
          %vm3460 = vmor %vm3445, %vm3459
          %v3461 = vrot.slane %v3421, 7
          %v3462 = vshll.u32 %v3393, 16
          %v3464 = vor.u32 %v3461, %v3462
          %v3465 = vrot.slane %v3461, 4
          %v3467 = vshrl.u32 %v3394, 16
          %v3469 = vrot.slane %v3467, 7
          %v3470 = vshll.u32 %v3394, 16
          %v3472 = vor.u32 %v3469, %v3470
          %v3473 = vsel %vm3460, %v3465, %v3472
          %v3474 = vrot.slane %v3426, 7
          %v3475 = vshll.u32 %v3395, 16
          %v3477 = vor.u32 %v3474, %v3475
          %v3478 = vrot.slane %v3474, 4
          %v3480 = vshrl.u32 %v3396, 16
          %v3482 = vrot.slane %v3480, 7
          %v3483 = vshll.u32 %v3396, 16
          %v3485 = vor.u32 %v3482, %v3483
          %v3486 = vsel %vm3460, %v3478, %v3485
          %v3487 = vrot.slane %v3431, 7
          %v3488 = vshll.u32 %v3397, 16
          %v3490 = vor.u32 %v3487, %v3488
          %v3491 = vrot.slane %v3487, 4
          %v3493 = vshrl.u32 %v3398, 16
          %v3495 = vrot.slane %v3493, 7
          %v3496 = vshll.u32 %v3398, 16
          %v3498 = vor.u32 %v3495, %v3496
          %v3499 = vsel %vm3460, %v3491, %v3498
          %v3500 = vrot.slane %v3436, 7
          %v3501 = vshll.u32 %v3399, 16
          %v3503 = vor.u32 %v3500, %v3501
          %v3504 = vrot.slane %v3500, 4
          %v3506 = vshrl.u32 %v3400, 16
          %v3508 = vrot.slane %v3506, 7
          %v3509 = vshll.u32 %v3400, 16
          %v3511 = vor.u32 %v3508, %v3509
          %v3512 = vsel %vm3460, %v3504, %v3511
          %vm3521 = vcmask 1043456
          %vm3522 = vsmask.f32 7938
          %vm3523 = vmand %vm3521, %vm3522
          %v3524 = vld [vmem:[%s3411] sm:$0xf]
          %v3525 = vsel %vm3523, %v3464, %v3524
          %3526 = vst [vmem:[%s3411] sm:$0xf] %v3525
          %3527 = vst [vmem:[%s3411 + $0xc] sm:$0xf] %v3473
          %v3528 = vld [vmem:[%s3411 + $0x18] sm:$0xf]
          %v3529 = vsel %vm3523, %v3477, %v3528
          %3530 = vst [vmem:[%s3411 + $0x18] sm:$0xf] %v3529
          %3531 = vst [vmem:[%s3411 + $0x24] sm:$0xf] %v3486
          %v3532 = vld [vmem:[%s3411 + $0x30] sm:$0xf]
          %v3533 = vsel %vm3523, %v3490, %v3532
          %3534 = vst [vmem:[%s3411 + $0x30] sm:$0xf] %v3533
          %3535 = vst [vmem:[%s3411 + $0x3c] sm:$0xf] %v3499
          %v3536 = vld [vmem:[%s3411 + $0x48] sm:$0xf]
          %v3537 = vsel %vm3523, %v3503, %v3536
          %3538 = vst [vmem:[%s3411 + $0x48] sm:$0xf] %v3537
          %3539 = vst [vmem:[%s3411 + $0x54] sm:$0xf] %v3512
          %vm3540 = vsmask.f32 3328
          %vm3541 = vsmask.f32 7440
          %vm3542 = vmor %vm3540, %vm3541
          %v3543 = vrot.slane %v3462, 5
          %v3544 = vor.u32 %v3423, %v3543
          %v3545 = vrot.slane %v3544, 4
          %v3546 = vrot.slane %v3470, 5
          %v3547 = vsel %vm3542, %v3545, %v3546
          %v3548 = vrot.slane %v3467, 4
          %v3549 = vor.u32 %v3548, %v3546
          %v3550 = vrot.slane %v3549, 4
          %v3551 = vrot.slane %v3475, 5
          %v3552 = vor.u32 %v3428, %v3551
          %v3553 = vrot.slane %v3552, 4
          %v3554 = vrot.slane %v3483, 5
          %v3555 = vsel %vm3542, %v3553, %v3554
          %v3556 = vrot.slane %v3480, 4
          %v3557 = vor.u32 %v3556, %v3554
          %v3558 = vrot.slane %v3557, 4
          %v3559 = vrot.slane %v3488, 5
          %v3560 = vor.u32 %v3433, %v3559
          %v3561 = vrot.slane %v3560, 4
          %v3562 = vrot.slane %v3496, 5
          %v3563 = vsel %vm3542, %v3561, %v3562
          %v3564 = vrot.slane %v3493, 4
          %v3565 = vor.u32 %v3564, %v3562
          %v3566 = vrot.slane %v3565, 4
          %v3567 = vrot.slane %v3501, 5
          %v3568 = vor.u32 %v3438, %v3567
          %v3569 = vrot.slane %v3568, 4
          %v3570 = vrot.slane %v3509, 5
          %v3571 = vsel %vm3542, %v3569, %v3570
          %v3572 = vrot.slane %v3506, 4
          %v3573 = vor.u32 %v3572, %v3570
          %v3574 = vrot.slane %v3573, 4
          %3583 = vst [vmem:[%s3411 + $0x8] sm:$0xf] %v3547
          %vm3584 = vmand %vm3521, %vm3540
          %v3585 = vld [vmem:[%s3411 + $0x14] sm:$0xf]
          %v3586 = vsel %vm3584, %v3550, %v3585
          %3587 = vst [vmem:[%s3411 + $0x14] sm:$0xf] %v3586
          %3588 = vst [vmem:[%s3411 + $0x20] sm:$0xf] %v3555
          %v3589 = vld [vmem:[%s3411 + $0x2c] sm:$0xf]
          %v3590 = vsel %vm3584, %v3558, %v3589
          %3591 = vst [vmem:[%s3411 + $0x2c] sm:$0xf] %v3590
          %3592 = vst [vmem:[%s3411 + $0x38] sm:$0xf] %v3563
          %v3593 = vld [vmem:[%s3411 + $0x44] sm:$0xf]
          %v3594 = vsel %vm3584, %v3566, %v3593
          %3595 = vst [vmem:[%s3411 + $0x44] sm:$0xf] %v3594
          %3596 = vst [vmem:[%s3411 + $0x50] sm:$0xf] %v3571
          %v3597 = vld [vmem:[%s3411 + $0x5c] sm:$0xf]
          %v3598 = vsel %vm3584, %v3574, %v3597
          %3599 = vst [vmem:[%s3411 + $0x5c] sm:$0xf] %v3598
          %vm3604 = vcmask 1043459
          %vm3605 = vsmask.f32 7950
          %vm3606 = vmand %vm3604, %vm3605
          %v3607 = vld [vmem:[%s3411 + $0x14] sm:$0x8]
          %v3608 = vsel %vm3606, %v3470, %v3607
          %3609 = vst [vmem:[%s3411 + $0x14] sm:$0x8] %v3608
          %v3610 = vld [vmem:[%s3411 + $0x2c] sm:$0x8]
          %v3611 = vsel %vm3606, %v3483, %v3610
          %3612 = vst [vmem:[%s3411 + $0x2c] sm:$0x8] %v3611
          %v3613 = vld [vmem:[%s3411 + $0x44] sm:$0x8]
          %v3614 = vsel %vm3606, %v3496, %v3613
          %3615 = vst [vmem:[%s3411 + $0x44] sm:$0x8] %v3614
          %v3616 = vld [vmem:[%s3411 + $0x5c] sm:$0x8]
          %v3617 = vsel %vm3606, %v3509, %v3616
          %3618 = vst [vmem:[%s3411 + $0x5c] sm:$0x8] %v3617
        $region63: #{tpu_custom_call.1} parent=31 // loop_footer
          %s3316 = sadd.s32 1, %s3312
        $region64: #{tpu_custom_call.1} parent=31 // loop_footer_branch
          %3311 = sbr.rel target = $region60
        $region65: #{tpu_custom_call.1} parent=31 // loop_exit
          _
        %v3619 = vld [vmem:[%s502] sm:$0xff]
        %v3620 = vld [vmem:[%s502 + $0x8] sm:$0xf]
        %v3621 = vld [vmem:[%s502 + $0xc] sm:$0xff]
        %v3622 = vld [vmem:[%s502 + $0x14] sm:$0xf]
        %3623 = vst [vmem:[#allocation2] sm:$0xff] %v3619
        %3624 = vst [vmem:[#allocation2 + $0x8] sm:$0xf] %v3620
        %3625 = vst [vmem:[#allocation2 + $0xc] sm:$0xff] %v3621
        %3626 = vst [vmem:[#allocation2 + $0x14] sm:$0xf] %v3622
        %v3627 = vld [vmem:[%s511] sm:$0xff]
        %v3628 = vld [vmem:[%s511 + $0x8] sm:$0xf]
        %v3629 = vld [vmem:[%s511 + $0xc] sm:$0xff]
        %v3630 = vld [vmem:[%s511 + $0x14] sm:$0xf]
        %3631 = vst [vmem:[%s516] sm:$0xff] %v3627
        %3632 = vst [vmem:[%s516 + $0x8] sm:$0xf] %v3628
        %3633 = vst [vmem:[%s516 + $0xc] sm:$0xff] %v3629
        %3634 = vst [vmem:[%s516 + $0x14] sm:$0xf] %v3630
        %v3635 = vld [vmem:[#allocation2] sm:$0xff]
        %v3636 = vld [vmem:[#allocation2 + $0x8] sm:$0xf]
        %v3637 = vld [vmem:[#allocation2 + $0xc] sm:$0xff]
        %v3638 = vld [vmem:[#allocation2 + $0x14] sm:$0xf]
        %v3639 = vld [vmem:[#allocation2 + $0x18] sm:$0xff]
        %v3640 = vld [vmem:[#allocation2 + $0x20] sm:$0xf]
        %v3641 = vld [vmem:[#allocation2 + $0x24] sm:$0xff]
        %v3642 = vld [vmem:[#allocation2 + $0x2c] sm:$0xf]
        %v3643 = vld [vmem:[#allocation2 + $0x30] sm:$0xff]
        %v3644 = vld [vmem:[#allocation2 + $0x38] sm:$0xf]
        %v3645 = vld [vmem:[#allocation2 + $0x3c] sm:$0xff]
        %v3646 = vld [vmem:[#allocation2 + $0x44] sm:$0xf]
        %v3647 = vld [vmem:[#allocation2 + $0x48] sm:$0xff]
        %v3648 = vld [vmem:[#allocation2 + $0x50] sm:$0xf]
        %v3649 = vld [vmem:[#allocation2 + $0x54] sm:$0xff]
        %v3650 = vld [vmem:[#allocation2 + $0x5c] sm:$0xf]
        %v3651 = vld [vmem:[#allocation2 + $0x60] sm:$0xff]
        %v3652 = vld [vmem:[#allocation2 + $0x68] sm:$0xf]
        %v3653 = vld [vmem:[#allocation2 + $0x6c] sm:$0xff]
        %v3654 = vld [vmem:[#allocation2 + $0x74] sm:$0xf]
        %v3655 = vld [vmem:[#allocation2 + $0x78] sm:$0xff]
        %v3656 = vld [vmem:[#allocation2 + $0x80] sm:$0xf]
        %v3657 = vld [vmem:[#allocation2 + $0x84] sm:$0xff]
        %v3658 = vld [vmem:[#allocation2 + $0x8c] sm:$0xf]
        %v3659 = vld [vmem:[#allocation2 + $0x90] sm:$0xff]
        %v3660 = vld [vmem:[#allocation2 + $0x98] sm:$0xf]
        %v3661 = vld [vmem:[#allocation2 + $0x9c] sm:$0xff]
        %v3662 = vld [vmem:[#allocation2 + $0xa4] sm:$0xf]
        %v3663 = vld [vmem:[#allocation2 + $0xa8] sm:$0xff]
        %v3664 = vld [vmem:[#allocation2 + $0xb0] sm:$0xf]
        %v3665 = vld [vmem:[#allocation2 + $0xb4] sm:$0xff]
        %v3666 = vld [vmem:[#allocation2 + $0xbc] sm:$0xf]
        %v3667 = vld [vmem:[#allocation2 + $0xc0] sm:$0xff]
        %v3668 = vld [vmem:[#allocation2 + $0xc8] sm:$0xf]
        %v3669 = vld [vmem:[#allocation2 + $0xcc] sm:$0xff]
        %v3670 = vld [vmem:[#allocation2 + $0xd4] sm:$0xf]
        %v3671 = vld [vmem:[#allocation2 + $0xd8] sm:$0xff]
        %v3672 = vld [vmem:[#allocation2 + $0xe0] sm:$0xf]
        %v3673 = vld [vmem:[#allocation2 + $0xe4] sm:$0xff]
        %v3674 = vld [vmem:[#allocation2 + $0xec] sm:$0xf]
        %v3675 = vld [vmem:[#allocation2 + $0xf0] sm:$0xff]
        %v3676 = vld [vmem:[#allocation2 + $0xf8] sm:$0xf]
        %v3677 = vld [vmem:[#allocation2 + $0xfc] sm:$0xff]
        %v3678 = vld [vmem:[#allocation2 + $0x104] sm:$0xf]
        %v3679 = vld [vmem:[#allocation2 + $0x108] sm:$0xff]
        %v3680 = vld [vmem:[#allocation2 + $0x110] sm:$0xf]
        %v3681 = vld [vmem:[#allocation2 + $0x114] sm:$0xff]
        %v3682 = vld [vmem:[#allocation2 + $0x11c] sm:$0xf]
        %v3683 = vld [vmem:[#allocation2 + $0x120] sm:$0xff]
        %v3684 = vld [vmem:[#allocation2 + $0x128] sm:$0xf]
        %v3685 = vld [vmem:[#allocation2 + $0x12c] sm:$0xff]
        %v3686 = vld [vmem:[#allocation2 + $0x134] sm:$0xf]
        %v3687 = vld [vmem:[#allocation2 + $0x138] sm:$0xff]
        %v3688 = vld [vmem:[#allocation2 + $0x140] sm:$0xf]
        %v3689 = vld [vmem:[#allocation2 + $0x144] sm:$0xff]
        %v3690 = vld [vmem:[#allocation2 + $0x14c] sm:$0xf]
        %v3691 = vld [vmem:[#allocation2 + $0x150] sm:$0xff]
        %v3692 = vld [vmem:[#allocation2 + $0x158] sm:$0xf]
        %v3693 = vld [vmem:[#allocation2 + $0x15c] sm:$0xff]
        %v3694 = vld [vmem:[#allocation2 + $0x164] sm:$0xf]
        %v3695 = vld [vmem:[#allocation2 + $0x168] sm:$0xff]
        %v3696 = vld [vmem:[#allocation2 + $0x170] sm:$0xf]
        %v3697 = vld [vmem:[#allocation2 + $0x174] sm:$0xff]
        %v3698 = vld [vmem:[#allocation2 + $0x17c] sm:$0xf]
        %s3699 = scalar_lea.vmem [#allocation9], 576
        %v3700 = vld [vmem:[%s3699] sm:$0xf]
        %v3701 = vld [vmem:[%s3699 + $0x4] sm:$0xf]
        %v3702 = vld [vmem:[%s3699 + $0x8] sm:$0xf]
        %v3703 = vld [vmem:[%s3699 + $0xc] sm:$0xf]
        %v3704 = vld [vmem:[%s3699 + $0x10] sm:$0xf]
        %v3705 = vld [vmem:[%s3699 + $0x14] sm:$0xf]
        %v3706 = vld [vmem:[%s3699 + $0x18] sm:$0xf]
        %v3707 = vld [vmem:[%s3699 + $0x1c] sm:$0xf]
        %v3708 = vld [vmem:[%s3699 + $0x20] sm:$0xf]
        %v3709 = vld [vmem:[%s3699 + $0x24] sm:$0xf]
        %v3710 = vld [vmem:[%s3699 + $0x28] sm:$0xf]
        %v3711 = vld [vmem:[%s3699 + $0x2c] sm:$0xf]
        %v3712 = vld [vmem:[%s3699 + $0x30] sm:$0xf]
        %v3713 = vld [vmem:[%s3699 + $0x34] sm:$0xf]
        %v3714 = vld [vmem:[%s3699 + $0x38] sm:$0xf]
        %v3715 = vld [vmem:[%s3699 + $0x3c] sm:$0xf]
        %v3716 = vld [vmem:[%s3699 + $0x40] sm:$0xf]
        %v3717 = vld [vmem:[%s3699 + $0x44] sm:$0xf]
        %v3718 = vld [vmem:[%s3699 + $0x48] sm:$0xf]
        %v3719 = vld [vmem:[%s3699 + $0x4c] sm:$0xf]
        %v3720 = vld [vmem:[%s3699 + $0x50] sm:$0xf]
        %v3721 = vld [vmem:[%s3699 + $0x54] sm:$0xf]
        %v3722 = vld [vmem:[%s3699 + $0x58] sm:$0xf]
        %v3723 = vld [vmem:[%s3699 + $0x5c] sm:$0xf]
        %v3724 = vld [vmem:[%s3699 + $0x60] sm:$0xf]
        %v3725 = vld [vmem:[%s3699 + $0x64] sm:$0xf]
        %v3726 = vld [vmem:[%s3699 + $0x68] sm:$0xf]
        %v3727 = vld [vmem:[%s3699 + $0x6c] sm:$0xf]
        %v3728 = vld [vmem:[%s3699 + $0x70] sm:$0xf]
        %v3729 = vld [vmem:[%s3699 + $0x74] sm:$0xf]
        %v3730 = vld [vmem:[%s3699 + $0x78] sm:$0xf]
        %v3731 = vld [vmem:[%s3699 + $0x7c] sm:$0xf]
        %v3732 = vld [vmem:[%s3699 + $0x80] sm:$0xf]
        %v3733 = vld [vmem:[%s3699 + $0x84] sm:$0xf]
        %v3734 = vld [vmem:[%s3699 + $0x88] sm:$0xf]
        %v3735 = vld [vmem:[%s3699 + $0x8c] sm:$0xf]
        %v3736 = vld [vmem:[%s3699 + $0x90] sm:$0xf]
        %v3737 = vld [vmem:[%s3699 + $0x94] sm:$0xf]
        %v3738 = vld [vmem:[%s3699 + $0x98] sm:$0xf]
        %v3739 = vld [vmem:[%s3699 + $0x9c] sm:$0xf]
        %v3740 = vld [vmem:[%s3699 + $0xa0] sm:$0xf]
        %v3741 = vld [vmem:[%s3699 + $0xa4] sm:$0xf]
        %v3742 = vld [vmem:[%s3699 + $0xa8] sm:$0xf]
        %v3743 = vld [vmem:[%s3699 + $0xac] sm:$0xf]
        %v3744 = vld [vmem:[%s3699 + $0xb0] sm:$0xf]
        %v3745 = vld [vmem:[%s3699 + $0xb4] sm:$0xf]
        %v3746 = vld [vmem:[%s3699 + $0xb8] sm:$0xf]
        %v3747 = vld [vmem:[%s3699 + $0xbc] sm:$0xf]
        %v3812 = vunpack.c.l.b16 %v3635
        %v3813 = vunpack.c.h.b16 %v3635
        %v3814 = vunpack.c.l.b16 %v3636
        %v3815 = vunpack.c.l.b16 %v3637
        %v3816 = vunpack.c.h.b16 %v3637
        %v3817 = vunpack.c.l.b16 %v3638
        %v3818 = vunpack.c.l.b16 %v3639
        %v3819 = vunpack.c.h.b16 %v3639
        %v3820 = vunpack.c.l.b16 %v3640
        %v3821 = vunpack.c.l.b16 %v3641
        %v3822 = vunpack.c.h.b16 %v3641
        %v3823 = vunpack.c.l.b16 %v3642
        %v3824 = vunpack.c.l.b16 %v3643
        %v3825 = vunpack.c.h.b16 %v3643
        %v3826 = vunpack.c.l.b16 %v3644
        %v3827 = vunpack.c.l.b16 %v3645
        %v3828 = vunpack.c.h.b16 %v3645
        %v3829 = vunpack.c.l.b16 %v3646
        %v3830 = vunpack.c.l.b16 %v3647
        %v3831 = vunpack.c.h.b16 %v3647
        %v3832 = vunpack.c.l.b16 %v3648
        %v3833 = vunpack.c.l.b16 %v3649
        %v3834 = vunpack.c.h.b16 %v3649
        %v3835 = vunpack.c.l.b16 %v3650
        %v3836 = vunpack.c.l.b16 %v3651
        %v3837 = vunpack.c.h.b16 %v3651
        %v3838 = vunpack.c.l.b16 %v3652
        %v3839 = vunpack.c.l.b16 %v3653
        %v3840 = vunpack.c.h.b16 %v3653
        %v3841 = vunpack.c.l.b16 %v3654
        %v3842 = vunpack.c.l.b16 %v3655
        %v3843 = vunpack.c.h.b16 %v3655
        %v3844 = vunpack.c.l.b16 %v3656
        %v3845 = vunpack.c.l.b16 %v3657
        %v3846 = vunpack.c.h.b16 %v3657
        %v3847 = vunpack.c.l.b16 %v3658
        %v3848 = vunpack.c.l.b16 %v3659
        %v3849 = vunpack.c.h.b16 %v3659
        %v3850 = vunpack.c.l.b16 %v3660
        %v3851 = vunpack.c.l.b16 %v3661
        %v3852 = vunpack.c.h.b16 %v3661
        %v3853 = vunpack.c.l.b16 %v3662
        %v3854 = vunpack.c.l.b16 %v3663
        %v3855 = vunpack.c.h.b16 %v3663
        %v3856 = vunpack.c.l.b16 %v3664
        %v3857 = vunpack.c.l.b16 %v3665
        %v3858 = vunpack.c.h.b16 %v3665
        %v3859 = vunpack.c.l.b16 %v3666
        %v3860 = vunpack.c.l.b16 %v3667
        %v3861 = vunpack.c.h.b16 %v3667
        %v3862 = vunpack.c.l.b16 %v3668
        %v3863 = vunpack.c.l.b16 %v3669
        %v3864 = vunpack.c.h.b16 %v3669
        %v3865 = vunpack.c.l.b16 %v3670
        %v3866 = vunpack.c.l.b16 %v3671
        %v3867 = vunpack.c.h.b16 %v3671
        %v3868 = vunpack.c.l.b16 %v3672
        %v3869 = vunpack.c.l.b16 %v3673
        %v3870 = vunpack.c.h.b16 %v3673
        %v3871 = vunpack.c.l.b16 %v3674
        %v3872 = vunpack.c.l.b16 %v3675
        %v3873 = vunpack.c.h.b16 %v3675
        %v3874 = vunpack.c.l.b16 %v3676
        %v3875 = vunpack.c.l.b16 %v3677
        %v3876 = vunpack.c.h.b16 %v3677
        %v3877 = vunpack.c.l.b16 %v3678
        %v3878 = vunpack.c.l.b16 %v3679
        %v3879 = vunpack.c.h.b16 %v3679
        %v3880 = vunpack.c.l.b16 %v3680
        %v3881 = vunpack.c.l.b16 %v3681
        %v3882 = vunpack.c.h.b16 %v3681
        %v3883 = vunpack.c.l.b16 %v3682
        %v3884 = vunpack.c.l.b16 %v3683
        %v3885 = vunpack.c.h.b16 %v3683
        %v3886 = vunpack.c.l.b16 %v3684
        %v3887 = vunpack.c.l.b16 %v3685
        %v3888 = vunpack.c.h.b16 %v3685
        %v3889 = vunpack.c.l.b16 %v3686
        %v3890 = vunpack.c.l.b16 %v3687
        %v3891 = vunpack.c.h.b16 %v3687
        %v3892 = vunpack.c.l.b16 %v3688
        %v3893 = vunpack.c.l.b16 %v3689
        %v3894 = vunpack.c.h.b16 %v3689
        %v3895 = vunpack.c.l.b16 %v3690
        %v3896 = vunpack.c.l.b16 %v3691
        %v3897 = vunpack.c.h.b16 %v3691
        %v3898 = vunpack.c.l.b16 %v3692
        %v3899 = vunpack.c.l.b16 %v3693
        %v3900 = vunpack.c.h.b16 %v3693
        %v3901 = vunpack.c.l.b16 %v3694
        %v3902 = vunpack.c.l.b16 %v3695
        %v3903 = vunpack.c.h.b16 %v3695
        %v3904 = vunpack.c.l.b16 %v3696
        %v3905 = vunpack.c.l.b16 %v3697
        %v3906 = vunpack.c.h.b16 %v3697
        %v3907 = vunpack.c.l.b16 %v3698
        %v3908 = vpack.c.b16 %v3815, %v3812
        %v3909 = vpack.c.b16 %v3816, %v3813
        %v3910 = vpack.c.b16 %v3817, %v3814
        %v3911 = vpack.c.b16 %v3821, %v3818
        %v3912 = vpack.c.b16 %v3822, %v3819
        %v3913 = vpack.c.b16 %v3823, %v3820
        %v3914 = vpack.c.b16 %v3827, %v3824
        %v3915 = vpack.c.b16 %v3828, %v3825
        %v3916 = vpack.c.b16 %v3829, %v3826
        %v3917 = vpack.c.b16 %v3833, %v3830
        %v3918 = vpack.c.b16 %v3834, %v3831
        %v3919 = vpack.c.b16 %v3835, %v3832
        %v3920 = vpack.c.b16 %v3839, %v3836
        %v3921 = vpack.c.b16 %v3840, %v3837
        %v3922 = vpack.c.b16 %v3841, %v3838
        %v3923 = vpack.c.b16 %v3845, %v3842
        %v3924 = vpack.c.b16 %v3846, %v3843
        %v3925 = vpack.c.b16 %v3847, %v3844
        %v3926 = vpack.c.b16 %v3851, %v3848
        %v3927 = vpack.c.b16 %v3852, %v3849
        %v3928 = vpack.c.b16 %v3853, %v3850
        %v3929 = vpack.c.b16 %v3857, %v3854
        %v3930 = vpack.c.b16 %v3858, %v3855
        %v3931 = vpack.c.b16 %v3859, %v3856
        %v3932 = vpack.c.b16 %v3863, %v3860
        %v3933 = vpack.c.b16 %v3864, %v3861
        %v3934 = vpack.c.b16 %v3865, %v3862
        %v3935 = vpack.c.b16 %v3869, %v3866
        %v3936 = vpack.c.b16 %v3870, %v3867
        %v3937 = vpack.c.b16 %v3871, %v3868
        %v3938 = vpack.c.b16 %v3875, %v3872
        %v3939 = vpack.c.b16 %v3876, %v3873
        %v3940 = vpack.c.b16 %v3877, %v3874
        %v3941 = vpack.c.b16 %v3881, %v3878
        %v3942 = vpack.c.b16 %v3882, %v3879
        %v3943 = vpack.c.b16 %v3883, %v3880
        %v3944 = vpack.c.b16 %v3887, %v3884
        %v3945 = vpack.c.b16 %v3888, %v3885
        %v3946 = vpack.c.b16 %v3889, %v3886
        %v3947 = vpack.c.b16 %v3893, %v3890
        %v3948 = vpack.c.b16 %v3894, %v3891
        %v3949 = vpack.c.b16 %v3895, %v3892
        %v3950 = vpack.c.b16 %v3899, %v3896
        %v3951 = vpack.c.b16 %v3900, %v3897
        %v3952 = vpack.c.b16 %v3901, %v3898
        %v3953 = vpack.c.b16 %v3905, %v3902
        %v3954 = vpack.c.b16 %v3906, %v3903
        %v3955 = vpack.c.b16 %v3907, %v3904
        %v4052 = vunpack.c.l.b16 %v3700
        %v4053 = vunpack.c.l.b16 %v3701
        %v4054 = vunpack.c.l.b16 %v3702
        %v4055 = vunpack.c.l.b16 %v3703
        %v4056 = vunpack.c.l.b16 %v3704
        %v4057 = vunpack.c.l.b16 %v3705
        %v4058 = vunpack.c.l.b16 %v3706
        %v4059 = vunpack.c.l.b16 %v3707
        %v4060 = vunpack.c.l.b16 %v3708
        %v4061 = vunpack.c.l.b16 %v3709
        %v4062 = vunpack.c.l.b16 %v3710
        %v4063 = vunpack.c.l.b16 %v3711
        %v4064 = vunpack.c.l.b16 %v3712
        %v4065 = vunpack.c.l.b16 %v3713
        %v4066 = vunpack.c.l.b16 %v3714
        %v4067 = vunpack.c.l.b16 %v3715
        %v4068 = vunpack.c.l.b16 %v3716
        %v4069 = vunpack.c.l.b16 %v3717
        %v4070 = vunpack.c.l.b16 %v3718
        %v4071 = vunpack.c.l.b16 %v3719
        %v4072 = vunpack.c.l.b16 %v3720
        %v4073 = vunpack.c.l.b16 %v3721
        %v4074 = vunpack.c.l.b16 %v3722
        %v4075 = vunpack.c.l.b16 %v3723
        %v4076 = vunpack.c.l.b16 %v3724
        %v4077 = vunpack.c.l.b16 %v3725
        %v4078 = vunpack.c.l.b16 %v3726
        %v4079 = vunpack.c.l.b16 %v3727
        %v4080 = vunpack.c.l.b16 %v3728
        %v4081 = vunpack.c.l.b16 %v3729
        %v4082 = vunpack.c.l.b16 %v3730
        %v4083 = vunpack.c.l.b16 %v3731
        %v4084 = vunpack.c.l.b16 %v3732
        %v4085 = vunpack.c.l.b16 %v3733
        %v4086 = vunpack.c.l.b16 %v3734
        %v4087 = vunpack.c.l.b16 %v3735
        %v4088 = vunpack.c.l.b16 %v3736
        %v4089 = vunpack.c.l.b16 %v3737
        %v4090 = vunpack.c.l.b16 %v3738
        %v4091 = vunpack.c.l.b16 %v3739
        %v4092 = vunpack.c.l.b16 %v3740
        %v4093 = vunpack.c.l.b16 %v3741
        %v4094 = vunpack.c.l.b16 %v3742
        %v4095 = vunpack.c.l.b16 %v3743
        %v4096 = vunpack.c.l.b16 %v3744
        %v4097 = vunpack.c.l.b16 %v3745
        %v4098 = vunpack.c.l.b16 %v3746
        %v4099 = vunpack.c.l.b16 %v3747
        %v4100 = vpack.c.b16 %v4053, %v4052
        %v4101 = vpack.c.b16 %v4055, %v4054
        %v4102 = vpack.c.b16 %v4057, %v4056
        %v4103 = vpack.c.b16 %v4059, %v4058
        %v4104 = vpack.c.b16 %v4061, %v4060
        %v4105 = vpack.c.b16 %v4063, %v4062
        %v4106 = vpack.c.b16 %v4065, %v4064
        %v4107 = vpack.c.b16 %v4067, %v4066
        %v4108 = vpack.c.b16 %v4069, %v4068
        %v4109 = vpack.c.b16 %v4071, %v4070
        %v4110 = vpack.c.b16 %v4073, %v4072
        %v4111 = vpack.c.b16 %v4075, %v4074
        %v4112 = vpack.c.b16 %v4077, %v4076
        %v4113 = vpack.c.b16 %v4079, %v4078
        %v4114 = vpack.c.b16 %v4081, %v4080
        %v4115 = vpack.c.b16 %v4083, %v4082
        %v4116 = vpack.c.b16 %v4085, %v4084
        %v4117 = vpack.c.b16 %v4087, %v4086
        %v4118 = vpack.c.b16 %v4089, %v4088
        %v4119 = vpack.c.b16 %v4091, %v4090
        %v4120 = vpack.c.b16 %v4093, %v4092
        %v4121 = vpack.c.b16 %v4095, %v4094
        %v4122 = vpack.c.b16 %v4097, %v4096
        %v4123 = vpack.c.b16 %v4099, %v4098
        %4148 = vmatprep.subr.bf16.mxu0 0
        %4149 = vmatpush1.bf16.msra.mxu0 %v4107
        %4150 = vmatprep.subr.bf16.mxu0 0
        %4151 = vmatpush1.bf16.msra.mxu0 %v4106
        %4152 = vmatprep.subr.bf16.mxu0 0
        %4153 = vmatpush1.bf16.msra.mxu0 %v4105
        %4154 = vmatprep.subr.bf16.mxu0 0
        %4155 = vmatpush1.bf16.msra.mxu0 %v4104
        %4156 = vmatprep.subr.bf16.mxu0 0
        %4157 = vmatpush1.bf16.msra.mxu0 %v4103
        %4158 = vmatprep.subr.bf16.mxu0 0
        %4159 = vmatpush1.bf16.msra.mxu0 %v4102
        %4160 = vmatprep.subr.bf16.mxu0 0
        %4161 = vmatpush1.bf16.msra.mxu0 %v4101
        %4162 = vmatprep.subr.bf16.mxu0 0
        %4163 = vmatpush1.bf16.msra.mxu0 %v4100
        %4164 = vmatprep.subr.bf16.mxu0 0
        %4165 = vmatpush2.bf16.msra.mxu0 %v4115
        %4166 = vmatprep.subr.bf16.mxu0 0
        %4167 = vmatpush2.bf16.msra.mxu0 %v4114
        %4168 = vmatprep.subr.bf16.mxu0 0
        %4169 = vmatpush2.bf16.msra.mxu0 %v4113
        %4170 = vmatprep.subr.bf16.mxu0 0
        %4171 = vmatpush2.bf16.msra.mxu0 %v4112
        %4172 = vmatprep.subr.bf16.mxu0 0
        %4173 = vmatpush2.bf16.msra.mxu0 %v4111
        %4174 = vmatprep.subr.bf16.mxu0 0
        %4175 = vmatpush2.bf16.msra.mxu0 %v4110
        %4176 = vmatprep.subr.bf16.mxu0 0
        %4177 = vmatpush2.bf16.msra.mxu0 %v4109
        %4178 = vmatprep.subr.bf16.mxu0 0
        %4179 = vmatpush2.bf16.msra.mxu0 %v4108
        %4180 = vmatprep.mubr.bf16.mxu0 %v3909
        %4181 = vmatmul.mubr.bf16.gmra.mxu0 %v3908
        %v4182 = vpop.f32.mrf.mxu0
        %v4183 = vadd.f32 0.0, %v4182
        %v4184 = vpop.f32.mrf.mxu0
        %v4185 = vpop.f32.mrf.mxu0
        %v4186 = vadd.f32 0.0, %v4185
        %v4187 = vpop.f32.mrf.mxu0
        %4188 = vmatprep.mubr.bf16.mxu0 %v3912
        %4189 = vmatmul.mubr.bf16.gmra.mxu0 %v3911
        %v4190 = vpop.f32.mrf.mxu0
        %v4191 = vadd.f32 0.0, %v4190
        %v4192 = vpop.f32.mrf.mxu0
        %v4193 = vpop.f32.mrf.mxu0
        %v4194 = vadd.f32 0.0, %v4193
        %v4195 = vpop.f32.mrf.mxu0
        %4196 = vmatprep.mubr.bf16.mxu0 %v3915
        %4197 = vmatmul.mubr.bf16.gmra.mxu0 %v3914
        %v4198 = vpop.f32.mrf.mxu0
        %v4199 = vadd.f32 0.0, %v4198
        %v4200 = vpop.f32.mrf.mxu0
        %v4201 = vpop.f32.mrf.mxu0
        %v4202 = vadd.f32 0.0, %v4201
        %v4203 = vpop.f32.mrf.mxu0
        %4204 = vmatprep.mubr.bf16.mxu0 %v3918
        %4205 = vmatmul.mubr.bf16.gmra.mxu0 %v3917
        %v4206 = vpop.f32.mrf.mxu0
        %v4207 = vadd.f32 0.0, %v4206
        %v4208 = vpop.f32.mrf.mxu0
        %v4209 = vpop.f32.mrf.mxu0
        %v4210 = vadd.f32 0.0, %v4209
        %v4211 = vpop.f32.mrf.mxu0
        %4212 = vmatprep.mubr.bf16.mxu0 %v3921
        %4213 = vmatmul.mubr.bf16.gmra.mxu0 %v3920
        %v4214 = vpop.f32.mrf.mxu0
        %v4215 = vadd.f32 0.0, %v4214
        %v4216 = vpop.f32.mrf.mxu0
        %v4217 = vpop.f32.mrf.mxu0
        %v4218 = vadd.f32 0.0, %v4217
        %v4219 = vpop.f32.mrf.mxu0
        %4220 = vmatprep.mubr.bf16.mxu0 %v3924
        %4221 = vmatmul.mubr.bf16.gmra.mxu0 %v3923
        %v4222 = vpop.f32.mrf.mxu0
        %v4223 = vadd.f32 0.0, %v4222
        %v4224 = vpop.f32.mrf.mxu0
        %v4225 = vpop.f32.mrf.mxu0
        %v4226 = vadd.f32 0.0, %v4225
        %v4227 = vpop.f32.mrf.mxu0
        %4228 = vmatprep.mubr.bf16.mxu0 %v3927
        %4229 = vmatmul.mubr.bf16.gmra.mxu0 %v3926
        %v4230 = vpop.f32.mrf.mxu0
        %v4231 = vadd.f32 0.0, %v4230
        %v4232 = vpop.f32.mrf.mxu0
        %v4233 = vpop.f32.mrf.mxu0
        %v4234 = vadd.f32 0.0, %v4233
        %v4235 = vpop.f32.mrf.mxu0
        %4236 = vmatprep.mubr.bf16.mxu0 %v3930
        %4237 = vmatmul.mubr.bf16.gmra.mxu0 %v3929
        %v4238 = vpop.f32.mrf.mxu0
        %v4239 = vadd.f32 0.0, %v4238
        %v4240 = vpop.f32.mrf.mxu0
        %v4241 = vpop.f32.mrf.mxu0
        %v4242 = vadd.f32 0.0, %v4241
        %v4243 = vpop.f32.mrf.mxu0
        %4244 = vmatprep.mubr.bf16.mxu0 %v3933
        %4245 = vmatmul.mubr.bf16.gmra.mxu0 %v3932
        %v4246 = vpop.f32.mrf.mxu0
        %v4247 = vadd.f32 0.0, %v4246
        %v4248 = vpop.f32.mrf.mxu0
        %v4249 = vpop.f32.mrf.mxu0
        %v4250 = vadd.f32 0.0, %v4249
        %v4251 = vpop.f32.mrf.mxu0
        %4252 = vmatprep.mubr.bf16.mxu0 %v3936
        %4253 = vmatmul.mubr.bf16.gmra.mxu0 %v3935
        %v4254 = vpop.f32.mrf.mxu0
        %v4255 = vadd.f32 0.0, %v4254
        %v4256 = vpop.f32.mrf.mxu0
        %v4257 = vpop.f32.mrf.mxu0
        %v4258 = vadd.f32 0.0, %v4257
        %v4259 = vpop.f32.mrf.mxu0
        %4260 = vmatprep.mubr.bf16.mxu0 %v3939
        %4261 = vmatmul.mubr.bf16.gmra.mxu0 %v3938
        %v4262 = vpop.f32.mrf.mxu0
        %v4263 = vadd.f32 0.0, %v4262
        %v4264 = vpop.f32.mrf.mxu0
        %v4265 = vpop.f32.mrf.mxu0
        %v4266 = vadd.f32 0.0, %v4265
        %v4267 = vpop.f32.mrf.mxu0
        %4268 = vmatprep.mubr.bf16.mxu0 %v3942
        %4269 = vmatmul.mubr.bf16.gmra.mxu0 %v3941
        %v4270 = vpop.f32.mrf.mxu0
        %v4271 = vadd.f32 0.0, %v4270
        %v4272 = vpop.f32.mrf.mxu0
        %v4273 = vpop.f32.mrf.mxu0
        %v4274 = vadd.f32 0.0, %v4273
        %v4275 = vpop.f32.mrf.mxu0
        %4276 = vmatprep.mubr.bf16.mxu0 %v3945
        %4277 = vmatmul.mubr.bf16.gmra.mxu0 %v3944
        %v4278 = vpop.f32.mrf.mxu0
        %v4279 = vadd.f32 0.0, %v4278
        %v4280 = vpop.f32.mrf.mxu0
        %v4281 = vpop.f32.mrf.mxu0
        %v4282 = vadd.f32 0.0, %v4281
        %v4283 = vpop.f32.mrf.mxu0
        %4284 = vmatprep.mubr.bf16.mxu0 %v3948
        %4285 = vmatmul.mubr.bf16.gmra.mxu0 %v3947
        %v4286 = vpop.f32.mrf.mxu0
        %v4287 = vadd.f32 0.0, %v4286
        %v4288 = vpop.f32.mrf.mxu0
        %v4289 = vpop.f32.mrf.mxu0
        %v4290 = vadd.f32 0.0, %v4289
        %v4291 = vpop.f32.mrf.mxu0
        %4292 = vmatprep.mubr.bf16.mxu0 %v3951
        %4293 = vmatmul.mubr.bf16.gmra.mxu0 %v3950
        %v4294 = vpop.f32.mrf.mxu0
        %v4295 = vadd.f32 0.0, %v4294
        %v4296 = vpop.f32.mrf.mxu0
        %v4297 = vpop.f32.mrf.mxu0
        %v4298 = vadd.f32 0.0, %v4297
        %v4299 = vpop.f32.mrf.mxu0
        %4300 = vmatprep.mubr.bf16.mxu0 %v3954
        %4301 = vmatmul.mubr.bf16.gmra.mxu0 %v3953
        %v4302 = vpop.f32.mrf.mxu0
        %v4303 = vadd.f32 0.0, %v4302
        %v4304 = vpop.f32.mrf.mxu0
        %v4305 = vpop.f32.mrf.mxu0
        %v4306 = vadd.f32 0.0, %v4305
        %v4307 = vpop.f32.mrf.mxu0
        %4308 = vdwg.mxu0
        %4309 = vmatprep.subr.bf16.mxu0 0
        %4310 = vmatpush1.bf16.msra.mxu0 %v4123
        %4311 = vmatprep.subr.bf16.mxu0 0
        %4312 = vmatpush1.bf16.msra.mxu0 %v4122
        %4313 = vmatprep.subr.bf16.mxu0 0
        %4314 = vmatpush1.bf16.msra.mxu0 %v4121
        %4315 = vmatprep.subr.bf16.mxu0 0
        %4316 = vmatpush1.bf16.msra.mxu0 %v4120
        %4317 = vmatprep.subr.bf16.mxu0 0
        %4318 = vmatpush1.bf16.msra.mxu0 %v4119
        %4319 = vmatprep.subr.bf16.mxu0 0
        %4320 = vmatpush1.bf16.msra.mxu0 %v4118
        %4321 = vmatprep.subr.bf16.mxu0 0
        %4322 = vmatpush1.bf16.msra.mxu0 %v4117
        %4323 = vmatprep.subr.bf16.mxu0 0
        %4324 = vmatpush1.bf16.msra.mxu0 %v4116
        %4325 = vmatprep.subr.bf16.mxu0 0
        %4326 = vmatpush2.bf16.msra.mxu0 0
        %4327 = vmatprep.subr.bf16.mxu0 0
        %4328 = vmatpush2.bf16.msra.mxu0 0
        %4329 = vmatprep.subr.bf16.mxu0 0
        %4330 = vmatpush2.bf16.msra.mxu0 0
        %4331 = vmatprep.subr.bf16.mxu0 0
        %4332 = vmatpush2.bf16.msra.mxu0 0
        %4333 = vmatprep.subr.bf16.mxu0 0
        %4334 = vmatpush2.bf16.msra.mxu0 0
        %4335 = vmatprep.subr.bf16.mxu0 0
        %4336 = vmatpush2.bf16.msra.mxu0 0
        %4337 = vmatprep.subr.bf16.mxu0 0
        %4338 = vmatpush2.bf16.msra.mxu0 0
        %4339 = vmatprep.subr.bf16.mxu0 0
        %4340 = vmatpush2.bf16.msra.mxu0 0
        %4341 = vmatprep.mubr.bf16.mxu0 0
        %4342 = vmatmul.mubr.bf16.gmra.mxu0 %v3910
        %v4343 = vpop.f32.mrf.mxu0
        %v4344 = vadd.f32 %v4183, %v4343
        %v4345 = vpop.f32.mrf.mxu0
        %v4346 = vpop.f32.mrf.mxu0
        %v4347 = vadd.f32 %v4186, %v4346
        %v4348 = vpop.f32.mrf.mxu0
        %4349 = vmatprep.mubr.bf16.mxu0 0
        %4350 = vmatmul.mubr.bf16.gmra.mxu0 %v3913
        %v4351 = vpop.f32.mrf.mxu0
        %v4352 = vadd.f32 %v4191, %v4351
        %v4353 = vpop.f32.mrf.mxu0
        %v4354 = vpop.f32.mrf.mxu0
        %v4355 = vadd.f32 %v4194, %v4354
        %v4356 = vpop.f32.mrf.mxu0
        %4357 = vmatprep.mubr.bf16.mxu0 0
        %4358 = vmatmul.mubr.bf16.gmra.mxu0 %v3916
        %v4359 = vpop.f32.mrf.mxu0
        %v4360 = vadd.f32 %v4199, %v4359
        %v4361 = vpop.f32.mrf.mxu0
        %v4362 = vpop.f32.mrf.mxu0
        %v4363 = vadd.f32 %v4202, %v4362
        %v4364 = vpop.f32.mrf.mxu0
        %4365 = vmatprep.mubr.bf16.mxu0 0
        %4366 = vmatmul.mubr.bf16.gmra.mxu0 %v3919
        %v4367 = vpop.f32.mrf.mxu0
        %v4368 = vadd.f32 %v4207, %v4367
        %v4369 = vpop.f32.mrf.mxu0
        %v4370 = vpop.f32.mrf.mxu0
        %v4371 = vadd.f32 %v4210, %v4370
        %v4372 = vpop.f32.mrf.mxu0
        %4373 = vmatprep.mubr.bf16.mxu0 0
        %4374 = vmatmul.mubr.bf16.gmra.mxu0 %v3922
        %v4375 = vpop.f32.mrf.mxu0
        %v4376 = vadd.f32 %v4215, %v4375
        %v4377 = vpop.f32.mrf.mxu0
        %v4378 = vpop.f32.mrf.mxu0
        %v4379 = vadd.f32 %v4218, %v4378
        %v4380 = vpop.f32.mrf.mxu0
        %4381 = vmatprep.mubr.bf16.mxu0 0
        %4382 = vmatmul.mubr.bf16.gmra.mxu0 %v3925
        %v4383 = vpop.f32.mrf.mxu0
        %v4384 = vadd.f32 %v4223, %v4383
        %v4385 = vpop.f32.mrf.mxu0
        %v4386 = vpop.f32.mrf.mxu0
        %v4387 = vadd.f32 %v4226, %v4386
        %v4388 = vpop.f32.mrf.mxu0
        %4389 = vmatprep.mubr.bf16.mxu0 0
        %4390 = vmatmul.mubr.bf16.gmra.mxu0 %v3928
        %v4391 = vpop.f32.mrf.mxu0
        %v4392 = vadd.f32 %v4231, %v4391
        %v4393 = vpop.f32.mrf.mxu0
        %v4394 = vpop.f32.mrf.mxu0
        %v4395 = vadd.f32 %v4234, %v4394
        %v4396 = vpop.f32.mrf.mxu0
        %4397 = vmatprep.mubr.bf16.mxu0 0
        %4398 = vmatmul.mubr.bf16.gmra.mxu0 %v3931
        %v4399 = vpop.f32.mrf.mxu0
        %v4400 = vadd.f32 %v4239, %v4399
        %v4401 = vpop.f32.mrf.mxu0
        %v4402 = vpop.f32.mrf.mxu0
        %v4403 = vadd.f32 %v4242, %v4402
        %v4404 = vpop.f32.mrf.mxu0
        %4405 = vmatprep.mubr.bf16.mxu0 0
        %4406 = vmatmul.mubr.bf16.gmra.mxu0 %v3934
        %v4407 = vpop.f32.mrf.mxu0
        %v4408 = vadd.f32 %v4247, %v4407
        %v4409 = vpop.f32.mrf.mxu0
        %v4410 = vpop.f32.mrf.mxu0
        %v4411 = vadd.f32 %v4250, %v4410
        %v4412 = vpop.f32.mrf.mxu0
        %4413 = vmatprep.mubr.bf16.mxu0 0
        %4414 = vmatmul.mubr.bf16.gmra.mxu0 %v3937
        %v4415 = vpop.f32.mrf.mxu0
        %v4416 = vadd.f32 %v4255, %v4415
        %v4417 = vpop.f32.mrf.mxu0
        %v4418 = vpop.f32.mrf.mxu0
        %v4419 = vadd.f32 %v4258, %v4418
        %v4420 = vpop.f32.mrf.mxu0
        %4421 = vmatprep.mubr.bf16.mxu0 0
        %4422 = vmatmul.mubr.bf16.gmra.mxu0 %v3940
        %v4423 = vpop.f32.mrf.mxu0
        %v4424 = vadd.f32 %v4263, %v4423
        %v4425 = vpop.f32.mrf.mxu0
        %v4426 = vpop.f32.mrf.mxu0
        %v4427 = vadd.f32 %v4266, %v4426
        %v4428 = vpop.f32.mrf.mxu0
        %4429 = vmatprep.mubr.bf16.mxu0 0
        %4430 = vmatmul.mubr.bf16.gmra.mxu0 %v3943
        %v4431 = vpop.f32.mrf.mxu0
        %v4432 = vadd.f32 %v4271, %v4431
        %v4433 = vpop.f32.mrf.mxu0
        %v4434 = vpop.f32.mrf.mxu0
        %v4435 = vadd.f32 %v4274, %v4434
        %v4436 = vpop.f32.mrf.mxu0
        %4437 = vmatprep.mubr.bf16.mxu0 0
        %4438 = vmatmul.mubr.bf16.gmra.mxu0 %v3946
        %v4439 = vpop.f32.mrf.mxu0
        %v4440 = vadd.f32 %v4279, %v4439
        %v4441 = vpop.f32.mrf.mxu0
        %v4442 = vpop.f32.mrf.mxu0
        %v4443 = vadd.f32 %v4282, %v4442
        %v4444 = vpop.f32.mrf.mxu0
        %4445 = vmatprep.mubr.bf16.mxu0 0
        %4446 = vmatmul.mubr.bf16.gmra.mxu0 %v3949
        %v4447 = vpop.f32.mrf.mxu0
        %v4448 = vadd.f32 %v4287, %v4447
        %v4449 = vpop.f32.mrf.mxu0
        %v4450 = vpop.f32.mrf.mxu0
        %v4451 = vadd.f32 %v4290, %v4450
        %v4452 = vpop.f32.mrf.mxu0
        %4453 = vmatprep.mubr.bf16.mxu0 0
        %4454 = vmatmul.mubr.bf16.gmra.mxu0 %v3952
        %v4455 = vpop.f32.mrf.mxu0
        %v4456 = vadd.f32 %v4295, %v4455
        %v4457 = vpop.f32.mrf.mxu0
        %v4458 = vpop.f32.mrf.mxu0
        %v4459 = vadd.f32 %v4298, %v4458
        %v4460 = vpop.f32.mrf.mxu0
        %4461 = vmatprep.mubr.bf16.mxu0 0
        %4462 = vmatmul.mubr.bf16.gmra.mxu0 %v3955
        %v4463 = vpop.f32.mrf.mxu0
        %v4464 = vadd.f32 %v4303, %v4463
        %v4465 = vpop.f32.mrf.mxu0
        %v4466 = vpop.f32.mrf.mxu0
        %v4467 = vadd.f32 %v4306, %v4466
        %v4468 = vpop.f32.mrf.mxu0
        %4469 = vdwg.mxu0
        %4470 = vst [vmem:[#allocation3] sm:$0xff] %v4344
        %4471 = vst [vmem:[#allocation3 + $0x8] sm:$0xff] %v4347
        %4472 = vst [vmem:[#allocation3 + $0x10] sm:$0xff] %v4352
        %4473 = vst [vmem:[#allocation3 + $0x18] sm:$0xff] %v4355
        %4474 = vst [vmem:[#allocation3 + $0x20] sm:$0xff] %v4360
        %4475 = vst [vmem:[#allocation3 + $0x28] sm:$0xff] %v4363
        %4476 = vst [vmem:[#allocation3 + $0x30] sm:$0xff] %v4368
        %4477 = vst [vmem:[#allocation3 + $0x38] sm:$0xff] %v4371
        %4478 = vst [vmem:[#allocation3 + $0x40] sm:$0xff] %v4376
        %4479 = vst [vmem:[#allocation3 + $0x48] sm:$0xff] %v4379
        %4480 = vst [vmem:[#allocation3 + $0x50] sm:$0xff] %v4384
        %4481 = vst [vmem:[#allocation3 + $0x58] sm:$0xff] %v4387
        %4482 = vst [vmem:[#allocation3 + $0x60] sm:$0xff] %v4392
        %4483 = vst [vmem:[#allocation3 + $0x68] sm:$0xff] %v4395
        %4484 = vst [vmem:[#allocation3 + $0x70] sm:$0xff] %v4400
        %4485 = vst [vmem:[#allocation3 + $0x78] sm:$0xff] %v4403
        %4486 = vst [vmem:[#allocation3 + $0x80] sm:$0xff] %v4408
        %4487 = vst [vmem:[#allocation3 + $0x88] sm:$0xff] %v4411
        %4488 = vst [vmem:[#allocation3 + $0x90] sm:$0xff] %v4416
        %4489 = vst [vmem:[#allocation3 + $0x98] sm:$0xff] %v4419
        %4490 = vst [vmem:[#allocation3 + $0xa0] sm:$0xff] %v4424
        %4491 = vst [vmem:[#allocation3 + $0xa8] sm:$0xff] %v4427
        %4492 = vst [vmem:[#allocation3 + $0xb0] sm:$0xff] %v4432
        %4493 = vst [vmem:[#allocation3 + $0xb8] sm:$0xff] %v4435
        %4494 = vst [vmem:[#allocation3 + $0xc0] sm:$0xff] %v4440
        %4495 = vst [vmem:[#allocation3 + $0xc8] sm:$0xff] %v4443
        %4496 = vst [vmem:[#allocation3 + $0xd0] sm:$0xff] %v4448
        %4497 = vst [vmem:[#allocation3 + $0xd8] sm:$0xff] %v4451
        %4498 = vst [vmem:[#allocation3 + $0xe0] sm:$0xff] %v4456
        %4499 = vst [vmem:[#allocation3 + $0xe8] sm:$0xff] %v4459
        %4500 = vst [vmem:[#allocation3 + $0xf0] sm:$0xff] %v4464
        %4501 = vst [vmem:[#allocation3 + $0xf8] sm:$0xff] %v4467
        %v4502 = vld [vmem:[%s1387] sm:$0xff]
        %v4503 = vld [vmem:[%s1387 + $0x8] sm:$0xf]
        %v4504 = vld [vmem:[%s1387 + $0xc] sm:$0xff]
        %v4505 = vld [vmem:[%s1387 + $0x14] sm:$0xf]
        %v4506 = vld [vmem:[%s1387 + $0x18] sm:$0xff]
        %v4507 = vld [vmem:[%s1387 + $0x20] sm:$0xf]
        %v4508 = vld [vmem:[%s1387 + $0x24] sm:$0xff]
        %v4509 = vld [vmem:[%s1387 + $0x2c] sm:$0xf]
        %v4510 = vld [vmem:[%s1387 + $0x30] sm:$0xff]
        %v4511 = vld [vmem:[%s1387 + $0x38] sm:$0xf]
        %v4512 = vld [vmem:[%s1387 + $0x3c] sm:$0xff]
        %v4513 = vld [vmem:[%s1387 + $0x44] sm:$0xf]
        %v4514 = vld [vmem:[%s1387 + $0x48] sm:$0xff]
        %v4515 = vld [vmem:[%s1387 + $0x50] sm:$0xf]
        %v4516 = vld [vmem:[%s1387 + $0x54] sm:$0xff]
        %v4517 = vld [vmem:[%s1387 + $0x5c] sm:$0xf]
        %v4518 = vld [vmem:[%s1387 + $0x60] sm:$0xff]
        %v4519 = vld [vmem:[%s1387 + $0x68] sm:$0xf]
        %v4520 = vld [vmem:[%s1387 + $0x6c] sm:$0xff]
        %v4521 = vld [vmem:[%s1387 + $0x74] sm:$0xf]
        %v4522 = vld [vmem:[%s1387 + $0x78] sm:$0xff]
        %v4523 = vld [vmem:[%s1387 + $0x80] sm:$0xf]
        %v4524 = vld [vmem:[%s1387 + $0x84] sm:$0xff]
        %v4525 = vld [vmem:[%s1387 + $0x8c] sm:$0xf]
        %v4526 = vld [vmem:[%s1387 + $0x90] sm:$0xff]
        %v4527 = vld [vmem:[%s1387 + $0x98] sm:$0xf]
        %v4528 = vld [vmem:[%s1387 + $0x9c] sm:$0xff]
        %v4529 = vld [vmem:[%s1387 + $0xa4] sm:$0xf]
        %v4530 = vld [vmem:[%s1387 + $0xa8] sm:$0xff]
        %v4531 = vld [vmem:[%s1387 + $0xb0] sm:$0xf]
        %v4532 = vld [vmem:[%s1387 + $0xb4] sm:$0xff]
        %v4533 = vld [vmem:[%s1387 + $0xbc] sm:$0xf]
        %v4534 = vld [vmem:[%s1387 + $0xc0] sm:$0xff]
        %v4535 = vld [vmem:[%s1387 + $0xc8] sm:$0xf]
        %v4536 = vld [vmem:[%s1387 + $0xcc] sm:$0xff]
        %v4537 = vld [vmem:[%s1387 + $0xd4] sm:$0xf]
        %v4538 = vld [vmem:[%s1387 + $0xd8] sm:$0xff]
        %v4539 = vld [vmem:[%s1387 + $0xe0] sm:$0xf]
        %v4540 = vld [vmem:[%s1387 + $0xe4] sm:$0xff]
        %v4541 = vld [vmem:[%s1387 + $0xec] sm:$0xf]
        %v4542 = vld [vmem:[%s1387 + $0xf0] sm:$0xff]
        %v4543 = vld [vmem:[%s1387 + $0xf8] sm:$0xf]
        %v4544 = vld [vmem:[%s1387 + $0xfc] sm:$0xff]
        %v4545 = vld [vmem:[%s1387 + $0x104] sm:$0xf]
        %v4546 = vld [vmem:[%s1387 + $0x108] sm:$0xff]
        %v4547 = vld [vmem:[%s1387 + $0x110] sm:$0xf]
        %v4548 = vld [vmem:[%s1387 + $0x114] sm:$0xff]
        %v4549 = vld [vmem:[%s1387 + $0x11c] sm:$0xf]
        %v4550 = vld [vmem:[%s1387 + $0x120] sm:$0xff]
        %v4551 = vld [vmem:[%s1387 + $0x128] sm:$0xf]
        %v4552 = vld [vmem:[%s1387 + $0x12c] sm:$0xff]
        %v4553 = vld [vmem:[%s1387 + $0x134] sm:$0xf]
        %v4554 = vld [vmem:[%s1387 + $0x138] sm:$0xff]
        %v4555 = vld [vmem:[%s1387 + $0x140] sm:$0xf]
        %v4556 = vld [vmem:[%s1387 + $0x144] sm:$0xff]
        %v4557 = vld [vmem:[%s1387 + $0x14c] sm:$0xf]
        %v4558 = vld [vmem:[%s1387 + $0x150] sm:$0xff]
        %v4559 = vld [vmem:[%s1387 + $0x158] sm:$0xf]
        %v4560 = vld [vmem:[%s1387 + $0x15c] sm:$0xff]
        %v4561 = vld [vmem:[%s1387 + $0x164] sm:$0xf]
        %v4562 = vld [vmem:[%s1387 + $0x168] sm:$0xff]
        %v4563 = vld [vmem:[%s1387 + $0x170] sm:$0xf]
        %v4564 = vld [vmem:[%s1387 + $0x174] sm:$0xff]
        %v4565 = vld [vmem:[%s1387 + $0x17c] sm:$0xf]
        %s4566 = scalar_lea.vmem [#allocation9], 768
        %v4567 = vld [vmem:[%s4566] sm:$0xf]
        %v4568 = vld [vmem:[%s4566 + $0x4] sm:$0xf]
        %v4569 = vld [vmem:[%s4566 + $0x8] sm:$0xf]
        %v4570 = vld [vmem:[%s4566 + $0xc] sm:$0xf]
        %v4571 = vld [vmem:[%s4566 + $0x10] sm:$0xf]
        %v4572 = vld [vmem:[%s4566 + $0x14] sm:$0xf]
        %v4573 = vld [vmem:[%s4566 + $0x18] sm:$0xf]
        %v4574 = vld [vmem:[%s4566 + $0x1c] sm:$0xf]
        %v4575 = vld [vmem:[%s4566 + $0x20] sm:$0xf]
        %v4576 = vld [vmem:[%s4566 + $0x24] sm:$0xf]
        %v4577 = vld [vmem:[%s4566 + $0x28] sm:$0xf]
        %v4578 = vld [vmem:[%s4566 + $0x2c] sm:$0xf]
        %v4579 = vld [vmem:[%s4566 + $0x30] sm:$0xf]
        %v4580 = vld [vmem:[%s4566 + $0x34] sm:$0xf]
        %v4581 = vld [vmem:[%s4566 + $0x38] sm:$0xf]
        %v4582 = vld [vmem:[%s4566 + $0x3c] sm:$0xf]
        %v4583 = vld [vmem:[%s4566 + $0x40] sm:$0xf]
        %v4584 = vld [vmem:[%s4566 + $0x44] sm:$0xf]
        %v4585 = vld [vmem:[%s4566 + $0x48] sm:$0xf]
        %v4586 = vld [vmem:[%s4566 + $0x4c] sm:$0xf]
        %v4587 = vld [vmem:[%s4566 + $0x50] sm:$0xf]
        %v4588 = vld [vmem:[%s4566 + $0x54] sm:$0xf]
        %v4589 = vld [vmem:[%s4566 + $0x58] sm:$0xf]
        %v4590 = vld [vmem:[%s4566 + $0x5c] sm:$0xf]
        %v4591 = vld [vmem:[%s4566 + $0x60] sm:$0xf]
        %v4592 = vld [vmem:[%s4566 + $0x64] sm:$0xf]
        %v4593 = vld [vmem:[%s4566 + $0x68] sm:$0xf]
        %v4594 = vld [vmem:[%s4566 + $0x6c] sm:$0xf]
        %v4595 = vld [vmem:[%s4566 + $0x70] sm:$0xf]
        %v4596 = vld [vmem:[%s4566 + $0x74] sm:$0xf]
        %v4597 = vld [vmem:[%s4566 + $0x78] sm:$0xf]
        %v4598 = vld [vmem:[%s4566 + $0x7c] sm:$0xf]
        %v4599 = vld [vmem:[%s4566 + $0x80] sm:$0xf]
        %v4600 = vld [vmem:[%s4566 + $0x84] sm:$0xf]
        %v4601 = vld [vmem:[%s4566 + $0x88] sm:$0xf]
        %v4602 = vld [vmem:[%s4566 + $0x8c] sm:$0xf]
        %v4603 = vld [vmem:[%s4566 + $0x90] sm:$0xf]
        %v4604 = vld [vmem:[%s4566 + $0x94] sm:$0xf]
        %v4605 = vld [vmem:[%s4566 + $0x98] sm:$0xf]
        %v4606 = vld [vmem:[%s4566 + $0x9c] sm:$0xf]
        %v4607 = vld [vmem:[%s4566 + $0xa0] sm:$0xf]
        %v4608 = vld [vmem:[%s4566 + $0xa4] sm:$0xf]
        %v4609 = vld [vmem:[%s4566 + $0xa8] sm:$0xf]
        %v4610 = vld [vmem:[%s4566 + $0xac] sm:$0xf]
        %v4611 = vld [vmem:[%s4566 + $0xb0] sm:$0xf]
        %v4612 = vld [vmem:[%s4566 + $0xb4] sm:$0xf]
        %v4613 = vld [vmem:[%s4566 + $0xb8] sm:$0xf]
        %v4614 = vld [vmem:[%s4566 + $0xbc] sm:$0xf]
        %v4679 = vunpack.c.l.b16 %v4502
        %v4680 = vunpack.c.h.b16 %v4502
        %v4681 = vunpack.c.l.b16 %v4503
        %v4682 = vunpack.c.l.b16 %v4504
        %v4683 = vunpack.c.h.b16 %v4504
        %v4684 = vunpack.c.l.b16 %v4505
        %v4685 = vunpack.c.l.b16 %v4506
        %v4686 = vunpack.c.h.b16 %v4506
        %v4687 = vunpack.c.l.b16 %v4507
        %v4688 = vunpack.c.l.b16 %v4508
        %v4689 = vunpack.c.h.b16 %v4508
        %v4690 = vunpack.c.l.b16 %v4509
        %v4691 = vunpack.c.l.b16 %v4510
        %v4692 = vunpack.c.h.b16 %v4510
        %v4693 = vunpack.c.l.b16 %v4511
        %v4694 = vunpack.c.l.b16 %v4512
        %v4695 = vunpack.c.h.b16 %v4512
        %v4696 = vunpack.c.l.b16 %v4513
        %v4697 = vunpack.c.l.b16 %v4514
        %v4698 = vunpack.c.h.b16 %v4514
        %v4699 = vunpack.c.l.b16 %v4515
        %v4700 = vunpack.c.l.b16 %v4516
        %v4701 = vunpack.c.h.b16 %v4516
        %v4702 = vunpack.c.l.b16 %v4517
        %v4703 = vunpack.c.l.b16 %v4518
        %v4704 = vunpack.c.h.b16 %v4518
        %v4705 = vunpack.c.l.b16 %v4519
        %v4706 = vunpack.c.l.b16 %v4520
        %v4707 = vunpack.c.h.b16 %v4520
        %v4708 = vunpack.c.l.b16 %v4521
        %v4709 = vunpack.c.l.b16 %v4522
        %v4710 = vunpack.c.h.b16 %v4522
        %v4711 = vunpack.c.l.b16 %v4523
        %v4712 = vunpack.c.l.b16 %v4524
        %v4713 = vunpack.c.h.b16 %v4524
        %v4714 = vunpack.c.l.b16 %v4525
        %v4715 = vunpack.c.l.b16 %v4526
        %v4716 = vunpack.c.h.b16 %v4526
        %v4717 = vunpack.c.l.b16 %v4527
        %v4718 = vunpack.c.l.b16 %v4528
        %v4719 = vunpack.c.h.b16 %v4528
        %v4720 = vunpack.c.l.b16 %v4529
        %v4721 = vunpack.c.l.b16 %v4530
        %v4722 = vunpack.c.h.b16 %v4530
        %v4723 = vunpack.c.l.b16 %v4531
        %v4724 = vunpack.c.l.b16 %v4532
        %v4725 = vunpack.c.h.b16 %v4532
        %v4726 = vunpack.c.l.b16 %v4533
        %v4727 = vunpack.c.l.b16 %v4534
        %v4728 = vunpack.c.h.b16 %v4534
        %v4729 = vunpack.c.l.b16 %v4535
        %v4730 = vunpack.c.l.b16 %v4536
        %v4731 = vunpack.c.h.b16 %v4536
        %v4732 = vunpack.c.l.b16 %v4537
        %v4733 = vunpack.c.l.b16 %v4538
        %v4734 = vunpack.c.h.b16 %v4538
        %v4735 = vunpack.c.l.b16 %v4539
        %v4736 = vunpack.c.l.b16 %v4540
        %v4737 = vunpack.c.h.b16 %v4540
        %v4738 = vunpack.c.l.b16 %v4541
        %v4739 = vunpack.c.l.b16 %v4542
        %v4740 = vunpack.c.h.b16 %v4542
        %v4741 = vunpack.c.l.b16 %v4543
        %v4742 = vunpack.c.l.b16 %v4544
        %v4743 = vunpack.c.h.b16 %v4544
        %v4744 = vunpack.c.l.b16 %v4545
        %v4745 = vunpack.c.l.b16 %v4546
        %v4746 = vunpack.c.h.b16 %v4546
        %v4747 = vunpack.c.l.b16 %v4547
        %v4748 = vunpack.c.l.b16 %v4548
        %v4749 = vunpack.c.h.b16 %v4548
        %v4750 = vunpack.c.l.b16 %v4549
        %v4751 = vunpack.c.l.b16 %v4550
        %v4752 = vunpack.c.h.b16 %v4550
        %v4753 = vunpack.c.l.b16 %v4551
        %v4754 = vunpack.c.l.b16 %v4552
        %v4755 = vunpack.c.h.b16 %v4552
        %v4756 = vunpack.c.l.b16 %v4553
        %v4757 = vunpack.c.l.b16 %v4554
        %v4758 = vunpack.c.h.b16 %v4554
        %v4759 = vunpack.c.l.b16 %v4555
        %v4760 = vunpack.c.l.b16 %v4556
        %v4761 = vunpack.c.h.b16 %v4556
        %v4762 = vunpack.c.l.b16 %v4557
        %v4763 = vunpack.c.l.b16 %v4558
        %v4764 = vunpack.c.h.b16 %v4558
        %v4765 = vunpack.c.l.b16 %v4559
        %v4766 = vunpack.c.l.b16 %v4560
        %v4767 = vunpack.c.h.b16 %v4560
        %v4768 = vunpack.c.l.b16 %v4561
        %v4769 = vunpack.c.l.b16 %v4562
        %v4770 = vunpack.c.h.b16 %v4562
        %v4771 = vunpack.c.l.b16 %v4563
        %v4772 = vunpack.c.l.b16 %v4564
        %v4773 = vunpack.c.h.b16 %v4564
        %v4774 = vunpack.c.l.b16 %v4565
        %v4775 = vpack.c.b16 %v4682, %v4679
        %v4776 = vpack.c.b16 %v4683, %v4680
        %v4777 = vpack.c.b16 %v4684, %v4681
        %v4778 = vpack.c.b16 %v4688, %v4685
        %v4779 = vpack.c.b16 %v4689, %v4686
        %v4780 = vpack.c.b16 %v4690, %v4687
        %v4781 = vpack.c.b16 %v4694, %v4691
        %v4782 = vpack.c.b16 %v4695, %v4692
        %v4783 = vpack.c.b16 %v4696, %v4693
        %v4784 = vpack.c.b16 %v4700, %v4697
        %v4785 = vpack.c.b16 %v4701, %v4698
        %v4786 = vpack.c.b16 %v4702, %v4699
        %v4787 = vpack.c.b16 %v4706, %v4703
        %v4788 = vpack.c.b16 %v4707, %v4704
        %v4789 = vpack.c.b16 %v4708, %v4705
        %v4790 = vpack.c.b16 %v4712, %v4709
        %v4791 = vpack.c.b16 %v4713, %v4710
        %v4792 = vpack.c.b16 %v4714, %v4711
        %v4793 = vpack.c.b16 %v4718, %v4715
        %v4794 = vpack.c.b16 %v4719, %v4716
        %v4795 = vpack.c.b16 %v4720, %v4717
        %v4796 = vpack.c.b16 %v4724, %v4721
        %v4797 = vpack.c.b16 %v4725, %v4722
        %v4798 = vpack.c.b16 %v4726, %v4723
        %v4799 = vpack.c.b16 %v4730, %v4727
        %v4800 = vpack.c.b16 %v4731, %v4728
        %v4801 = vpack.c.b16 %v4732, %v4729
        %v4802 = vpack.c.b16 %v4736, %v4733
        %v4803 = vpack.c.b16 %v4737, %v4734
        %v4804 = vpack.c.b16 %v4738, %v4735
        %v4805 = vpack.c.b16 %v4742, %v4739
        %v4806 = vpack.c.b16 %v4743, %v4740
        %v4807 = vpack.c.b16 %v4744, %v4741
        %v4808 = vpack.c.b16 %v4748, %v4745
        %v4809 = vpack.c.b16 %v4749, %v4746
        %v4810 = vpack.c.b16 %v4750, %v4747
        %v4811 = vpack.c.b16 %v4754, %v4751
        %v4812 = vpack.c.b16 %v4755, %v4752
        %v4813 = vpack.c.b16 %v4756, %v4753
        %v4814 = vpack.c.b16 %v4760, %v4757
        %v4815 = vpack.c.b16 %v4761, %v4758
        %v4816 = vpack.c.b16 %v4762, %v4759
        %v4817 = vpack.c.b16 %v4766, %v4763
        %v4818 = vpack.c.b16 %v4767, %v4764
        %v4819 = vpack.c.b16 %v4768, %v4765
        %v4820 = vpack.c.b16 %v4772, %v4769
        %v4821 = vpack.c.b16 %v4773, %v4770
        %v4822 = vpack.c.b16 %v4774, %v4771
        %v4919 = vunpack.c.l.b16 %v4567
        %v4920 = vunpack.c.l.b16 %v4568
        %v4921 = vunpack.c.l.b16 %v4569
        %v4922 = vunpack.c.l.b16 %v4570
        %v4923 = vunpack.c.l.b16 %v4571
        %v4924 = vunpack.c.l.b16 %v4572
        %v4925 = vunpack.c.l.b16 %v4573
        %v4926 = vunpack.c.l.b16 %v4574
        %v4927 = vunpack.c.l.b16 %v4575
        %v4928 = vunpack.c.l.b16 %v4576
        %v4929 = vunpack.c.l.b16 %v4577
        %v4930 = vunpack.c.l.b16 %v4578
        %v4931 = vunpack.c.l.b16 %v4579
        %v4932 = vunpack.c.l.b16 %v4580
        %v4933 = vunpack.c.l.b16 %v4581
        %v4934 = vunpack.c.l.b16 %v4582
        %v4935 = vunpack.c.l.b16 %v4583
        %v4936 = vunpack.c.l.b16 %v4584
        %v4937 = vunpack.c.l.b16 %v4585
        %v4938 = vunpack.c.l.b16 %v4586
        %v4939 = vunpack.c.l.b16 %v4587
        %v4940 = vunpack.c.l.b16 %v4588
        %v4941 = vunpack.c.l.b16 %v4589
        %v4942 = vunpack.c.l.b16 %v4590
        %v4943 = vunpack.c.l.b16 %v4591
        %v4944 = vunpack.c.l.b16 %v4592
        %v4945 = vunpack.c.l.b16 %v4593
        %v4946 = vunpack.c.l.b16 %v4594
        %v4947 = vunpack.c.l.b16 %v4595
        %v4948 = vunpack.c.l.b16 %v4596
        %v4949 = vunpack.c.l.b16 %v4597
        %v4950 = vunpack.c.l.b16 %v4598
        %v4951 = vunpack.c.l.b16 %v4599
        %v4952 = vunpack.c.l.b16 %v4600
        %v4953 = vunpack.c.l.b16 %v4601
        %v4954 = vunpack.c.l.b16 %v4602
        %v4955 = vunpack.c.l.b16 %v4603
        %v4956 = vunpack.c.l.b16 %v4604
        %v4957 = vunpack.c.l.b16 %v4605
        %v4958 = vunpack.c.l.b16 %v4606
        %v4959 = vunpack.c.l.b16 %v4607
        %v4960 = vunpack.c.l.b16 %v4608
        %v4961 = vunpack.c.l.b16 %v4609
        %v4962 = vunpack.c.l.b16 %v4610
        %v4963 = vunpack.c.l.b16 %v4611
        %v4964 = vunpack.c.l.b16 %v4612
        %v4965 = vunpack.c.l.b16 %v4613
        %v4966 = vunpack.c.l.b16 %v4614
        %v4967 = vpack.c.b16 %v4920, %v4919
        %v4968 = vpack.c.b16 %v4922, %v4921
        %v4969 = vpack.c.b16 %v4924, %v4923
        %v4970 = vpack.c.b16 %v4926, %v4925
        %v4971 = vpack.c.b16 %v4928, %v4927
        %v4972 = vpack.c.b16 %v4930, %v4929
        %v4973 = vpack.c.b16 %v4932, %v4931
        %v4974 = vpack.c.b16 %v4934, %v4933
        %v4975 = vpack.c.b16 %v4936, %v4935
        %v4976 = vpack.c.b16 %v4938, %v4937
        %v4977 = vpack.c.b16 %v4940, %v4939
        %v4978 = vpack.c.b16 %v4942, %v4941
        %v4979 = vpack.c.b16 %v4944, %v4943
        %v4980 = vpack.c.b16 %v4946, %v4945
        %v4981 = vpack.c.b16 %v4948, %v4947
        %v4982 = vpack.c.b16 %v4950, %v4949
        %v4983 = vpack.c.b16 %v4952, %v4951
        %v4984 = vpack.c.b16 %v4954, %v4953
        %v4985 = vpack.c.b16 %v4956, %v4955
        %v4986 = vpack.c.b16 %v4958, %v4957
        %v4987 = vpack.c.b16 %v4960, %v4959
        %v4988 = vpack.c.b16 %v4962, %v4961
        %v4989 = vpack.c.b16 %v4964, %v4963
        %v4990 = vpack.c.b16 %v4966, %v4965
        %5015 = vmatprep.subr.bf16.mxu0 0
        %5016 = vmatpush1.bf16.msra.mxu0 %v4974
        %5017 = vmatprep.subr.bf16.mxu0 0
        %5018 = vmatpush1.bf16.msra.mxu0 %v4973
        %5019 = vmatprep.subr.bf16.mxu0 0
        %5020 = vmatpush1.bf16.msra.mxu0 %v4972
        %5021 = vmatprep.subr.bf16.mxu0 0
        %5022 = vmatpush1.bf16.msra.mxu0 %v4971
        %5023 = vmatprep.subr.bf16.mxu0 0
        %5024 = vmatpush1.bf16.msra.mxu0 %v4970
        %5025 = vmatprep.subr.bf16.mxu0 0
        %5026 = vmatpush1.bf16.msra.mxu0 %v4969
        %5027 = vmatprep.subr.bf16.mxu0 0
        %5028 = vmatpush1.bf16.msra.mxu0 %v4968
        %5029 = vmatprep.subr.bf16.mxu0 0
        %5030 = vmatpush1.bf16.msra.mxu0 %v4967
        %5031 = vmatprep.subr.bf16.mxu0 0
        %5032 = vmatpush2.bf16.msra.mxu0 %v4982
        %5033 = vmatprep.subr.bf16.mxu0 0
        %5034 = vmatpush2.bf16.msra.mxu0 %v4981
        %5035 = vmatprep.subr.bf16.mxu0 0
        %5036 = vmatpush2.bf16.msra.mxu0 %v4980
        %5037 = vmatprep.subr.bf16.mxu0 0
        %5038 = vmatpush2.bf16.msra.mxu0 %v4979
        %5039 = vmatprep.subr.bf16.mxu0 0
        %5040 = vmatpush2.bf16.msra.mxu0 %v4978
        %5041 = vmatprep.subr.bf16.mxu0 0
        %5042 = vmatpush2.bf16.msra.mxu0 %v4977
        %5043 = vmatprep.subr.bf16.mxu0 0
        %5044 = vmatpush2.bf16.msra.mxu0 %v4976
        %5045 = vmatprep.subr.bf16.mxu0 0
        %5046 = vmatpush2.bf16.msra.mxu0 %v4975
        %5047 = vmatprep.mubr.bf16.mxu0 %v4776
        %5048 = vmatmul.mubr.bf16.gmra.mxu0 %v4775
        %v5049 = vpop.f32.mrf.mxu0
        %v5050 = vadd.f32 0.0, %v5049
        %v5051 = vpop.f32.mrf.mxu0
        %v5052 = vpop.f32.mrf.mxu0
        %v5053 = vadd.f32 0.0, %v5052
        %v5054 = vpop.f32.mrf.mxu0
        %5055 = vmatprep.mubr.bf16.mxu0 %v4779
        %5056 = vmatmul.mubr.bf16.gmra.mxu0 %v4778
        %v5057 = vpop.f32.mrf.mxu0
        %v5058 = vadd.f32 0.0, %v5057
        %v5059 = vpop.f32.mrf.mxu0
        %v5060 = vpop.f32.mrf.mxu0
        %v5061 = vadd.f32 0.0, %v5060
        %v5062 = vpop.f32.mrf.mxu0
        %5063 = vmatprep.mubr.bf16.mxu0 %v4782
        %5064 = vmatmul.mubr.bf16.gmra.mxu0 %v4781
        %v5065 = vpop.f32.mrf.mxu0
        %v5066 = vadd.f32 0.0, %v5065
        %v5067 = vpop.f32.mrf.mxu0
        %v5068 = vpop.f32.mrf.mxu0
        %v5069 = vadd.f32 0.0, %v5068
        %v5070 = vpop.f32.mrf.mxu0
        %5071 = vmatprep.mubr.bf16.mxu0 %v4785
        %5072 = vmatmul.mubr.bf16.gmra.mxu0 %v4784
        %v5073 = vpop.f32.mrf.mxu0
        %v5074 = vadd.f32 0.0, %v5073
        %v5075 = vpop.f32.mrf.mxu0
        %v5076 = vpop.f32.mrf.mxu0
        %v5077 = vadd.f32 0.0, %v5076
        %v5078 = vpop.f32.mrf.mxu0
        %5079 = vmatprep.mubr.bf16.mxu0 %v4788
        %5080 = vmatmul.mubr.bf16.gmra.mxu0 %v4787
        %v5081 = vpop.f32.mrf.mxu0
        %v5082 = vadd.f32 0.0, %v5081
        %v5083 = vpop.f32.mrf.mxu0
        %v5084 = vpop.f32.mrf.mxu0
        %v5085 = vadd.f32 0.0, %v5084
        %v5086 = vpop.f32.mrf.mxu0
        %5087 = vmatprep.mubr.bf16.mxu0 %v4791
        %5088 = vmatmul.mubr.bf16.gmra.mxu0 %v4790
        %v5089 = vpop.f32.mrf.mxu0
        %v5090 = vadd.f32 0.0, %v5089
        %v5091 = vpop.f32.mrf.mxu0
        %v5092 = vpop.f32.mrf.mxu0
        %v5093 = vadd.f32 0.0, %v5092
        %v5094 = vpop.f32.mrf.mxu0
        %5095 = vmatprep.mubr.bf16.mxu0 %v4794
        %5096 = vmatmul.mubr.bf16.gmra.mxu0 %v4793
        %v5097 = vpop.f32.mrf.mxu0
        %v5098 = vadd.f32 0.0, %v5097
        %v5099 = vpop.f32.mrf.mxu0
        %v5100 = vpop.f32.mrf.mxu0
        %v5101 = vadd.f32 0.0, %v5100
        %v5102 = vpop.f32.mrf.mxu0
        %5103 = vmatprep.mubr.bf16.mxu0 %v4797
        %5104 = vmatmul.mubr.bf16.gmra.mxu0 %v4796
        %v5105 = vpop.f32.mrf.mxu0
        %v5106 = vadd.f32 0.0, %v5105
        %v5107 = vpop.f32.mrf.mxu0
        %v5108 = vpop.f32.mrf.mxu0
        %v5109 = vadd.f32 0.0, %v5108
        %v5110 = vpop.f32.mrf.mxu0
        %5111 = vmatprep.mubr.bf16.mxu0 %v4800
        %5112 = vmatmul.mubr.bf16.gmra.mxu0 %v4799
        %v5113 = vpop.f32.mrf.mxu0
        %v5114 = vadd.f32 0.0, %v5113
        %v5115 = vpop.f32.mrf.mxu0
        %v5116 = vpop.f32.mrf.mxu0
        %v5117 = vadd.f32 0.0, %v5116
        %v5118 = vpop.f32.mrf.mxu0
        %5119 = vmatprep.mubr.bf16.mxu0 %v4803
        %5120 = vmatmul.mubr.bf16.gmra.mxu0 %v4802
        %v5121 = vpop.f32.mrf.mxu0
        %v5122 = vadd.f32 0.0, %v5121
        %v5123 = vpop.f32.mrf.mxu0
        %v5124 = vpop.f32.mrf.mxu0
        %v5125 = vadd.f32 0.0, %v5124
        %v5126 = vpop.f32.mrf.mxu0
        %5127 = vmatprep.mubr.bf16.mxu0 %v4806
        %5128 = vmatmul.mubr.bf16.gmra.mxu0 %v4805
        %v5129 = vpop.f32.mrf.mxu0
        %v5130 = vadd.f32 0.0, %v5129
        %v5131 = vpop.f32.mrf.mxu0
        %v5132 = vpop.f32.mrf.mxu0
        %v5133 = vadd.f32 0.0, %v5132
        %v5134 = vpop.f32.mrf.mxu0
        %5135 = vmatprep.mubr.bf16.mxu0 %v4809
        %5136 = vmatmul.mubr.bf16.gmra.mxu0 %v4808
        %v5137 = vpop.f32.mrf.mxu0
        %v5138 = vadd.f32 0.0, %v5137
        %v5139 = vpop.f32.mrf.mxu0
        %v5140 = vpop.f32.mrf.mxu0
        %v5141 = vadd.f32 0.0, %v5140
        %v5142 = vpop.f32.mrf.mxu0
        %5143 = vmatprep.mubr.bf16.mxu0 %v4812
        %5144 = vmatmul.mubr.bf16.gmra.mxu0 %v4811
        %v5145 = vpop.f32.mrf.mxu0
        %v5146 = vadd.f32 0.0, %v5145
        %v5147 = vpop.f32.mrf.mxu0
        %v5148 = vpop.f32.mrf.mxu0
        %v5149 = vadd.f32 0.0, %v5148
        %v5150 = vpop.f32.mrf.mxu0
        %5151 = vmatprep.mubr.bf16.mxu0 %v4815
        %5152 = vmatmul.mubr.bf16.gmra.mxu0 %v4814
        %v5153 = vpop.f32.mrf.mxu0
        %v5154 = vadd.f32 0.0, %v5153
        %v5155 = vpop.f32.mrf.mxu0
        %v5156 = vpop.f32.mrf.mxu0
        %v5157 = vadd.f32 0.0, %v5156
        %v5158 = vpop.f32.mrf.mxu0
        %5159 = vmatprep.mubr.bf16.mxu0 %v4818
        %5160 = vmatmul.mubr.bf16.gmra.mxu0 %v4817
        %v5161 = vpop.f32.mrf.mxu0
        %v5162 = vadd.f32 0.0, %v5161
        %v5163 = vpop.f32.mrf.mxu0
        %v5164 = vpop.f32.mrf.mxu0
        %v5165 = vadd.f32 0.0, %v5164
        %v5166 = vpop.f32.mrf.mxu0
        %5167 = vmatprep.mubr.bf16.mxu0 %v4821
        %5168 = vmatmul.mubr.bf16.gmra.mxu0 %v4820
        %v5169 = vpop.f32.mrf.mxu0
        %v5170 = vadd.f32 0.0, %v5169
        %v5171 = vpop.f32.mrf.mxu0
        %v5172 = vpop.f32.mrf.mxu0
        %v5173 = vadd.f32 0.0, %v5172
        %v5174 = vpop.f32.mrf.mxu0
        %5175 = vdwg.mxu0
        %5176 = vmatprep.subr.bf16.mxu0 0
        %5177 = vmatpush1.bf16.msra.mxu0 %v4990
        %5178 = vmatprep.subr.bf16.mxu0 0
        %5179 = vmatpush1.bf16.msra.mxu0 %v4989
        %5180 = vmatprep.subr.bf16.mxu0 0
        %5181 = vmatpush1.bf16.msra.mxu0 %v4988
        %5182 = vmatprep.subr.bf16.mxu0 0
        %5183 = vmatpush1.bf16.msra.mxu0 %v4987
        %5184 = vmatprep.subr.bf16.mxu0 0
        %5185 = vmatpush1.bf16.msra.mxu0 %v4986
        %5186 = vmatprep.subr.bf16.mxu0 0
        %5187 = vmatpush1.bf16.msra.mxu0 %v4985
        %5188 = vmatprep.subr.bf16.mxu0 0
        %5189 = vmatpush1.bf16.msra.mxu0 %v4984
        %5190 = vmatprep.subr.bf16.mxu0 0
        %5191 = vmatpush1.bf16.msra.mxu0 %v4983
        %5192 = vmatprep.subr.bf16.mxu0 0
        %5193 = vmatpush2.bf16.msra.mxu0 0
        %5194 = vmatprep.subr.bf16.mxu0 0
        %5195 = vmatpush2.bf16.msra.mxu0 0
        %5196 = vmatprep.subr.bf16.mxu0 0
        %5197 = vmatpush2.bf16.msra.mxu0 0
        %5198 = vmatprep.subr.bf16.mxu0 0
        %5199 = vmatpush2.bf16.msra.mxu0 0
        %5200 = vmatprep.subr.bf16.mxu0 0
        %5201 = vmatpush2.bf16.msra.mxu0 0
        %5202 = vmatprep.subr.bf16.mxu0 0
        %5203 = vmatpush2.bf16.msra.mxu0 0
        %5204 = vmatprep.subr.bf16.mxu0 0
        %5205 = vmatpush2.bf16.msra.mxu0 0
        %5206 = vmatprep.subr.bf16.mxu0 0
        %5207 = vmatpush2.bf16.msra.mxu0 0
        %5208 = vmatprep.mubr.bf16.mxu0 0
        %5209 = vmatmul.mubr.bf16.gmra.mxu0 %v4777
        %v5210 = vpop.f32.mrf.mxu0
        %v5211 = vadd.f32 %v5050, %v5210
        %v5212 = vpop.f32.mrf.mxu0
        %v5213 = vpop.f32.mrf.mxu0
        %v5214 = vadd.f32 %v5053, %v5213
        %v5215 = vpop.f32.mrf.mxu0
        %5216 = vmatprep.mubr.bf16.mxu0 0
        %5217 = vmatmul.mubr.bf16.gmra.mxu0 %v4780
        %v5218 = vpop.f32.mrf.mxu0
        %v5219 = vadd.f32 %v5058, %v5218
        %v5220 = vpop.f32.mrf.mxu0
        %v5221 = vpop.f32.mrf.mxu0
        %v5222 = vadd.f32 %v5061, %v5221
        %v5223 = vpop.f32.mrf.mxu0
        %5224 = vmatprep.mubr.bf16.mxu0 0
        %5225 = vmatmul.mubr.bf16.gmra.mxu0 %v4783
        %v5226 = vpop.f32.mrf.mxu0
        %v5227 = vadd.f32 %v5066, %v5226
        %v5228 = vpop.f32.mrf.mxu0
        %v5229 = vpop.f32.mrf.mxu0
        %v5230 = vadd.f32 %v5069, %v5229
        %v5231 = vpop.f32.mrf.mxu0
        %5232 = vmatprep.mubr.bf16.mxu0 0
        %5233 = vmatmul.mubr.bf16.gmra.mxu0 %v4786
        %v5234 = vpop.f32.mrf.mxu0
        %v5235 = vadd.f32 %v5074, %v5234
        %v5236 = vpop.f32.mrf.mxu0
        %v5237 = vpop.f32.mrf.mxu0
        %v5238 = vadd.f32 %v5077, %v5237
        %v5239 = vpop.f32.mrf.mxu0
        %5240 = vmatprep.mubr.bf16.mxu0 0
        %5241 = vmatmul.mubr.bf16.gmra.mxu0 %v4789
        %v5242 = vpop.f32.mrf.mxu0
        %v5243 = vadd.f32 %v5082, %v5242
        %v5244 = vpop.f32.mrf.mxu0
        %v5245 = vpop.f32.mrf.mxu0
        %v5246 = vadd.f32 %v5085, %v5245
        %v5247 = vpop.f32.mrf.mxu0
        %5248 = vmatprep.mubr.bf16.mxu0 0
        %5249 = vmatmul.mubr.bf16.gmra.mxu0 %v4792
        %v5250 = vpop.f32.mrf.mxu0
        %v5251 = vadd.f32 %v5090, %v5250
        %v5252 = vpop.f32.mrf.mxu0
        %v5253 = vpop.f32.mrf.mxu0
        %v5254 = vadd.f32 %v5093, %v5253
        %v5255 = vpop.f32.mrf.mxu0
        %5256 = vmatprep.mubr.bf16.mxu0 0
        %5257 = vmatmul.mubr.bf16.gmra.mxu0 %v4795
        %v5258 = vpop.f32.mrf.mxu0
        %v5259 = vadd.f32 %v5098, %v5258
        %v5260 = vpop.f32.mrf.mxu0
        %v5261 = vpop.f32.mrf.mxu0
        %v5262 = vadd.f32 %v5101, %v5261
        %v5263 = vpop.f32.mrf.mxu0
        %5264 = vmatprep.mubr.bf16.mxu0 0
        %5265 = vmatmul.mubr.bf16.gmra.mxu0 %v4798
        %v5266 = vpop.f32.mrf.mxu0
        %v5267 = vadd.f32 %v5106, %v5266
        %v5268 = vpop.f32.mrf.mxu0
        %v5269 = vpop.f32.mrf.mxu0
        %v5270 = vadd.f32 %v5109, %v5269
        %v5271 = vpop.f32.mrf.mxu0
        %5272 = vmatprep.mubr.bf16.mxu0 0
        %5273 = vmatmul.mubr.bf16.gmra.mxu0 %v4801
        %v5274 = vpop.f32.mrf.mxu0
        %v5275 = vadd.f32 %v5114, %v5274
        %v5276 = vpop.f32.mrf.mxu0
        %v5277 = vpop.f32.mrf.mxu0
        %v5278 = vadd.f32 %v5117, %v5277
        %v5279 = vpop.f32.mrf.mxu0
        %5280 = vmatprep.mubr.bf16.mxu0 0
        %5281 = vmatmul.mubr.bf16.gmra.mxu0 %v4804
        %v5282 = vpop.f32.mrf.mxu0
        %v5283 = vadd.f32 %v5122, %v5282
        %v5284 = vpop.f32.mrf.mxu0
        %v5285 = vpop.f32.mrf.mxu0
        %v5286 = vadd.f32 %v5125, %v5285
        %v5287 = vpop.f32.mrf.mxu0
        %5288 = vmatprep.mubr.bf16.mxu0 0
        %5289 = vmatmul.mubr.bf16.gmra.mxu0 %v4807
        %v5290 = vpop.f32.mrf.mxu0
        %v5291 = vadd.f32 %v5130, %v5290
        %v5292 = vpop.f32.mrf.mxu0
        %v5293 = vpop.f32.mrf.mxu0
        %v5294 = vadd.f32 %v5133, %v5293
        %v5295 = vpop.f32.mrf.mxu0
        %5296 = vmatprep.mubr.bf16.mxu0 0
        %5297 = vmatmul.mubr.bf16.gmra.mxu0 %v4810
        %v5298 = vpop.f32.mrf.mxu0
        %v5299 = vadd.f32 %v5138, %v5298
        %v5300 = vpop.f32.mrf.mxu0
        %v5301 = vpop.f32.mrf.mxu0
        %v5302 = vadd.f32 %v5141, %v5301
        %v5303 = vpop.f32.mrf.mxu0
        %5304 = vmatprep.mubr.bf16.mxu0 0
        %5305 = vmatmul.mubr.bf16.gmra.mxu0 %v4813
        %v5306 = vpop.f32.mrf.mxu0
        %v5307 = vadd.f32 %v5146, %v5306
        %v5308 = vpop.f32.mrf.mxu0
        %v5309 = vpop.f32.mrf.mxu0
        %v5310 = vadd.f32 %v5149, %v5309
        %v5311 = vpop.f32.mrf.mxu0
        %5312 = vmatprep.mubr.bf16.mxu0 0
        %5313 = vmatmul.mubr.bf16.gmra.mxu0 %v4816
        %v5314 = vpop.f32.mrf.mxu0
        %v5315 = vadd.f32 %v5154, %v5314
        %v5316 = vpop.f32.mrf.mxu0
        %v5317 = vpop.f32.mrf.mxu0
        %v5318 = vadd.f32 %v5157, %v5317
        %v5319 = vpop.f32.mrf.mxu0
        %5320 = vmatprep.mubr.bf16.mxu0 0
        %5321 = vmatmul.mubr.bf16.gmra.mxu0 %v4819
        %v5322 = vpop.f32.mrf.mxu0
        %v5323 = vadd.f32 %v5162, %v5322
        %v5324 = vpop.f32.mrf.mxu0
        %v5325 = vpop.f32.mrf.mxu0
        %v5326 = vadd.f32 %v5165, %v5325
        %v5327 = vpop.f32.mrf.mxu0
        %5328 = vmatprep.mubr.bf16.mxu0 0
        %5329 = vmatmul.mubr.bf16.gmra.mxu0 %v4822
        %v5330 = vpop.f32.mrf.mxu0
        %v5331 = vadd.f32 %v5170, %v5330
        %v5332 = vpop.f32.mrf.mxu0
        %v5333 = vpop.f32.mrf.mxu0
        %v5334 = vadd.f32 %v5173, %v5333
        %v5335 = vpop.f32.mrf.mxu0
        %5336 = vdwg.mxu0
        %v5337 = vld [vmem:[#allocation3] sm:$0xff]
        %v5338 = vld [vmem:[#allocation3 + $0x8] sm:$0xff]
        %v5339 = vld [vmem:[#allocation3 + $0x10] sm:$0xff]
        %v5340 = vld [vmem:[#allocation3 + $0x18] sm:$0xff]
        %v5341 = vld [vmem:[#allocation3 + $0x20] sm:$0xff]
        %v5342 = vld [vmem:[#allocation3 + $0x28] sm:$0xff]
        %v5343 = vld [vmem:[#allocation3 + $0x30] sm:$0xff]
        %v5344 = vld [vmem:[#allocation3 + $0x38] sm:$0xff]
        %v5345 = vld [vmem:[#allocation3 + $0x40] sm:$0xff]
        %v5346 = vld [vmem:[#allocation3 + $0x48] sm:$0xff]
        %v5347 = vld [vmem:[#allocation3 + $0x50] sm:$0xff]
        %v5348 = vld [vmem:[#allocation3 + $0x58] sm:$0xff]
        %v5349 = vld [vmem:[#allocation3 + $0x60] sm:$0xff]
        %v5350 = vld [vmem:[#allocation3 + $0x68] sm:$0xff]
        %v5351 = vld [vmem:[#allocation3 + $0x70] sm:$0xff]
        %v5352 = vld [vmem:[#allocation3 + $0x78] sm:$0xff]
        %v5353 = vld [vmem:[#allocation3 + $0x80] sm:$0xff]
        %v5354 = vld [vmem:[#allocation3 + $0x88] sm:$0xff]
        %v5355 = vld [vmem:[#allocation3 + $0x90] sm:$0xff]
        %v5356 = vld [vmem:[#allocation3 + $0x98] sm:$0xff]
        %v5357 = vld [vmem:[#allocation3 + $0xa0] sm:$0xff]
        %v5358 = vld [vmem:[#allocation3 + $0xa8] sm:$0xff]
        %v5359 = vld [vmem:[#allocation3 + $0xb0] sm:$0xff]
        %v5360 = vld [vmem:[#allocation3 + $0xb8] sm:$0xff]
        %v5361 = vld [vmem:[#allocation3 + $0xc0] sm:$0xff]
        %v5362 = vld [vmem:[#allocation3 + $0xc8] sm:$0xff]
        %v5363 = vld [vmem:[#allocation3 + $0xd0] sm:$0xff]
        %v5364 = vld [vmem:[#allocation3 + $0xd8] sm:$0xff]
        %v5365 = vld [vmem:[#allocation3 + $0xe0] sm:$0xff]
        %v5366 = vld [vmem:[#allocation3 + $0xe8] sm:$0xff]
        %v5367 = vld [vmem:[#allocation3 + $0xf0] sm:$0xff]
        %v5368 = vld [vmem:[#allocation3 + $0xf8] sm:$0xff]
        %v5369 = vadd.f32 %v5337, %v5211
        %v5370 = vadd.f32 %v5338, %v5214
        %v5371 = vadd.f32 %v5339, %v5219
        %v5372 = vadd.f32 %v5340, %v5222
        %v5373 = vadd.f32 %v5341, %v5227
        %v5374 = vadd.f32 %v5342, %v5230
        %v5375 = vadd.f32 %v5343, %v5235
        %v5376 = vadd.f32 %v5344, %v5238
        %v5377 = vadd.f32 %v5345, %v5243
        %v5378 = vadd.f32 %v5346, %v5246
        %v5379 = vadd.f32 %v5347, %v5251
        %v5380 = vadd.f32 %v5348, %v5254
        %v5381 = vadd.f32 %v5349, %v5259
        %v5382 = vadd.f32 %v5350, %v5262
        %v5383 = vadd.f32 %v5351, %v5267
        %v5384 = vadd.f32 %v5352, %v5270
        %v5385 = vadd.f32 %v5353, %v5275
        %v5386 = vadd.f32 %v5354, %v5278
        %v5387 = vadd.f32 %v5355, %v5283
        %v5388 = vadd.f32 %v5356, %v5286
        %v5389 = vadd.f32 %v5357, %v5291
        %v5390 = vadd.f32 %v5358, %v5294
        %v5391 = vadd.f32 %v5359, %v5299
        %v5392 = vadd.f32 %v5360, %v5302
        %v5393 = vadd.f32 %v5361, %v5307
        %v5394 = vadd.f32 %v5362, %v5310
        %v5395 = vadd.f32 %v5363, %v5315
        %v5396 = vadd.f32 %v5364, %v5318
        %v5397 = vadd.f32 %v5365, %v5323
        %v5398 = vadd.f32 %v5366, %v5326
        %v5399 = vadd.f32 %v5367, %v5331
        %v5400 = vadd.f32 %v5368, %v5334
        %5401 = vst [vmem:[#allocation3] sm:$0xff] %v5369
        %5402 = vst [vmem:[#allocation3 + $0x8] sm:$0xff] %v5370
        %5403 = vst [vmem:[#allocation3 + $0x10] sm:$0xff] %v5371
        %5404 = vst [vmem:[#allocation3 + $0x18] sm:$0xff] %v5372
        %5405 = vst [vmem:[#allocation3 + $0x20] sm:$0xff] %v5373
        %5406 = vst [vmem:[#allocation3 + $0x28] sm:$0xff] %v5374
        %5407 = vst [vmem:[#allocation3 + $0x30] sm:$0xff] %v5375
        %5408 = vst [vmem:[#allocation3 + $0x38] sm:$0xff] %v5376
        %5409 = vst [vmem:[#allocation3 + $0x40] sm:$0xff] %v5377
        %5410 = vst [vmem:[#allocation3 + $0x48] sm:$0xff] %v5378
        %5411 = vst [vmem:[#allocation3 + $0x50] sm:$0xff] %v5379
        %5412 = vst [vmem:[#allocation3 + $0x58] sm:$0xff] %v5380
        %5413 = vst [vmem:[#allocation3 + $0x60] sm:$0xff] %v5381
        %5414 = vst [vmem:[#allocation3 + $0x68] sm:$0xff] %v5382
        %5415 = vst [vmem:[#allocation3 + $0x70] sm:$0xff] %v5383
        %5416 = vst [vmem:[#allocation3 + $0x78] sm:$0xff] %v5384
        %5417 = vst [vmem:[#allocation3 + $0x80] sm:$0xff] %v5385
        %5418 = vst [vmem:[#allocation3 + $0x88] sm:$0xff] %v5386
        %5419 = vst [vmem:[#allocation3 + $0x90] sm:$0xff] %v5387
        %5420 = vst [vmem:[#allocation3 + $0x98] sm:$0xff] %v5388
        %5421 = vst [vmem:[#allocation3 + $0xa0] sm:$0xff] %v5389
        %5422 = vst [vmem:[#allocation3 + $0xa8] sm:$0xff] %v5390
        %5423 = vst [vmem:[#allocation3 + $0xb0] sm:$0xff] %v5391
        %5424 = vst [vmem:[#allocation3 + $0xb8] sm:$0xff] %v5392
        %5425 = vst [vmem:[#allocation3 + $0xc0] sm:$0xff] %v5393
        %5426 = vst [vmem:[#allocation3 + $0xc8] sm:$0xff] %v5394
        %5427 = vst [vmem:[#allocation3 + $0xd0] sm:$0xff] %v5395
        %5428 = vst [vmem:[#allocation3 + $0xd8] sm:$0xff] %v5396
        %5429 = vst [vmem:[#allocation3 + $0xe0] sm:$0xff] %v5397
        %5430 = vst [vmem:[#allocation3 + $0xe8] sm:$0xff] %v5398
        %5431 = vst [vmem:[#allocation3 + $0xf0] sm:$0xff] %v5399
        %5432 = vst [vmem:[#allocation3 + $0xf8] sm:$0xff] %v5400
        %v5433 = vld [vmem:[%s502] sm:$0xff]
        %v5434 = vld [vmem:[%s502 + $0x8] sm:$0xf]
        %v5435 = vld [vmem:[%s502 + $0xc] sm:$0xff]
        %v5436 = vld [vmem:[%s502 + $0x14] sm:$0xf]
        %v5437 = vld [vmem:[%s502 + $0x18] sm:$0xff]
        %v5438 = vld [vmem:[%s502 + $0x20] sm:$0xf]
        %v5439 = vld [vmem:[%s502 + $0x24] sm:$0xff]
        %v5440 = vld [vmem:[%s502 + $0x2c] sm:$0xf]
        %v5441 = vld [vmem:[%s502 + $0x30] sm:$0xff]
        %v5442 = vld [vmem:[%s502 + $0x38] sm:$0xf]
        %v5443 = vld [vmem:[%s502 + $0x3c] sm:$0xff]
        %v5444 = vld [vmem:[%s502 + $0x44] sm:$0xf]
        %v5445 = vld [vmem:[%s502 + $0x48] sm:$0xff]
        %v5446 = vld [vmem:[%s502 + $0x50] sm:$0xf]
        %v5447 = vld [vmem:[%s502 + $0x54] sm:$0xff]
        %v5448 = vld [vmem:[%s502 + $0x5c] sm:$0xf]
        %v5449 = vld [vmem:[%s502 + $0x60] sm:$0xff]
        %v5450 = vld [vmem:[%s502 + $0x68] sm:$0xf]
        %v5451 = vld [vmem:[%s502 + $0x6c] sm:$0xff]
        %v5452 = vld [vmem:[%s502 + $0x74] sm:$0xf]
        %v5453 = vld [vmem:[%s502 + $0x78] sm:$0xff]
        %v5454 = vld [vmem:[%s502 + $0x80] sm:$0xf]
        %v5455 = vld [vmem:[%s502 + $0x84] sm:$0xff]
        %v5456 = vld [vmem:[%s502 + $0x8c] sm:$0xf]
        %v5457 = vld [vmem:[%s502 + $0x90] sm:$0xff]
        %v5458 = vld [vmem:[%s502 + $0x98] sm:$0xf]
        %v5459 = vld [vmem:[%s502 + $0x9c] sm:$0xff]
        %v5460 = vld [vmem:[%s502 + $0xa4] sm:$0xf]
        %v5461 = vld [vmem:[%s502 + $0xa8] sm:$0xff]
        %v5462 = vld [vmem:[%s502 + $0xb0] sm:$0xf]
        %v5463 = vld [vmem:[%s502 + $0xb4] sm:$0xff]
        %v5464 = vld [vmem:[%s502 + $0xbc] sm:$0xf]
        %v5465 = vld [vmem:[%s502 + $0xc0] sm:$0xff]
        %v5466 = vld [vmem:[%s502 + $0xc8] sm:$0xf]
        %v5467 = vld [vmem:[%s502 + $0xcc] sm:$0xff]
        %v5468 = vld [vmem:[%s502 + $0xd4] sm:$0xf]
        %v5469 = vld [vmem:[%s502 + $0xd8] sm:$0xff]
        %v5470 = vld [vmem:[%s502 + $0xe0] sm:$0xf]
        %v5471 = vld [vmem:[%s502 + $0xe4] sm:$0xff]
        %v5472 = vld [vmem:[%s502 + $0xec] sm:$0xf]
        %v5473 = vld [vmem:[%s502 + $0xf0] sm:$0xff]
        %v5474 = vld [vmem:[%s502 + $0xf8] sm:$0xf]
        %v5475 = vld [vmem:[%s502 + $0xfc] sm:$0xff]
        %v5476 = vld [vmem:[%s502 + $0x104] sm:$0xf]
        %v5477 = vld [vmem:[%s502 + $0x108] sm:$0xff]
        %v5478 = vld [vmem:[%s502 + $0x110] sm:$0xf]
        %v5479 = vld [vmem:[%s502 + $0x114] sm:$0xff]
        %v5480 = vld [vmem:[%s502 + $0x11c] sm:$0xf]
        %v5481 = vld [vmem:[%s502 + $0x120] sm:$0xff]
        %v5482 = vld [vmem:[%s502 + $0x128] sm:$0xf]
        %v5483 = vld [vmem:[%s502 + $0x12c] sm:$0xff]
        %v5484 = vld [vmem:[%s502 + $0x134] sm:$0xf]
        %v5485 = vld [vmem:[%s502 + $0x138] sm:$0xff]
        %v5486 = vld [vmem:[%s502 + $0x140] sm:$0xf]
        %v5487 = vld [vmem:[%s502 + $0x144] sm:$0xff]
        %v5488 = vld [vmem:[%s502 + $0x14c] sm:$0xf]
        %v5489 = vld [vmem:[%s502 + $0x150] sm:$0xff]
        %v5490 = vld [vmem:[%s502 + $0x158] sm:$0xf]
        %v5491 = vld [vmem:[%s502 + $0x15c] sm:$0xff]
        %v5492 = vld [vmem:[%s502 + $0x164] sm:$0xf]
        %v5493 = vld [vmem:[%s502 + $0x168] sm:$0xff]
        %v5494 = vld [vmem:[%s502 + $0x170] sm:$0xf]
        %v5495 = vld [vmem:[%s502 + $0x174] sm:$0xff]
        %v5496 = vld [vmem:[%s502 + $0x17c] sm:$0xf]
        %s5497 = scalar_lea.vmem [#allocation9], 960
        %v5498 = vld [vmem:[%s5497] sm:$0xf]
        %v5499 = vld [vmem:[%s5497 + $0x4] sm:$0xf]
        %v5500 = vld [vmem:[%s5497 + $0x8] sm:$0xf]
        %v5501 = vld [vmem:[%s5497 + $0xc] sm:$0xf]
        %v5502 = vld [vmem:[%s5497 + $0x10] sm:$0xf]
        %v5503 = vld [vmem:[%s5497 + $0x14] sm:$0xf]
        %v5504 = vld [vmem:[%s5497 + $0x18] sm:$0xf]
        %v5505 = vld [vmem:[%s5497 + $0x1c] sm:$0xf]
        %v5506 = vld [vmem:[%s5497 + $0x20] sm:$0xf]
        %v5507 = vld [vmem:[%s5497 + $0x24] sm:$0xf]
        %v5508 = vld [vmem:[%s5497 + $0x28] sm:$0xf]
        %v5509 = vld [vmem:[%s5497 + $0x2c] sm:$0xf]
        %v5510 = vld [vmem:[%s5497 + $0x30] sm:$0xf]
        %v5511 = vld [vmem:[%s5497 + $0x34] sm:$0xf]
        %v5512 = vld [vmem:[%s5497 + $0x38] sm:$0xf]
        %v5513 = vld [vmem:[%s5497 + $0x3c] sm:$0xf]
        %v5514 = vld [vmem:[%s5497 + $0x40] sm:$0xf]
        %v5515 = vld [vmem:[%s5497 + $0x44] sm:$0xf]
        %v5516 = vld [vmem:[%s5497 + $0x48] sm:$0xf]
        %v5517 = vld [vmem:[%s5497 + $0x4c] sm:$0xf]
        %v5518 = vld [vmem:[%s5497 + $0x50] sm:$0xf]
        %v5519 = vld [vmem:[%s5497 + $0x54] sm:$0xf]
        %v5520 = vld [vmem:[%s5497 + $0x58] sm:$0xf]
        %v5521 = vld [vmem:[%s5497 + $0x5c] sm:$0xf]
        %v5522 = vld [vmem:[%s5497 + $0x60] sm:$0xf]
        %v5523 = vld [vmem:[%s5497 + $0x64] sm:$0xf]
        %v5524 = vld [vmem:[%s5497 + $0x68] sm:$0xf]
        %v5525 = vld [vmem:[%s5497 + $0x6c] sm:$0xf]
        %v5526 = vld [vmem:[%s5497 + $0x70] sm:$0xf]
        %v5527 = vld [vmem:[%s5497 + $0x74] sm:$0xf]
        %v5528 = vld [vmem:[%s5497 + $0x78] sm:$0xf]
        %v5529 = vld [vmem:[%s5497 + $0x7c] sm:$0xf]
        %v5530 = vld [vmem:[%s5497 + $0x80] sm:$0xf]
        %v5531 = vld [vmem:[%s5497 + $0x84] sm:$0xf]
        %v5532 = vld [vmem:[%s5497 + $0x88] sm:$0xf]
        %v5533 = vld [vmem:[%s5497 + $0x8c] sm:$0xf]
        %v5534 = vld [vmem:[%s5497 + $0x90] sm:$0xf]
        %v5535 = vld [vmem:[%s5497 + $0x94] sm:$0xf]
        %v5536 = vld [vmem:[%s5497 + $0x98] sm:$0xf]
        %v5537 = vld [vmem:[%s5497 + $0x9c] sm:$0xf]
        %v5538 = vld [vmem:[%s5497 + $0xa0] sm:$0xf]
        %v5539 = vld [vmem:[%s5497 + $0xa4] sm:$0xf]
        %v5540 = vld [vmem:[%s5497 + $0xa8] sm:$0xf]
        %v5541 = vld [vmem:[%s5497 + $0xac] sm:$0xf]
        %v5542 = vld [vmem:[%s5497 + $0xb0] sm:$0xf]
        %v5543 = vld [vmem:[%s5497 + $0xb4] sm:$0xf]
        %v5544 = vld [vmem:[%s5497 + $0xb8] sm:$0xf]
        %v5545 = vld [vmem:[%s5497 + $0xbc] sm:$0xf]
        %v5610 = vunpack.c.l.b16 %v5433
        %v5611 = vunpack.c.h.b16 %v5433
        %v5612 = vunpack.c.l.b16 %v5434
        %v5613 = vunpack.c.l.b16 %v5435
        %v5614 = vunpack.c.h.b16 %v5435
        %v5615 = vunpack.c.l.b16 %v5436
        %v5616 = vunpack.c.l.b16 %v5437
        %v5617 = vunpack.c.h.b16 %v5437
        %v5618 = vunpack.c.l.b16 %v5438
        %v5619 = vunpack.c.l.b16 %v5439
        %v5620 = vunpack.c.h.b16 %v5439
        %v5621 = vunpack.c.l.b16 %v5440
        %v5622 = vunpack.c.l.b16 %v5441
        %v5623 = vunpack.c.h.b16 %v5441
        %v5624 = vunpack.c.l.b16 %v5442
        %v5625 = vunpack.c.l.b16 %v5443
        %v5626 = vunpack.c.h.b16 %v5443
        %v5627 = vunpack.c.l.b16 %v5444
        %v5628 = vunpack.c.l.b16 %v5445
        %v5629 = vunpack.c.h.b16 %v5445
        %v5630 = vunpack.c.l.b16 %v5446
        %v5631 = vunpack.c.l.b16 %v5447
        %v5632 = vunpack.c.h.b16 %v5447
        %v5633 = vunpack.c.l.b16 %v5448
        %v5634 = vunpack.c.l.b16 %v5449
        %v5635 = vunpack.c.h.b16 %v5449
        %v5636 = vunpack.c.l.b16 %v5450
        %v5637 = vunpack.c.l.b16 %v5451
        %v5638 = vunpack.c.h.b16 %v5451
        %v5639 = vunpack.c.l.b16 %v5452
        %v5640 = vunpack.c.l.b16 %v5453
        %v5641 = vunpack.c.h.b16 %v5453
        %v5642 = vunpack.c.l.b16 %v5454
        %v5643 = vunpack.c.l.b16 %v5455
        %v5644 = vunpack.c.h.b16 %v5455
        %v5645 = vunpack.c.l.b16 %v5456
        %v5646 = vunpack.c.l.b16 %v5457
        %v5647 = vunpack.c.h.b16 %v5457
        %v5648 = vunpack.c.l.b16 %v5458
        %v5649 = vunpack.c.l.b16 %v5459
        %v5650 = vunpack.c.h.b16 %v5459
        %v5651 = vunpack.c.l.b16 %v5460
        %v5652 = vunpack.c.l.b16 %v5461
        %v5653 = vunpack.c.h.b16 %v5461
        %v5654 = vunpack.c.l.b16 %v5462
        %v5655 = vunpack.c.l.b16 %v5463
        %v5656 = vunpack.c.h.b16 %v5463
        %v5657 = vunpack.c.l.b16 %v5464
        %v5658 = vunpack.c.l.b16 %v5465
        %v5659 = vunpack.c.h.b16 %v5465
        %v5660 = vunpack.c.l.b16 %v5466
        %v5661 = vunpack.c.l.b16 %v5467
        %v5662 = vunpack.c.h.b16 %v5467
        %v5663 = vunpack.c.l.b16 %v5468
        %v5664 = vunpack.c.l.b16 %v5469
        %v5665 = vunpack.c.h.b16 %v5469
        %v5666 = vunpack.c.l.b16 %v5470
        %v5667 = vunpack.c.l.b16 %v5471
        %v5668 = vunpack.c.h.b16 %v5471
        %v5669 = vunpack.c.l.b16 %v5472
        %v5670 = vunpack.c.l.b16 %v5473
        %v5671 = vunpack.c.h.b16 %v5473
        %v5672 = vunpack.c.l.b16 %v5474
        %v5673 = vunpack.c.l.b16 %v5475
        %v5674 = vunpack.c.h.b16 %v5475
        %v5675 = vunpack.c.l.b16 %v5476
        %v5676 = vunpack.c.l.b16 %v5477
        %v5677 = vunpack.c.h.b16 %v5477
        %v5678 = vunpack.c.l.b16 %v5478
        %v5679 = vunpack.c.l.b16 %v5479
        %v5680 = vunpack.c.h.b16 %v5479
        %v5681 = vunpack.c.l.b16 %v5480
        %v5682 = vunpack.c.l.b16 %v5481
        %v5683 = vunpack.c.h.b16 %v5481
        %v5684 = vunpack.c.l.b16 %v5482
        %v5685 = vunpack.c.l.b16 %v5483
        %v5686 = vunpack.c.h.b16 %v5483
        %v5687 = vunpack.c.l.b16 %v5484
        %v5688 = vunpack.c.l.b16 %v5485
        %v5689 = vunpack.c.h.b16 %v5485
        %v5690 = vunpack.c.l.b16 %v5486
        %v5691 = vunpack.c.l.b16 %v5487
        %v5692 = vunpack.c.h.b16 %v5487
        %v5693 = vunpack.c.l.b16 %v5488
        %v5694 = vunpack.c.l.b16 %v5489
        %v5695 = vunpack.c.h.b16 %v5489
        %v5696 = vunpack.c.l.b16 %v5490
        %v5697 = vunpack.c.l.b16 %v5491
        %v5698 = vunpack.c.h.b16 %v5491
        %v5699 = vunpack.c.l.b16 %v5492
        %v5700 = vunpack.c.l.b16 %v5493
        %v5701 = vunpack.c.h.b16 %v5493
        %v5702 = vunpack.c.l.b16 %v5494
        %v5703 = vunpack.c.l.b16 %v5495
        %v5704 = vunpack.c.h.b16 %v5495
        %v5705 = vunpack.c.l.b16 %v5496
        %v5706 = vpack.c.b16 %v5613, %v5610
        %v5707 = vpack.c.b16 %v5614, %v5611
        %v5708 = vpack.c.b16 %v5615, %v5612
        %v5709 = vpack.c.b16 %v5619, %v5616
        %v5710 = vpack.c.b16 %v5620, %v5617
        %v5711 = vpack.c.b16 %v5621, %v5618
        %v5712 = vpack.c.b16 %v5625, %v5622
        %v5713 = vpack.c.b16 %v5626, %v5623
        %v5714 = vpack.c.b16 %v5627, %v5624
        %v5715 = vpack.c.b16 %v5631, %v5628
        %v5716 = vpack.c.b16 %v5632, %v5629
        %v5717 = vpack.c.b16 %v5633, %v5630
        %v5718 = vpack.c.b16 %v5637, %v5634
        %v5719 = vpack.c.b16 %v5638, %v5635
        %v5720 = vpack.c.b16 %v5639, %v5636
        %v5721 = vpack.c.b16 %v5643, %v5640
        %v5722 = vpack.c.b16 %v5644, %v5641
        %v5723 = vpack.c.b16 %v5645, %v5642
        %v5724 = vpack.c.b16 %v5649, %v5646
        %v5725 = vpack.c.b16 %v5650, %v5647
        %v5726 = vpack.c.b16 %v5651, %v5648
        %v5727 = vpack.c.b16 %v5655, %v5652
        %v5728 = vpack.c.b16 %v5656, %v5653
        %v5729 = vpack.c.b16 %v5657, %v5654
        %v5730 = vpack.c.b16 %v5661, %v5658
        %v5731 = vpack.c.b16 %v5662, %v5659
        %v5732 = vpack.c.b16 %v5663, %v5660
        %v5733 = vpack.c.b16 %v5667, %v5664
        %v5734 = vpack.c.b16 %v5668, %v5665
        %v5735 = vpack.c.b16 %v5669, %v5666
        %v5736 = vpack.c.b16 %v5673, %v5670
        %v5737 = vpack.c.b16 %v5674, %v5671
        %v5738 = vpack.c.b16 %v5675, %v5672
        %v5739 = vpack.c.b16 %v5679, %v5676
        %v5740 = vpack.c.b16 %v5680, %v5677
        %v5741 = vpack.c.b16 %v5681, %v5678
        %v5742 = vpack.c.b16 %v5685, %v5682
        %v5743 = vpack.c.b16 %v5686, %v5683
        %v5744 = vpack.c.b16 %v5687, %v5684
        %v5745 = vpack.c.b16 %v5691, %v5688
        %v5746 = vpack.c.b16 %v5692, %v5689
        %v5747 = vpack.c.b16 %v5693, %v5690
        %v5748 = vpack.c.b16 %v5697, %v5694
        %v5749 = vpack.c.b16 %v5698, %v5695
        %v5750 = vpack.c.b16 %v5699, %v5696
        %v5751 = vpack.c.b16 %v5703, %v5700
        %v5752 = vpack.c.b16 %v5704, %v5701
        %v5753 = vpack.c.b16 %v5705, %v5702
        %v5850 = vunpack.c.l.b16 %v5498
        %v5851 = vunpack.c.l.b16 %v5499
        %v5852 = vunpack.c.l.b16 %v5500
        %v5853 = vunpack.c.l.b16 %v5501
        %v5854 = vunpack.c.l.b16 %v5502
        %v5855 = vunpack.c.l.b16 %v5503
        %v5856 = vunpack.c.l.b16 %v5504
        %v5857 = vunpack.c.l.b16 %v5505
        %v5858 = vunpack.c.l.b16 %v5506
        %v5859 = vunpack.c.l.b16 %v5507
        %v5860 = vunpack.c.l.b16 %v5508
        %v5861 = vunpack.c.l.b16 %v5509
        %v5862 = vunpack.c.l.b16 %v5510
        %v5863 = vunpack.c.l.b16 %v5511
        %v5864 = vunpack.c.l.b16 %v5512
        %v5865 = vunpack.c.l.b16 %v5513
        %v5866 = vunpack.c.l.b16 %v5514
        %v5867 = vunpack.c.l.b16 %v5515
        %v5868 = vunpack.c.l.b16 %v5516
        %v5869 = vunpack.c.l.b16 %v5517
        %v5870 = vunpack.c.l.b16 %v5518
        %v5871 = vunpack.c.l.b16 %v5519
        %v5872 = vunpack.c.l.b16 %v5520
        %v5873 = vunpack.c.l.b16 %v5521
        %v5874 = vunpack.c.l.b16 %v5522
        %v5875 = vunpack.c.l.b16 %v5523
        %v5876 = vunpack.c.l.b16 %v5524
        %v5877 = vunpack.c.l.b16 %v5525
        %v5878 = vunpack.c.l.b16 %v5526
        %v5879 = vunpack.c.l.b16 %v5527
        %v5880 = vunpack.c.l.b16 %v5528
        %v5881 = vunpack.c.l.b16 %v5529
        %v5882 = vunpack.c.l.b16 %v5530
        %v5883 = vunpack.c.l.b16 %v5531
        %v5884 = vunpack.c.l.b16 %v5532
        %v5885 = vunpack.c.l.b16 %v5533
        %v5886 = vunpack.c.l.b16 %v5534
        %v5887 = vunpack.c.l.b16 %v5535
        %v5888 = vunpack.c.l.b16 %v5536
        %v5889 = vunpack.c.l.b16 %v5537
        %v5890 = vunpack.c.l.b16 %v5538
        %v5891 = vunpack.c.l.b16 %v5539
        %v5892 = vunpack.c.l.b16 %v5540
        %v5893 = vunpack.c.l.b16 %v5541
        %v5894 = vunpack.c.l.b16 %v5542
        %v5895 = vunpack.c.l.b16 %v5543
        %v5896 = vunpack.c.l.b16 %v5544
        %v5897 = vunpack.c.l.b16 %v5545
        %v5898 = vpack.c.b16 %v5851, %v5850
        %v5899 = vpack.c.b16 %v5853, %v5852
        %v5900 = vpack.c.b16 %v5855, %v5854
        %v5901 = vpack.c.b16 %v5857, %v5856
        %v5902 = vpack.c.b16 %v5859, %v5858
        %v5903 = vpack.c.b16 %v5861, %v5860
        %v5904 = vpack.c.b16 %v5863, %v5862
        %v5905 = vpack.c.b16 %v5865, %v5864
        %v5906 = vpack.c.b16 %v5867, %v5866
        %v5907 = vpack.c.b16 %v5869, %v5868
        %v5908 = vpack.c.b16 %v5871, %v5870
        %v5909 = vpack.c.b16 %v5873, %v5872
        %v5910 = vpack.c.b16 %v5875, %v5874
        %v5911 = vpack.c.b16 %v5877, %v5876
        %v5912 = vpack.c.b16 %v5879, %v5878
        %v5913 = vpack.c.b16 %v5881, %v5880
        %v5914 = vpack.c.b16 %v5883, %v5882
        %v5915 = vpack.c.b16 %v5885, %v5884
        %v5916 = vpack.c.b16 %v5887, %v5886
        %v5917 = vpack.c.b16 %v5889, %v5888
        %v5918 = vpack.c.b16 %v5891, %v5890
        %v5919 = vpack.c.b16 %v5893, %v5892
        %v5920 = vpack.c.b16 %v5895, %v5894
        %v5921 = vpack.c.b16 %v5897, %v5896
        %5946 = vmatprep.subr.bf16.mxu0 0
        %5947 = vmatpush1.bf16.msra.mxu0 %v5905
        %5948 = vmatprep.subr.bf16.mxu0 0
        %5949 = vmatpush1.bf16.msra.mxu0 %v5904
        %5950 = vmatprep.subr.bf16.mxu0 0
        %5951 = vmatpush1.bf16.msra.mxu0 %v5903
        %5952 = vmatprep.subr.bf16.mxu0 0
        %5953 = vmatpush1.bf16.msra.mxu0 %v5902
        %5954 = vmatprep.subr.bf16.mxu0 0
        %5955 = vmatpush1.bf16.msra.mxu0 %v5901
        %5956 = vmatprep.subr.bf16.mxu0 0
        %5957 = vmatpush1.bf16.msra.mxu0 %v5900
        %5958 = vmatprep.subr.bf16.mxu0 0
        %5959 = vmatpush1.bf16.msra.mxu0 %v5899
        %5960 = vmatprep.subr.bf16.mxu0 0
        %5961 = vmatpush1.bf16.msra.mxu0 %v5898
        %5962 = vmatprep.subr.bf16.mxu0 0
        %5963 = vmatpush2.bf16.msra.mxu0 %v5913
        %5964 = vmatprep.subr.bf16.mxu0 0
        %5965 = vmatpush2.bf16.msra.mxu0 %v5912
        %5966 = vmatprep.subr.bf16.mxu0 0
        %5967 = vmatpush2.bf16.msra.mxu0 %v5911
        %5968 = vmatprep.subr.bf16.mxu0 0
        %5969 = vmatpush2.bf16.msra.mxu0 %v5910
        %5970 = vmatprep.subr.bf16.mxu0 0
        %5971 = vmatpush2.bf16.msra.mxu0 %v5909
        %5972 = vmatprep.subr.bf16.mxu0 0
        %5973 = vmatpush2.bf16.msra.mxu0 %v5908
        %5974 = vmatprep.subr.bf16.mxu0 0
        %5975 = vmatpush2.bf16.msra.mxu0 %v5907
        %5976 = vmatprep.subr.bf16.mxu0 0
        %5977 = vmatpush2.bf16.msra.mxu0 %v5906
        %5978 = vmatprep.mubr.bf16.mxu0 %v5707
        %5979 = vmatmul.mubr.bf16.gmra.mxu0 %v5706
        %v5980 = vpop.f32.mrf.mxu0
        %v5981 = vadd.f32 0.0, %v5980
        %v5982 = vpop.f32.mrf.mxu0
        %v5983 = vpop.f32.mrf.mxu0
        %v5984 = vadd.f32 0.0, %v5983
        %v5985 = vpop.f32.mrf.mxu0
        %5986 = vmatprep.mubr.bf16.mxu0 %v5710
        %5987 = vmatmul.mubr.bf16.gmra.mxu0 %v5709
        %v5988 = vpop.f32.mrf.mxu0
        %v5989 = vadd.f32 0.0, %v5988
        %v5990 = vpop.f32.mrf.mxu0
        %v5991 = vpop.f32.mrf.mxu0
        %v5992 = vadd.f32 0.0, %v5991
        %v5993 = vpop.f32.mrf.mxu0
        %5994 = vmatprep.mubr.bf16.mxu0 %v5713
        %5995 = vmatmul.mubr.bf16.gmra.mxu0 %v5712
        %v5996 = vpop.f32.mrf.mxu0
        %v5997 = vadd.f32 0.0, %v5996
        %v5998 = vpop.f32.mrf.mxu0
        %v5999 = vpop.f32.mrf.mxu0
        %v6000 = vadd.f32 0.0, %v5999
        %v6001 = vpop.f32.mrf.mxu0
        %6002 = vmatprep.mubr.bf16.mxu0 %v5716
        %6003 = vmatmul.mubr.bf16.gmra.mxu0 %v5715
        %v6004 = vpop.f32.mrf.mxu0
        %v6005 = vadd.f32 0.0, %v6004
        %v6006 = vpop.f32.mrf.mxu0
        %v6007 = vpop.f32.mrf.mxu0
        %v6008 = vadd.f32 0.0, %v6007
        %v6009 = vpop.f32.mrf.mxu0
        %6010 = vmatprep.mubr.bf16.mxu0 %v5719
        %6011 = vmatmul.mubr.bf16.gmra.mxu0 %v5718
        %v6012 = vpop.f32.mrf.mxu0
        %v6013 = vadd.f32 0.0, %v6012
        %v6014 = vpop.f32.mrf.mxu0
        %v6015 = vpop.f32.mrf.mxu0
        %v6016 = vadd.f32 0.0, %v6015
        %v6017 = vpop.f32.mrf.mxu0
        %6018 = vmatprep.mubr.bf16.mxu0 %v5722
        %6019 = vmatmul.mubr.bf16.gmra.mxu0 %v5721
        %v6020 = vpop.f32.mrf.mxu0
        %v6021 = vadd.f32 0.0, %v6020
        %v6022 = vpop.f32.mrf.mxu0
        %v6023 = vpop.f32.mrf.mxu0
        %v6024 = vadd.f32 0.0, %v6023
        %v6025 = vpop.f32.mrf.mxu0
        %6026 = vmatprep.mubr.bf16.mxu0 %v5725
        %6027 = vmatmul.mubr.bf16.gmra.mxu0 %v5724
        %v6028 = vpop.f32.mrf.mxu0
        %v6029 = vadd.f32 0.0, %v6028
        %v6030 = vpop.f32.mrf.mxu0
        %v6031 = vpop.f32.mrf.mxu0
        %v6032 = vadd.f32 0.0, %v6031
        %v6033 = vpop.f32.mrf.mxu0
        %6034 = vmatprep.mubr.bf16.mxu0 %v5728
        %6035 = vmatmul.mubr.bf16.gmra.mxu0 %v5727
        %v6036 = vpop.f32.mrf.mxu0
        %v6037 = vadd.f32 0.0, %v6036
        %v6038 = vpop.f32.mrf.mxu0
        %v6039 = vpop.f32.mrf.mxu0
        %v6040 = vadd.f32 0.0, %v6039
        %v6041 = vpop.f32.mrf.mxu0
        %6042 = vmatprep.mubr.bf16.mxu0 %v5731
        %6043 = vmatmul.mubr.bf16.gmra.mxu0 %v5730
        %v6044 = vpop.f32.mrf.mxu0
        %v6045 = vadd.f32 0.0, %v6044
        %v6046 = vpop.f32.mrf.mxu0
        %v6047 = vpop.f32.mrf.mxu0
        %v6048 = vadd.f32 0.0, %v6047
        %v6049 = vpop.f32.mrf.mxu0
        %6050 = vmatprep.mubr.bf16.mxu0 %v5734
        %6051 = vmatmul.mubr.bf16.gmra.mxu0 %v5733
        %v6052 = vpop.f32.mrf.mxu0
        %v6053 = vadd.f32 0.0, %v6052
        %v6054 = vpop.f32.mrf.mxu0
        %v6055 = vpop.f32.mrf.mxu0
        %v6056 = vadd.f32 0.0, %v6055
        %v6057 = vpop.f32.mrf.mxu0
        %6058 = vmatprep.mubr.bf16.mxu0 %v5737
        %6059 = vmatmul.mubr.bf16.gmra.mxu0 %v5736
        %v6060 = vpop.f32.mrf.mxu0
        %v6061 = vadd.f32 0.0, %v6060
        %v6062 = vpop.f32.mrf.mxu0
        %v6063 = vpop.f32.mrf.mxu0
        %v6064 = vadd.f32 0.0, %v6063
        %v6065 = vpop.f32.mrf.mxu0
        %6066 = vmatprep.mubr.bf16.mxu0 %v5740
        %6067 = vmatmul.mubr.bf16.gmra.mxu0 %v5739
        %v6068 = vpop.f32.mrf.mxu0
        %v6069 = vadd.f32 0.0, %v6068
        %v6070 = vpop.f32.mrf.mxu0
        %v6071 = vpop.f32.mrf.mxu0
        %v6072 = vadd.f32 0.0, %v6071
        %v6073 = vpop.f32.mrf.mxu0
        %6074 = vmatprep.mubr.bf16.mxu0 %v5743
        %6075 = vmatmul.mubr.bf16.gmra.mxu0 %v5742
        %v6076 = vpop.f32.mrf.mxu0
        %v6077 = vadd.f32 0.0, %v6076
        %v6078 = vpop.f32.mrf.mxu0
        %v6079 = vpop.f32.mrf.mxu0
        %v6080 = vadd.f32 0.0, %v6079
        %v6081 = vpop.f32.mrf.mxu0
        %6082 = vmatprep.mubr.bf16.mxu0 %v5746
        %6083 = vmatmul.mubr.bf16.gmra.mxu0 %v5745
        %v6084 = vpop.f32.mrf.mxu0
        %v6085 = vadd.f32 0.0, %v6084
        %v6086 = vpop.f32.mrf.mxu0
        %v6087 = vpop.f32.mrf.mxu0
        %v6088 = vadd.f32 0.0, %v6087
        %v6089 = vpop.f32.mrf.mxu0
        %6090 = vmatprep.mubr.bf16.mxu0 %v5749
        %6091 = vmatmul.mubr.bf16.gmra.mxu0 %v5748
        %v6092 = vpop.f32.mrf.mxu0
        %v6093 = vadd.f32 0.0, %v6092
        %v6094 = vpop.f32.mrf.mxu0
        %v6095 = vpop.f32.mrf.mxu0
        %v6096 = vadd.f32 0.0, %v6095
        %v6097 = vpop.f32.mrf.mxu0
        %6098 = vmatprep.mubr.bf16.mxu0 %v5752
        %6099 = vmatmul.mubr.bf16.gmra.mxu0 %v5751
        %v6100 = vpop.f32.mrf.mxu0
        %v6101 = vadd.f32 0.0, %v6100
        %v6102 = vpop.f32.mrf.mxu0
        %v6103 = vpop.f32.mrf.mxu0
        %v6104 = vadd.f32 0.0, %v6103
        %v6105 = vpop.f32.mrf.mxu0
        %6106 = vdwg.mxu0
        %6107 = vmatprep.subr.bf16.mxu0 0
        %6108 = vmatpush1.bf16.msra.mxu0 %v5921
        %6109 = vmatprep.subr.bf16.mxu0 0
        %6110 = vmatpush1.bf16.msra.mxu0 %v5920
        %6111 = vmatprep.subr.bf16.mxu0 0
        %6112 = vmatpush1.bf16.msra.mxu0 %v5919
        %6113 = vmatprep.subr.bf16.mxu0 0
        %6114 = vmatpush1.bf16.msra.mxu0 %v5918
        %6115 = vmatprep.subr.bf16.mxu0 0
        %6116 = vmatpush1.bf16.msra.mxu0 %v5917
        %6117 = vmatprep.subr.bf16.mxu0 0
        %6118 = vmatpush1.bf16.msra.mxu0 %v5916
        %6119 = vmatprep.subr.bf16.mxu0 0
        %6120 = vmatpush1.bf16.msra.mxu0 %v5915
        %6121 = vmatprep.subr.bf16.mxu0 0
        %6122 = vmatpush1.bf16.msra.mxu0 %v5914
        %6123 = vmatprep.subr.bf16.mxu0 0
        %6124 = vmatpush2.bf16.msra.mxu0 0
        %6125 = vmatprep.subr.bf16.mxu0 0
        %6126 = vmatpush2.bf16.msra.mxu0 0
        %6127 = vmatprep.subr.bf16.mxu0 0
        %6128 = vmatpush2.bf16.msra.mxu0 0
        %6129 = vmatprep.subr.bf16.mxu0 0
        %6130 = vmatpush2.bf16.msra.mxu0 0
        %6131 = vmatprep.subr.bf16.mxu0 0
        %6132 = vmatpush2.bf16.msra.mxu0 0
        %6133 = vmatprep.subr.bf16.mxu0 0
        %6134 = vmatpush2.bf16.msra.mxu0 0
        %6135 = vmatprep.subr.bf16.mxu0 0
        %6136 = vmatpush2.bf16.msra.mxu0 0
        %6137 = vmatprep.subr.bf16.mxu0 0
        %6138 = vmatpush2.bf16.msra.mxu0 0
        %6139 = vmatprep.mubr.bf16.mxu0 0
        %6140 = vmatmul.mubr.bf16.gmra.mxu0 %v5708
        %v6141 = vpop.f32.mrf.mxu0
        %v6142 = vadd.f32 %v5981, %v6141
        %v6143 = vpop.f32.mrf.mxu0
        %v6144 = vpop.f32.mrf.mxu0
        %v6145 = vadd.f32 %v5984, %v6144
        %v6146 = vpop.f32.mrf.mxu0
        %6147 = vmatprep.mubr.bf16.mxu0 0
        %6148 = vmatmul.mubr.bf16.gmra.mxu0 %v5711
        %v6149 = vpop.f32.mrf.mxu0
        %v6150 = vadd.f32 %v5989, %v6149
        %v6151 = vpop.f32.mrf.mxu0
        %v6152 = vpop.f32.mrf.mxu0
        %v6153 = vadd.f32 %v5992, %v6152
        %v6154 = vpop.f32.mrf.mxu0
        %6155 = vmatprep.mubr.bf16.mxu0 0
        %6156 = vmatmul.mubr.bf16.gmra.mxu0 %v5714
        %v6157 = vpop.f32.mrf.mxu0
        %v6158 = vadd.f32 %v5997, %v6157
        %v6159 = vpop.f32.mrf.mxu0
        %v6160 = vpop.f32.mrf.mxu0
        %v6161 = vadd.f32 %v6000, %v6160
        %v6162 = vpop.f32.mrf.mxu0
        %6163 = vmatprep.mubr.bf16.mxu0 0
        %6164 = vmatmul.mubr.bf16.gmra.mxu0 %v5717
        %v6165 = vpop.f32.mrf.mxu0
        %v6166 = vadd.f32 %v6005, %v6165
        %v6167 = vpop.f32.mrf.mxu0
        %v6168 = vpop.f32.mrf.mxu0
        %v6169 = vadd.f32 %v6008, %v6168
        %v6170 = vpop.f32.mrf.mxu0
        %6171 = vmatprep.mubr.bf16.mxu0 0
        %6172 = vmatmul.mubr.bf16.gmra.mxu0 %v5720
        %v6173 = vpop.f32.mrf.mxu0
        %v6174 = vadd.f32 %v6013, %v6173
        %v6175 = vpop.f32.mrf.mxu0
        %v6176 = vpop.f32.mrf.mxu0
        %v6177 = vadd.f32 %v6016, %v6176
        %v6178 = vpop.f32.mrf.mxu0
        %6179 = vmatprep.mubr.bf16.mxu0 0
        %6180 = vmatmul.mubr.bf16.gmra.mxu0 %v5723
        %v6181 = vpop.f32.mrf.mxu0
        %v6182 = vadd.f32 %v6021, %v6181
        %v6183 = vpop.f32.mrf.mxu0
        %v6184 = vpop.f32.mrf.mxu0
        %v6185 = vadd.f32 %v6024, %v6184
        %v6186 = vpop.f32.mrf.mxu0
        %6187 = vmatprep.mubr.bf16.mxu0 0
        %6188 = vmatmul.mubr.bf16.gmra.mxu0 %v5726
        %v6189 = vpop.f32.mrf.mxu0
        %v6190 = vadd.f32 %v6029, %v6189
        %v6191 = vpop.f32.mrf.mxu0
        %v6192 = vpop.f32.mrf.mxu0
        %v6193 = vadd.f32 %v6032, %v6192
        %v6194 = vpop.f32.mrf.mxu0
        %6195 = vmatprep.mubr.bf16.mxu0 0
        %6196 = vmatmul.mubr.bf16.gmra.mxu0 %v5729
        %v6197 = vpop.f32.mrf.mxu0
        %v6198 = vadd.f32 %v6037, %v6197
        %v6199 = vpop.f32.mrf.mxu0
        %v6200 = vpop.f32.mrf.mxu0
        %v6201 = vadd.f32 %v6040, %v6200
        %v6202 = vpop.f32.mrf.mxu0
        %6203 = vmatprep.mubr.bf16.mxu0 0
        %6204 = vmatmul.mubr.bf16.gmra.mxu0 %v5732
        %v6205 = vpop.f32.mrf.mxu0
        %v6206 = vadd.f32 %v6045, %v6205
        %v6207 = vpop.f32.mrf.mxu0
        %v6208 = vpop.f32.mrf.mxu0
        %v6209 = vadd.f32 %v6048, %v6208
        %v6210 = vpop.f32.mrf.mxu0
        %6211 = vmatprep.mubr.bf16.mxu0 0
        %6212 = vmatmul.mubr.bf16.gmra.mxu0 %v5735
        %v6213 = vpop.f32.mrf.mxu0
        %v6214 = vadd.f32 %v6053, %v6213
        %v6215 = vpop.f32.mrf.mxu0
        %v6216 = vpop.f32.mrf.mxu0
        %v6217 = vadd.f32 %v6056, %v6216
        %v6218 = vpop.f32.mrf.mxu0
        %6219 = vmatprep.mubr.bf16.mxu0 0
        %6220 = vmatmul.mubr.bf16.gmra.mxu0 %v5738
        %v6221 = vpop.f32.mrf.mxu0
        %v6222 = vadd.f32 %v6061, %v6221
        %v6223 = vpop.f32.mrf.mxu0
        %v6224 = vpop.f32.mrf.mxu0
        %v6225 = vadd.f32 %v6064, %v6224
        %v6226 = vpop.f32.mrf.mxu0
        %6227 = vmatprep.mubr.bf16.mxu0 0
        %6228 = vmatmul.mubr.bf16.gmra.mxu0 %v5741
        %v6229 = vpop.f32.mrf.mxu0
        %v6230 = vadd.f32 %v6069, %v6229
        %v6231 = vpop.f32.mrf.mxu0
        %v6232 = vpop.f32.mrf.mxu0
        %v6233 = vadd.f32 %v6072, %v6232
        %v6234 = vpop.f32.mrf.mxu0
        %6235 = vmatprep.mubr.bf16.mxu0 0
        %6236 = vmatmul.mubr.bf16.gmra.mxu0 %v5744
        %v6237 = vpop.f32.mrf.mxu0
        %v6238 = vadd.f32 %v6077, %v6237
        %v6239 = vpop.f32.mrf.mxu0
        %v6240 = vpop.f32.mrf.mxu0
        %v6241 = vadd.f32 %v6080, %v6240
        %v6242 = vpop.f32.mrf.mxu0
        %6243 = vmatprep.mubr.bf16.mxu0 0
        %6244 = vmatmul.mubr.bf16.gmra.mxu0 %v5747
        %v6245 = vpop.f32.mrf.mxu0
        %v6246 = vadd.f32 %v6085, %v6245
        %v6247 = vpop.f32.mrf.mxu0
        %v6248 = vpop.f32.mrf.mxu0
        %v6249 = vadd.f32 %v6088, %v6248
        %v6250 = vpop.f32.mrf.mxu0
        %6251 = vmatprep.mubr.bf16.mxu0 0
        %6252 = vmatmul.mubr.bf16.gmra.mxu0 %v5750
        %v6253 = vpop.f32.mrf.mxu0
        %v6254 = vadd.f32 %v6093, %v6253
        %v6255 = vpop.f32.mrf.mxu0
        %v6256 = vpop.f32.mrf.mxu0
        %v6257 = vadd.f32 %v6096, %v6256
        %v6258 = vpop.f32.mrf.mxu0
        %6259 = vmatprep.mubr.bf16.mxu0 0
        %6260 = vmatmul.mubr.bf16.gmra.mxu0 %v5753
        %v6261 = vpop.f32.mrf.mxu0
        %v6262 = vadd.f32 %v6101, %v6261
        %v6263 = vpop.f32.mrf.mxu0
        %v6264 = vpop.f32.mrf.mxu0
        %v6265 = vadd.f32 %v6104, %v6264
        %v6266 = vpop.f32.mrf.mxu0
        %6267 = vdwg.mxu0
        %v6268 = vld [vmem:[#allocation3] sm:$0xff]
        %v6269 = vld [vmem:[#allocation3 + $0x8] sm:$0xff]
        %v6270 = vld [vmem:[#allocation3 + $0x10] sm:$0xff]
        %v6271 = vld [vmem:[#allocation3 + $0x18] sm:$0xff]
        %v6272 = vld [vmem:[#allocation3 + $0x20] sm:$0xff]
        %v6273 = vld [vmem:[#allocation3 + $0x28] sm:$0xff]
        %v6274 = vld [vmem:[#allocation3 + $0x30] sm:$0xff]
        %v6275 = vld [vmem:[#allocation3 + $0x38] sm:$0xff]
        %v6276 = vld [vmem:[#allocation3 + $0x40] sm:$0xff]
        %v6277 = vld [vmem:[#allocation3 + $0x48] sm:$0xff]
        %v6278 = vld [vmem:[#allocation3 + $0x50] sm:$0xff]
        %v6279 = vld [vmem:[#allocation3 + $0x58] sm:$0xff]
        %v6280 = vld [vmem:[#allocation3 + $0x60] sm:$0xff]
        %v6281 = vld [vmem:[#allocation3 + $0x68] sm:$0xff]
        %v6282 = vld [vmem:[#allocation3 + $0x70] sm:$0xff]
        %v6283 = vld [vmem:[#allocation3 + $0x78] sm:$0xff]
        %v6284 = vld [vmem:[#allocation3 + $0x80] sm:$0xff]
        %v6285 = vld [vmem:[#allocation3 + $0x88] sm:$0xff]
        %v6286 = vld [vmem:[#allocation3 + $0x90] sm:$0xff]
        %v6287 = vld [vmem:[#allocation3 + $0x98] sm:$0xff]
        %v6288 = vld [vmem:[#allocation3 + $0xa0] sm:$0xff]
        %v6289 = vld [vmem:[#allocation3 + $0xa8] sm:$0xff]
        %v6290 = vld [vmem:[#allocation3 + $0xb0] sm:$0xff]
        %v6291 = vld [vmem:[#allocation3 + $0xb8] sm:$0xff]
        %v6292 = vld [vmem:[#allocation3 + $0xc0] sm:$0xff]
        %v6293 = vld [vmem:[#allocation3 + $0xc8] sm:$0xff]
        %v6294 = vld [vmem:[#allocation3 + $0xd0] sm:$0xff]
        %v6295 = vld [vmem:[#allocation3 + $0xd8] sm:$0xff]
        %v6296 = vld [vmem:[#allocation3 + $0xe0] sm:$0xff]
        %v6297 = vld [vmem:[#allocation3 + $0xe8] sm:$0xff]
        %v6298 = vld [vmem:[#allocation3 + $0xf0] sm:$0xff]
        %v6299 = vld [vmem:[#allocation3 + $0xf8] sm:$0xff]
        %v6300 = vadd.f32 %v6268, %v6142
        %v6301 = vadd.f32 %v6269, %v6145
        %v6302 = vadd.f32 %v6270, %v6150
        %v6303 = vadd.f32 %v6271, %v6153
        %v6304 = vadd.f32 %v6272, %v6158
        %v6305 = vadd.f32 %v6273, %v6161
        %v6306 = vadd.f32 %v6274, %v6166
        %v6307 = vadd.f32 %v6275, %v6169
        %v6308 = vadd.f32 %v6276, %v6174
        %v6309 = vadd.f32 %v6277, %v6177
        %v6310 = vadd.f32 %v6278, %v6182
        %v6311 = vadd.f32 %v6279, %v6185
        %v6312 = vadd.f32 %v6280, %v6190
        %v6313 = vadd.f32 %v6281, %v6193
        %v6314 = vadd.f32 %v6282, %v6198
        %v6315 = vadd.f32 %v6283, %v6201
        %v6316 = vadd.f32 %v6284, %v6206
        %v6317 = vadd.f32 %v6285, %v6209
        %v6318 = vadd.f32 %v6286, %v6214
        %v6319 = vadd.f32 %v6287, %v6217
        %v6320 = vadd.f32 %v6288, %v6222
        %v6321 = vadd.f32 %v6289, %v6225
        %v6322 = vadd.f32 %v6290, %v6230
        %v6323 = vadd.f32 %v6291, %v6233
        %v6324 = vadd.f32 %v6292, %v6238
        %v6325 = vadd.f32 %v6293, %v6241
        %v6326 = vadd.f32 %v6294, %v6246
        %v6327 = vadd.f32 %v6295, %v6249
        %v6328 = vadd.f32 %v6296, %v6254
        %v6329 = vadd.f32 %v6297, %v6257
        %v6330 = vadd.f32 %v6298, %v6262
        %v6331 = vadd.f32 %v6299, %v6265
        %6332 = vst [vmem:[#allocation3] sm:$0xff] %v6300
        %6333 = vst [vmem:[#allocation3 + $0x8] sm:$0xff] %v6301
        %6334 = vst [vmem:[#allocation3 + $0x10] sm:$0xff] %v6302
        %6335 = vst [vmem:[#allocation3 + $0x18] sm:$0xff] %v6303
        %6336 = vst [vmem:[#allocation3 + $0x20] sm:$0xff] %v6304
        %6337 = vst [vmem:[#allocation3 + $0x28] sm:$0xff] %v6305
        %6338 = vst [vmem:[#allocation3 + $0x30] sm:$0xff] %v6306
        %6339 = vst [vmem:[#allocation3 + $0x38] sm:$0xff] %v6307
        %6340 = vst [vmem:[#allocation3 + $0x40] sm:$0xff] %v6308
        %6341 = vst [vmem:[#allocation3 + $0x48] sm:$0xff] %v6309
        %6342 = vst [vmem:[#allocation3 + $0x50] sm:$0xff] %v6310
        %6343 = vst [vmem:[#allocation3 + $0x58] sm:$0xff] %v6311
        %6344 = vst [vmem:[#allocation3 + $0x60] sm:$0xff] %v6312
        %6345 = vst [vmem:[#allocation3 + $0x68] sm:$0xff] %v6313
        %6346 = vst [vmem:[#allocation3 + $0x70] sm:$0xff] %v6314
        %6347 = vst [vmem:[#allocation3 + $0x78] sm:$0xff] %v6315
        %6348 = vst [vmem:[#allocation3 + $0x80] sm:$0xff] %v6316
        %6349 = vst [vmem:[#allocation3 + $0x88] sm:$0xff] %v6317
        %6350 = vst [vmem:[#allocation3 + $0x90] sm:$0xff] %v6318
        %6351 = vst [vmem:[#allocation3 + $0x98] sm:$0xff] %v6319
        %6352 = vst [vmem:[#allocation3 + $0xa0] sm:$0xff] %v6320
        %6353 = vst [vmem:[#allocation3 + $0xa8] sm:$0xff] %v6321
        %6354 = vst [vmem:[#allocation3 + $0xb0] sm:$0xff] %v6322
        %6355 = vst [vmem:[#allocation3 + $0xb8] sm:$0xff] %v6323
        %6356 = vst [vmem:[#allocation3 + $0xc0] sm:$0xff] %v6324
        %6357 = vst [vmem:[#allocation3 + $0xc8] sm:$0xff] %v6325
        %6358 = vst [vmem:[#allocation3 + $0xd0] sm:$0xff] %v6326
        %6359 = vst [vmem:[#allocation3 + $0xd8] sm:$0xff] %v6327
        %6360 = vst [vmem:[#allocation3 + $0xe0] sm:$0xff] %v6328
        %6361 = vst [vmem:[#allocation3 + $0xe8] sm:$0xff] %v6329
        %6362 = vst [vmem:[#allocation3 + $0xf0] sm:$0xff] %v6330
        %6363 = vst [vmem:[#allocation3 + $0xf8] sm:$0xff] %v6331
        loop: start=0, step=1, limit=4
        $region66: #{tpu_custom_call.1} parent=31 // loop_pre_header
          _
        $region67: #{tpu_custom_call.1} parent=31 // loop_header
          %s6365 = sphi 0, %s6369
          %p6366 = scmp.ge.s32.totalorder %s6365, 4
          %v6370 = vphi 0.0, %v6395
          %v6371 = vphi 0.0, %v6417
        $region68: #{tpu_custom_call.1} parent=31 // loop_header_branch
          %6368 = sbr.rel (%p6366) target = $region72
        $region69: #{tpu_custom_call.1} parent=31 // loop_body
          %s6372 = smul.u32 %s6365, 64
          %s6373 = scalar_lea.vmem [#allocation3], %s6372
          %v6374 = vld [vmem:[%s6373] sm:$0xff]
          %v6375 = vld [vmem:[%s6373 + $0x8] sm:$0xff]
          %v6376 = vld [vmem:[%s6373 + $0x10] sm:$0xff]
          %v6377 = vld [vmem:[%s6373 + $0x18] sm:$0xff]
          %v6378 = vld [vmem:[%s6373 + $0x20] sm:$0xff]
          %v6379 = vld [vmem:[%s6373 + $0x28] sm:$0xff]
          %v6380 = vld [vmem:[%s6373 + $0x30] sm:$0xff]
          %v6381 = vld [vmem:[%s6373 + $0x38] sm:$0xff]
          %v6382 = vadd.f32 %v6374, %v6375
          %v6383 = vadd.f32 %v6382, %v6376
          %v6384 = vadd.f32 %v6383, %v6377
          %v6385 = vadd.f32 %v6384, %v6378
          %v6386 = vadd.f32 %v6385, %v6379
          %v6387 = vadd.f32 %v6386, %v6380
          %v6388 = vadd.f32 %v6387, %v6381
          %v6389 = vrot.slane %v6388, 4
          %v6390 = vadd.f32 %v6388, %v6389
          %v6391 = vrot.slane %v6390, 2
          %v6392 = vadd.f32 %v6390, %v6391
          %v6393 = vrot.slane %v6392, 1
          %v6394 = vadd.f32 %v6392, %v6393
          %v6395 = vadd.f32 %v6370, %v6394
          %v6396 = vmul.f32 %v6374, %v6374
          %v6397 = vmul.f32 %v6375, %v6375
          %v6398 = vmul.f32 %v6376, %v6376
          %v6399 = vmul.f32 %v6377, %v6377
          %v6400 = vmul.f32 %v6378, %v6378
          %v6401 = vmul.f32 %v6379, %v6379
          %v6402 = vmul.f32 %v6380, %v6380
          %v6403 = vmul.f32 %v6381, %v6381
          %v6404 = vadd.f32 %v6396, %v6397
          %v6405 = vadd.f32 %v6404, %v6398
          %v6406 = vadd.f32 %v6405, %v6399
          %v6407 = vadd.f32 %v6406, %v6400
          %v6408 = vadd.f32 %v6407, %v6401
          %v6409 = vadd.f32 %v6408, %v6402
          %v6410 = vadd.f32 %v6409, %v6403
          %v6411 = vrot.slane %v6410, 4
          %v6412 = vadd.f32 %v6410, %v6411
          %v6413 = vrot.slane %v6412, 2
          %v6414 = vadd.f32 %v6412, %v6413
          %v6415 = vrot.slane %v6414, 1
          %v6416 = vadd.f32 %v6414, %v6415
          %v6417 = vadd.f32 %v6371, %v6416
        $region70: #{tpu_custom_call.1} parent=31 // loop_footer
          %s6369 = sadd.s32 1, %s6365
        $region71: #{tpu_custom_call.1} parent=31 // loop_footer_branch
          %6364 = sbr.rel target = $region67
        $region72: #{tpu_custom_call.1} parent=31 // loop_exit
          _
        %v6418 = vmul.f32 %v6370, 0.00390625
        %v6419 = vmul.f32 %v6371, 0.00390625
        %v6420 = vmul.f32 %v6418, %v6418
        %v6421 = vsub.f32 %v6419, %v6420
        %v6422 = vmax.f32 %v6421, 0.0
        %v6423 = vadd.f32 %v6422, 1e-05
        %v6424 = vrsqrt.pop %v6423
        loop: start=0, step=1, limit=4
        $region73: #{tpu_custom_call.1} parent=31 // loop_pre_header
          _
        $region74: #{tpu_custom_call.1} parent=31 // loop_header
          %s6426 = sphi 0, %s6430
          %p6427 = scmp.ge.s32.totalorder %s6426, 4
        $region75: #{tpu_custom_call.1} parent=31 // loop_header_branch
          %6429 = sbr.rel (%p6427) target = $region79
        $region76: #{tpu_custom_call.1} parent=31 // loop_body
          %s6431 = smul.u32 %s6426, 4
          %s6432 = smul.u32 %s6426, 64
          %s6433 = scalar_lea.vmem [#allocation3], %s6432
          %v6434 = vld [vmem:[%s6433] sm:$0xff]
          %v6435 = vld [vmem:[%s6433 + $0x8] sm:$0xff]
          %v6436 = vld [vmem:[%s6433 + $0x10] sm:$0xff]
          %v6437 = vld [vmem:[%s6433 + $0x18] sm:$0xff]
          %v6438 = vld [vmem:[%s6433 + $0x20] sm:$0xff]
          %v6439 = vld [vmem:[%s6433 + $0x28] sm:$0xff]
          %v6440 = vld [vmem:[%s6433 + $0x30] sm:$0xff]
          %v6441 = vld [vmem:[%s6433 + $0x38] sm:$0xff]
          %v6442 = vsub.f32 %v6434, %v6418
          %v6443 = vsub.f32 %v6435, %v6418
          %v6444 = vsub.f32 %v6436, %v6418
          %v6445 = vsub.f32 %v6437, %v6418
          %v6446 = vsub.f32 %v6438, %v6418
          %v6447 = vsub.f32 %v6439, %v6418
          %v6448 = vsub.f32 %v6440, %v6418
          %v6449 = vsub.f32 %v6441, %v6418
          %v6450 = vmul.f32 %v6442, %v6424
          %v6451 = vmul.f32 %v6443, %v6424
          %v6452 = vmul.f32 %v6444, %v6424
          %v6453 = vmul.f32 %v6445, %v6424
          %v6454 = vmul.f32 %v6446, %v6424
          %v6455 = vmul.f32 %v6447, %v6424
          %v6456 = vmul.f32 %v6448, %v6424
          %v6457 = vmul.f32 %v6449, %v6424
          %v6458 = vlaneseq
          %v6459 = vshrl.u32 %v6458, 7
          %v6460 = vsub.s32 2, %v6459
          %v6461 = vrot.slane %v241, %v6460
          %v6462 = vmul.f32 %v6450, %v6461
          %v6463 = vmul.f32 %v6451, %v6461
          %v6464 = vmul.f32 %v6452, %v6461
          %v6465 = vmul.f32 %v6453, %v6461
          %v6466 = vmul.f32 %v6454, %v6461
          %v6467 = vmul.f32 %v6455, %v6461
          %v6468 = vmul.f32 %v6456, %v6461
          %v6469 = vmul.f32 %v6457, %v6461
          %v6470 = vlaneseq
          %v6471 = vshrl.u32 %v6470, 7
          %v6472 = vsub.s32 3, %v6471
          %v6473 = vrot.slane %v241, %v6472
          %v6474 = vadd.f32 %v6462, %v6473
          %v6475 = vadd.f32 %v6463, %v6473
          %v6476 = vadd.f32 %v6464, %v6473
          %v6477 = vadd.f32 %v6465, %v6473
          %v6478 = vadd.f32 %v6466, %v6473
          %v6479 = vadd.f32 %v6467, %v6473
          %v6480 = vadd.f32 %v6468, %v6473
          %v6481 = vadd.f32 %v6469, %v6473
          %s6482 = smul.u32 %s6431, 16
          %s6483 = scalar_lea.vmem %s199, %s6482 [#allocation4]
          %v6484 = vld [vmem:[%s6483] sm:$0xff]
          %v6485 = vld [vmem:[%s6483 + $0x8] sm:$0xff]
          %v6486 = vld [vmem:[%s6483 + $0x10] sm:$0xff]
          %v6487 = vld [vmem:[%s6483 + $0x18] sm:$0xff]
          %v6488 = vld [vmem:[%s6483 + $0x20] sm:$0xff]
          %v6489 = vld [vmem:[%s6483 + $0x28] sm:$0xff]
          %v6490 = vld [vmem:[%s6483 + $0x30] sm:$0xff]
          %v6491 = vld [vmem:[%s6483 + $0x38] sm:$0xff]
          %v6492 = vadd.f32 %v6484, %v6474
          %v6493 = vadd.f32 %v6485, %v6475
          %v6494 = vadd.f32 %v6486, %v6476
          %v6495 = vadd.f32 %v6487, %v6477
          %v6496 = vadd.f32 %v6488, %v6478
          %v6497 = vadd.f32 %v6489, %v6479
          %v6498 = vadd.f32 %v6490, %v6480
          %v6499 = vadd.f32 %v6491, %v6481
          %s6500 = scalar_lea.vmem %s239, %s6482 [#allocation10]
          %6501 = vst [vmem:[%s6500] sm:$0xff] %v6492
          %6502 = vst [vmem:[%s6500 + $0x8] sm:$0xff] %v6493
          %6503 = vst [vmem:[%s6500 + $0x10] sm:$0xff] %v6494
          %6504 = vst [vmem:[%s6500 + $0x18] sm:$0xff] %v6495
          %6505 = vst [vmem:[%s6500 + $0x20] sm:$0xff] %v6496
          %6506 = vst [vmem:[%s6500 + $0x28] sm:$0xff] %v6497
          %6507 = vst [vmem:[%s6500 + $0x30] sm:$0xff] %v6498
          %6508 = vst [vmem:[%s6500 + $0x38] sm:$0xff] %v6499
        $region77: #{tpu_custom_call.1} parent=31 // loop_footer
          %s6430 = sadd.s32 1, %s6426
        $region78: #{tpu_custom_call.1} parent=31 // loop_footer_branch
          %6425 = sbr.rel target = $region74
        $region79: #{tpu_custom_call.1} parent=31 // loop_exit
          _
        %s6509 = sand.u32 %s104, 1
        %s6510 = scalar_lea.sflag [#allocation6], %s6509
        %s6511 = sand.u32 %s104, 1
        %s6512 = smul.addr %s6511, 256
        %s6513 = scalar_lea.vmem [#allocation10], %s6512
        // Predicated region
        $region80: #{tpu_custom_call.1} parent=31 // pred_check
          %p6514 = pneg %p114
        $region81: #{tpu_custom_call.1} parent=31 // pred_check_branch
          %6516 = sbr.rel (%p6514) target = $region83
        $region82: #{tpu_custom_call.1} parent=31 // pred_region
          %s6518 = ssub.s32 4096, 4096
          %6519 = vsyncadd %s6510, %s6518
          %s6520 = smul.addr %s23, 32
          %s6521 = smul.addr %s6520, 128
          %s6522 = scalar_lea.hbm %s3, %s6521
          %s6523 = sshll.u32 %s6513, 4
          %s6524 = int_to_ptr.vmem [resolvable:$true] %s6523
          %6529 = dma.vmem_to_hbm [thread:$0]  %s6524, 4096, %s6522, %s6510, 128, 128, 8
        $region83: #{tpu_custom_call.1} parent=31 // pred_fallthru
          _
      $region32: #{tpu_custom_call.1} parent=5 // pred_fallthru
        _
      %p6530 = scmp.le.s32.totalorder 2, %s18
      // Predicated region
      $region84: #{tpu_custom_call.1} parent=5 // pred_check
        %p6531 = pneg %p6530
      $region85: #{tpu_custom_call.1} parent=5 // pred_check_branch
        %6533 = sbr.rel (%p6531) target = $region87
      $region86: #{tpu_custom_call.1} parent=5 // pred_region
        %s6534 = ssub.s32 %s18, 2
        // Predicated region
        $region88: #{tpu_custom_call.1} parent=86 // pred_check
          %p6535 = pneg %p120
        $region89: #{tpu_custom_call.1} parent=86 // pred_check_branch
          %6537 = sbr.rel (%p6535) target = $region91
        $region90: #{tpu_custom_call.1} parent=86 // pred_region
          %s6538 = sand.u32 %s105, 1
          %s6539 = scalar_lea.sflag [#allocation6], %s6538
          %s6540 = sand.u32 %s105, 1
          %s6541 = smul.addr %s6540, 256
          %s6542 = scalar_lea.vmem [#allocation10], %s6541
          %6543 = dma.done %s6539, 4096
        $region91: #{tpu_custom_call.1} parent=86 // pred_fallthru
          _
      $region87: #{tpu_custom_call.1} parent=5 // pred_fallthru
        _
    $region6: #{tpu_custom_call.1} parent=1 // loop_footer
      %s22 = sadd.s32 1, %s18
    $region7: #{tpu_custom_call.1} parent=1 // loop_footer_branch
      %17 = sbr.rel target = $region3
    $region8: #{tpu_custom_call.1} parent=1 // loop_exit
      _
    %6544 = vsyncpa [#allocation5], 1
    %s6545 = scalar_lea.sflag [#allocation5], 1
    %6546 = vsyncpa %s6545, 1
    %6547 = vsyncpa [#allocation8], 1
    %s6548 = scalar_lea.sflag [#allocation8], 1
    %6549 = vsyncpa %s6548, 1
    %6550 = vsyncpa [#allocation6], 1
    %s6551 = scalar_lea.sflag [#allocation6], 1
    %6552 = vsyncpa %s6551, 1

</llo_original>
